<compile_context>
chip_gen: v7x
topology: tpu7x:2x2x1
jax: 0.10.0
libtpu: 0.0.40
codegen_flags: <defaults>
</compile_context>

<pallas_src>
import numpy as np

import jax
import jax.numpy as jnp
from jax.experimental import pallas as pl
from jax.experimental.pallas import tpu as pltpu

EPS = 1e-5
_VMEM_LIMIT = 32 * 1024 * 1024


def _pick_tile_m(m, target=256):
    """Largest multiple of 8 that divides m and is <= target (falls back to m)."""
    t = min(m, target)
    t -= t % 8
    while t >= 8:
        if m % t == 0:
            return t
        t -= 8
    return m


# ---------------------------------------------------------------------------
# Kernel S: per-channel sum / sum-of-squares over a (M, C) array, tiled over M.
# Accumulates into resident (1, C) outputs across an "arbitrary" grid axis.
# ---------------------------------------------------------------------------
def bn_stats_kernel(x_ref, sum_ref, sq_ref):
    @pl.when(pl.program_id(0) == 0)
    def _init():
        sum_ref[...] = jnp.zeros_like(sum_ref)
        sq_ref[...] = jnp.zeros_like(sq_ref)

    x = x_ref[...]
    sum_ref[...] += jnp.sum(x, axis=0, keepdims=True)
    sq_ref[...] += jnp.sum(x * x, axis=0, keepdims=True)


# ---------------------------------------------------------------------------
# Kernel 1: BN1 normalize + ReLU + 1x1 conv (bf16 matmul, f32 accum) on one M tile,
#           with BN2 per-channel sum / sum-of-squares accumulated on the fly.
#   x_ref : (tm, Cin)    s_ref/t_ref : (1, Cin)    w_ref : (Cin, Cmid) bf16
#   h_ref : (tm, Cmid)   sum_ref/sq_ref : (1, Cmid) accumulators
# ---------------------------------------------------------------------------
def bn_relu_conv1x1_kernel(x_ref, s_ref, t_ref, w_ref, h_ref, sum_ref, sq_ref):
    @pl.when(pl.program_id(0) == 0)
    def _init():
        sum_ref[...] = jnp.zeros_like(sum_ref)
        sq_ref[...] = jnp.zeros_like(sq_ref)

    a = jnp.maximum(x_ref[...] * s_ref[...] + t_ref[...], 0.0)     # f32 BN math
    h = jnp.dot(a.astype(jnp.bfloat16), w_ref[...],
                preferred_element_type=jnp.float32)                # (tm, Cmid) f32
    h_ref[...] = h
    # fused BN2 statistics (saves a full extra HBM pass over the intermediate)
    sum_ref[...] += jnp.sum(h, axis=0, keepdims=True)
    sq_ref[...] += jnp.sum(h * h, axis=0, keepdims=True)


# ---------------------------------------------------------------------------
# Kernel 2: BN2 normalize + ReLU + 3x3 conv (padding=1) for one image, via im2col.
#   h_ref    : (H, W, C)          this image's activations (leading N squeezed)
#   s_ref/t_ref : (1, C)          precomputed BN2 scale / shift
#   w_ref    : (G, 9*C)  bf16     conv weight, columns ordered (ky, kx, c)
#   o_ref    : (G, H*W)  f32      channels-first output (lane-dense, == flat NCHW)
#   pad_ref  : (H+2, W+2, C) f32  zero-padded activations (scratch)
#   patch_ref: (H*W, 9*C) bf16    im2col patch matrix (scratch)
# ---------------------------------------------------------------------------
def bn_relu_conv3x3_kernel(h_ref, s_ref, t_ref, w_ref, o_ref, pad_ref, patch_ref):
    H, W, C = h_ref.shape

    a = jnp.maximum(h_ref[...] * s_ref[...] + t_ref[...], 0.0)     # (H, W, C) f32

    # Zero only the 1-pixel halo each step (interior is fully overwritten below, and the
    # grid axis is 'parallel', so a one-time program_id==0 init would not be core-safe).
    pad_ref[0:1, :, :] = jnp.zeros((1, W + 2, C), jnp.float32)
    pad_ref[H + 1:H + 2, :, :] = jnp.zeros((1, W + 2, C), jnp.float32)
    pad_ref[1:H + 1, 0:1, :] = jnp.zeros((H, 1, C), jnp.float32)
    pad_ref[1:H + 1, W + 1:W + 2, :] = jnp.zeros((H, 1, C), jnp.float32)
    pad_ref[1:H + 1, 1:W + 1, :] = a

    # im2col: build the (H*W, 9*C) patch matrix in VMEM scratch (one bounded store per
    # tap), then a single K=9*C matmul instead of 9 tiny K=C dots.
    for k in range(9):                                             # static 3x3 unroll
        dy, dx = k // 3, k % 3
        win = pad_ref[dy:dy + H, dx:dx + W, :].reshape(H * W, C)
        patch_ref[:, k * C:(k + 1) * C] = win.astype(jnp.bfloat16)

    # (G, 9C) contracted with (H*W, 9C) over the 9C axis -> (G, H*W): the output lands
    # channels-on-sublanes / pixels-on-lanes, so the store is lane-dense and already in
    # flattened-NCHW layout (no transpose needed downstream).
    o_ref[...] = jax.lax.dot_general(
        w_ref[...], patch_ref[...],
        dimension_numbers=(((1,), (1,)), ((), ())),
        preferred_element_type=jnp.float32)


# ---------------------------------------------------------------------------
# Wrapper (glue: input layout transpose, BN scale/shift finalization, concat)
# ---------------------------------------------------------------------------
def bottleneck_forward(x_nchw, params, *, tile_m=256):
    g1, b1, w1, g2, b2, w2 = params          # w1: (Cin, Cmid), w2: (3, 3, Cmid, G)
    N, Cin, H, W = x_nchw.shape
    Cmid = w1.shape[1]
    G = w2.shape[-1]
    M = N * H * W
    tm = _pick_tile_m(M, tile_m)
    n_tiles = M // tm

    # layout glue: NCHW -> NHWC(flat) for the channels-last kernels; weights -> bf16
    x2d = jnp.transpose(x_nchw, (0, 2, 3, 1)).reshape(M, Cin)
    w1_bf = w1.astype(jnp.bfloat16)
    # (3,3,Cmid,G) -> (G, 9*Cmid); column order (ky, kx, c) matches the im2col patch
    w2_bf = jnp.transpose(w2.reshape(9 * Cmid, G), (1, 0)).astype(jnp.bfloat16)

    # ---- pass 1: BN1 batch statistics (tiled reduction over M) ----------------------
    sum1, sq1 = pl.pallas_call(
        bn_stats_kernel,
        out_shape=(jax.ShapeDtypeStruct((1, Cin), jnp.float32),
                   jax.ShapeDtypeStruct((1, Cin), jnp.float32)),
        grid=(n_tiles,),
        in_specs=[pl.BlockSpec((tm, Cin), lambda i: (i, 0))],
        out_specs=(pl.BlockSpec((1, Cin), lambda i: (0, 0)),
                   pl.BlockSpec((1, Cin), lambda i: (0, 0))),
        compiler_params=pltpu.CompilerParams(
            dimension_semantics=("arbitrary",),
            vmem_limit_bytes=_VMEM_LIMIT),
    )(x2d)
    mean1 = sum1 / M
    var1 = sq1 / M - mean1 * mean1
    s1 = g1.reshape(1, Cin) * jax.lax.rsqrt(var1 + EPS)
    t1 = b1.reshape(1, Cin) - mean1 * s1

    # ---- pass 2: BN1 normalize + ReLU + 1x1 conv, fused BN2 stats --------------------
    # grid axis is "arbitrary" because the BN2-stat accumulators are carried across
    # steps (the fusion saves a full extra pass over the (M, Cmid) intermediate).
    h1, sum2, sq2 = pl.pallas_call(
        bn_relu_conv1x1_kernel,
        out_shape=(jax.ShapeDtypeStruct((M, Cmid), jnp.float32),
                   jax.ShapeDtypeStruct((1, Cmid), jnp.float32),
                   jax.ShapeDtypeStruct((1, Cmid), jnp.float32)),
        grid=(n_tiles,),
        in_specs=[
            pl.BlockSpec((tm, Cin), lambda i: (i, 0)),
            pl.BlockSpec((1, Cin), lambda i: (0, 0)),
            pl.BlockSpec((1, Cin), lambda i: (0, 0)),
            pl.BlockSpec((Cin, Cmid), lambda i: (0, 0)),
        ],
        out_specs=(
            pl.BlockSpec((tm, Cmid), lambda i: (i, 0)),
            pl.BlockSpec((1, Cmid), lambda i: (0, 0)),
            pl.BlockSpec((1, Cmid), lambda i: (0, 0)),
        ),
        compiler_params=pltpu.CompilerParams(
            dimension_semantics=("arbitrary",),
            vmem_limit_bytes=_VMEM_LIMIT),
        cost_estimate=pl.CostEstimate(
            flops=2 * M * Cin * Cmid,
            transcendentals=0,
            bytes_accessed=4 * M * Cin + 2 * Cin * Cmid + 4 * M * Cmid),
    )(x2d, s1, t1, w1_bf)
    mean2 = sum2 / M
    var2 = sq2 / M - mean2 * mean2
    s2 = g2.reshape(1, Cmid) * jax.lax.rsqrt(var2 + EPS)
    t2 = b2.reshape(1, Cmid) - mean2 * s2

    # ---- pass 3: BN2 normalize + ReLU + 3x3 conv (padding=1), one image per step -----
    h1_4d = h1.reshape(N, H, W, Cmid)
    y_flat = pl.pallas_call(
        bn_relu_conv3x3_kernel,
        out_shape=jax.ShapeDtypeStruct((N, G, H * W), jnp.float32),
        grid=(N,),
        in_specs=[
            pl.BlockSpec((None, H, W, Cmid), lambda n: (n, 0, 0, 0)),
            pl.BlockSpec((1, Cmid), lambda n: (0, 0)),
            pl.BlockSpec((1, Cmid), lambda n: (0, 0)),
            pl.BlockSpec((G, 9 * Cmid), lambda n: (0, 0)),
        ],
        out_specs=pl.BlockSpec((None, G, H * W), lambda n: (n, 0, 0)),
        scratch_shapes=[
            pltpu.VMEM((H + 2, W + 2, Cmid), jnp.float32),      # padded activations
            pltpu.VMEM((H * W, 9 * Cmid), jnp.bfloat16),        # im2col patch matrix
        ],
        compiler_params=pltpu.CompilerParams(
            dimension_semantics=("parallel",),   # images independent -> v7x 2nd TC
            vmem_limit_bytes=_VMEM_LIMIT),
        cost_estimate=pl.CostEstimate(
            flops=2 * M * 9 * Cmid * G,
            transcendentals=0,
            bytes_accessed=4 * M * Cmid + 2 * 9 * Cmid * G + 4 * M * G),
    )(h1_4d, s2, t2, w2_bf)

    # final channel concat (identity first, as in torch.cat([identity, x], dim=1))
    y_nchw = y_flat.reshape(N, G, H, W)          # free reshape: already channels-first
    return jnp.concatenate([x_nchw, y_nchw], axis=1)


# ---------------------------------------------------------------------------
# Pure-JAX reference (training-mode BN semantics), for a sanity check
# ---------------------------------------------------------------------------
def reference(x_nchw, params):
    g1, b1, w1, g2, b2, w2 = params

    def bn(x, g, b):
        mean = x.mean(axis=(0, 2, 3), keepdims=True)
        var = ((x - mean) ** 2).mean(axis=(0, 2, 3), keepdims=True)
        return (x - mean) * jax.lax.rsqrt(var + EPS) * g.reshape(1, -1, 1, 1) + b.reshape(1, -1, 1, 1)

    a1 = jax.nn.relu(bn(x_nchw, g1, b1))
    k1 = jnp.transpose(w1, (1, 0))[:, :, None, None]                 # OIHW
    h1 = jax.lax.conv_general_dilated(a1, k1, (1, 1), 'VALID',
                                      dimension_numbers=('NCHW', 'OIHW', 'NCHW'))
    a2 = jax.nn.relu(bn(h1, g2, b2))
    k2 = jnp.transpose(w2, (3, 2, 0, 1))                             # OIHW
    y = jax.lax.conv_general_dilated(a2, k2, (1, 1), ((1, 1), (1, 1)),
                                     dimension_numbers=('NCHW', 'OIHW', 'NCHW'))
    return jnp.concatenate([x_nchw, y], axis=1)


if __name__ == "__main__":
    key = jax.random.PRNGKey(0)
    N, Cin, H, W = 2, 4, 16, 16
    growth = 8
    Cmid = 4 * growth   # 32

    ks = jax.random.split(key, 7)
    x  = jax.random.normal(ks[0], (N, Cin, H, W), jnp.float32)
    g1 = 1.0 + 0.1 * jax.random.normal(ks[1], (Cin,), jnp.float32)
    b1 = 0.1 * jax.random.normal(ks[2], (Cin,), jnp.float32)
    w1 = 0.2 * jax.random.normal(ks[3], (Cin, Cmid), jnp.float32)
    g2 = 1.0 + 0.1 * jax.random.normal(ks[4], (Cmid,), jnp.float32)
    b2 = 0.1 * jax.random.normal(ks[5], (Cmid,), jnp.float32)
    w2 = 0.1 * jax.random.normal(ks[6], (3, 3, Cmid, growth), jnp.float32)
    params = (g1, b1, w1, g2, b2, w2)

    out = jax.jit(bottleneck_forward)(x, params)
    out = jax.block_until_ready(out)
    assert out.shape == (N, Cin + growth, H, W), out.shape

    ref = reference(x, params)
    np.testing.assert_allclose(np.asarray(out), np.asarray(ref), rtol=2e-2, atol=3e-2)

    print("KERNEL_OK")
</pallas_src>

<mosaic_0001>
module attributes {stable_mosaic.version = 11 : i64} {
  func.func @bn_stats_kernel(%arg0: i32, %arg1: memref<256x4xf32, #tpu.memory_space<vmem>>, %arg2: memref<1x4xf32, #tpu.memory_space<vmem>>, %arg3: memref<1x4xf32, #tpu.memory_space<vmem>>) attributes {dimension_semantics = [#tpu.dimension_semantics<arbitrary>], iteration_bounds = array<i64: 2>, scalar_prefetch = 0 : i64, scratch_operands = 0 : i64, tpu.core_type = #tpu.core_type<tc>, window_params = [{transform_indices = @transform_0, window_bounds = array<i64: 256, 4>}, {pipeline_mode = #tpu.pipeline_mode<synchronous>, transform_indices = @transform_1, window_bounds = array<i64: 1, 4>}, {pipeline_mode = #tpu.pipeline_mode<synchronous>, transform_indices = @transform_2, window_bounds = array<i64: 1, 4>}]} {
    %c0_i32 = arith.constant 0 : i32
    %0 = arith.cmpi eq, %arg0, %c0_i32 : i32
    %1 = arith.extui %0 : i1 to i32
    %c0_i32_0 = arith.constant 0 : i32
    %2 = arith.cmpi ne, %1, %c0_i32_0 : i32
    scf.if %2 {
      %cst_11 = arith.constant 0.000000e+00 : f32
      %15 = vector.broadcast %cst_11 : f32 to vector<1x4xf32>
      %c0_12 = arith.constant 0 : index
      %c0_13 = arith.constant 0 : index
      %16 = vector.load %arg2[%c0_12, %c0_13] : memref<1x4xf32, #tpu.memory_space<vmem>>, vector<1x4xf32>
      tpu.vector_store %arg2[%c0_12, %c0_13], %15 {strides = array<i32>} : memref<1x4xf32, #tpu.memory_space<vmem>>, vector<1x4xf32>,
      %cst_14 = arith.constant 0.000000e+00 : f32
      %17 = vector.broadcast %cst_14 : f32 to vector<1x4xf32>
      %c0_15 = arith.constant 0 : index
      %c0_16 = arith.constant 0 : index
      %18 = vector.load %arg3[%c0_15, %c0_16] : memref<1x4xf32, #tpu.memory_space<vmem>>, vector<1x4xf32>
      tpu.vector_store %arg3[%c0_15, %c0_16], %17 {strides = array<i32>} : memref<1x4xf32, #tpu.memory_space<vmem>>, vector<1x4xf32>,
    } else {
    }
    %c0 = arith.constant 0 : index
    %c0_1 = arith.constant 0 : index
    %3 = vector.load %arg1[%c0, %c0_1] : memref<256x4xf32, #tpu.memory_space<vmem>>, vector<256x4xf32>
    %c0_2 = arith.constant 0 : index
    %c0_3 = arith.constant 0 : index
    %4 = vector.load %arg2[%c0_2, %c0_3] : memref<1x4xf32, #tpu.memory_space<vmem>>, vector<1x4xf32>
    %cst = arith.constant dense<0.000000e+00> : vector<4xf32>
    %5 = vector.multi_reduction <add>, %3, %cst [0] : vector<256x4xf32> to vector<4xf32>
    %6 = vector.shape_cast %5 : vector<4xf32> to vector<1x4xf32>
    %7 = arith.addf %4, %6 : vector<1x4xf32>
    %c0_4 = arith.constant 0 : index
    %c0_5 = arith.constant 0 : index
    %8 = vector.load %arg2[%c0_4, %c0_5] : memref<1x4xf32, #tpu.memory_space<vmem>>, vector<1x4xf32>
    tpu.vector_store %arg2[%c0_4, %c0_5], %7 {strides = array<i32>} : memref<1x4xf32, #tpu.memory_space<vmem>>, vector<1x4xf32>,
    %c0_6 = arith.constant 0 : index
    %c0_7 = arith.constant 0 : index
    %9 = vector.load %arg3[%c0_6, %c0_7] : memref<1x4xf32, #tpu.memory_space<vmem>>, vector<1x4xf32>
    %10 = arith.mulf %3, %3 : vector<256x4xf32>
    %cst_8 = arith.constant dense<0.000000e+00> : vector<4xf32>
    %11 = vector.multi_reduction <add>, %10, %cst_8 [0] : vector<256x4xf32> to vector<4xf32>
    %12 = vector.shape_cast %11 : vector<4xf32> to vector<1x4xf32>
    %13 = arith.addf %9, %12 : vector<1x4xf32>
    %c0_9 = arith.constant 0 : index
    %c0_10 = arith.constant 0 : index
    %14 = vector.load %arg3[%c0_9, %c0_10] : memref<1x4xf32, #tpu.memory_space<vmem>>, vector<1x4xf32>
    tpu.vector_store %arg3[%c0_9, %c0_10], %13 {strides = array<i32>} : memref<1x4xf32, #tpu.memory_space<vmem>>, vector<1x4xf32>,
    return
  }
  func.func @transform_0(%arg0: i32) -> (i32, i32) {
    %c0_i32 = arith.constant 0 : i32
    %c0_i32_0 = arith.constant 0 : i32
    return %arg0, %c0_i32 : i32, i32
  }
  func.func @transform_1(%arg0: i32) -> (i32, i32) {
    %c0_i32 = arith.constant 0 : i32
    %c0_i32_0 = arith.constant 0 : i32
    %c0_i32_1 = arith.constant 0 : i32
    return %c0_i32, %c0_i32_0 : i32, i32
  }
  func.func @transform_2(%arg0: i32) -> (i32, i32) {
    %c0_i32 = arith.constant 0 : i32
    %c0_i32_0 = arith.constant 0 : i32
    %c0_i32_1 = arith.constant 0 : i32
    return %c0_i32, %c0_i32_0 : i32, i32
  }
}

module attributes {stable_mosaic.version = 11 : i64} {
  func.func @bn_relu_conv1x1_kernel(%arg0: i32, %arg1: memref<256x4xf32, #tpu.memory_space<vmem>>, %arg2: memref<1x4xf32, #tpu.memory_space<vmem>>, %arg3: memref<1x4xf32, #tpu.memory_space<vmem>>, %arg4: memref<4x32xbf16, #tpu.memory_space<vmem>>, %arg5: memref<256x32xf32, #tpu.memory_space<vmem>>, %arg6: memref<1x32xf32, #tpu.memory_space<vmem>>, %arg7: memref<1x32xf32, #tpu.memory_space<vmem>>) attributes {dimension_semantics = [#tpu.dimension_semantics<arbitrary>], iteration_bounds = array<i64: 2>, scalar_prefetch = 0 : i64, scratch_operands = 0 : i64, tpu.core_type = #tpu.core_type<tc>, window_params = [{transform_indices = @transform_0, window_bounds = array<i64: 256, 4>}, {pipeline_mode = #tpu.pipeline_mode<synchronous>, transform_indices = @transform_1, window_bounds = array<i64: 1, 4>}, {pipeline_mode = #tpu.pipeline_mode<synchronous>, transform_indices = @transform_2, window_bounds = array<i64: 1, 4>}, {pipeline_mode = #tpu.pipeline_mode<synchronous>, transform_indices = @transform_3, window_bounds = array<i64: 4, 32>}, {transform_indices = @transform_4, window_bounds = array<i64: 256, 32>}, {pipeline_mode = #tpu.pipeline_mode<synchronous>, transform_indices = @transform_5, window_bounds = array<i64: 1, 32>}, {pipeline_mode = #tpu.pipeline_mode<synchronous>, transform_indices = @transform_6, window_bounds = array<i64: 1, 32>}]} {
    %c0_i32 = arith.constant 0 : i32
    %0 = arith.cmpi eq, %arg0, %c0_i32 : i32
    %1 = arith.extui %0 : i1 to i32
    %c0_i32_0 = arith.constant 0 : i32
    %2 = arith.cmpi ne, %1, %c0_i32_0 : i32
    scf.if %2 {
      %cst_21 = arith.constant 0.000000e+00 : f32
      %27 = vector.broadcast %cst_21 : f32 to vector<1x32xf32>
      %c0_22 = arith.constant 0 : index
      %c0_23 = arith.constant 0 : index
      %28 = vector.load %arg6[%c0_22, %c0_23] : memref<1x32xf32, #tpu.memory_space<vmem>>, vector<1x32xf32>
      tpu.vector_store %arg6[%c0_22, %c0_23], %27 {strides = array<i32>} : memref<1x32xf32, #tpu.memory_space<vmem>>, vector<1x32xf32>,
      %cst_24 = arith.constant 0.000000e+00 : f32
      %29 = vector.broadcast %cst_24 : f32 to vector<1x32xf32>
      %c0_25 = arith.constant 0 : index
      %c0_26 = arith.constant 0 : index
      %30 = vector.load %arg7[%c0_25, %c0_26] : memref<1x32xf32, #tpu.memory_space<vmem>>, vector<1x32xf32>
      tpu.vector_store %arg7[%c0_25, %c0_26], %29 {strides = array<i32>} : memref<1x32xf32, #tpu.memory_space<vmem>>, vector<1x32xf32>,
    } else {
    }
    %c0 = arith.constant 0 : index
    %c0_1 = arith.constant 0 : index
    %3 = vector.load %arg1[%c0, %c0_1] : memref<256x4xf32, #tpu.memory_space<vmem>>, vector<256x4xf32>
    %c0_2 = arith.constant 0 : index
    %c0_3 = arith.constant 0 : index
    %4 = vector.load %arg2[%c0_2, %c0_3] : memref<1x4xf32, #tpu.memory_space<vmem>>, vector<1x4xf32>
    %5 = vector.broadcast %4 : vector<1x4xf32> to vector<256x4xf32>
    %6 = arith.mulf %3, %5 : vector<256x4xf32>
    %c0_4 = arith.constant 0 : index
    %c0_5 = arith.constant 0 : index
    %7 = vector.load %arg3[%c0_4, %c0_5] : memref<1x4xf32, #tpu.memory_space<vmem>>, vector<1x4xf32>
    %8 = vector.broadcast %7 : vector<1x4xf32> to vector<256x4xf32>
    %9 = arith.addf %6, %8 : vector<256x4xf32>
    %cst = arith.constant 0.000000e+00 : f32
    %10 = vector.broadcast %cst : f32 to vector<256x4xf32>
    %11 = arith.maximumf %9, %10 : vector<256x4xf32>
    %12 = arith.truncf %11 : vector<256x4xf32> to vector<256x4xbf16>
    %c0_6 = arith.constant 0 : index
    %c0_7 = arith.constant 0 : index
    %13 = vector.load %arg4[%c0_6, %c0_7] : memref<4x32xbf16, #tpu.memory_space<vmem>>, vector<4x32xbf16>
    %cst_8 = arith.constant dense<0.000000e+00> : vector<256x32xf32>
    %14 = tpu.matmul %12, %13, %cst_8 {dimension_numbers = #tpu.dot_dimension_numbers<[1], [0], [0], [1], [0, 0, 1, 1], [], []>} : vector<256x4xbf16>, vector<4x32xbf16>, vector<256x32xf32> -> vector<256x32xf32>
    %c0_9 = arith.constant 0 : index
    %c0_10 = arith.constant 0 : index
    %15 = vector.load %arg5[%c0_9, %c0_10] : memref<256x32xf32, #tpu.memory_space<vmem>>, vector<256x32xf32>
    tpu.vector_store %arg5[%c0_9, %c0_10], %14 {strides = array<i32>} : memref<256x32xf32, #tpu.memory_space<vmem>>, vector<256x32xf32>,
    %c0_11 = arith.constant 0 : index
    %c0_12 = arith.constant 0 : index
    %16 = vector.load %arg6[%c0_11, %c0_12] : memref<1x32xf32, #tpu.memory_space<vmem>>, vector<1x32xf32>
    %cst_13 = arith.constant dense<0.000000e+00> : vector<32xf32>
    %17 = vector.multi_reduction <add>, %14, %cst_13 [0] : vector<256x32xf32> to vector<32xf32>
    %18 = vector.shape_cast %17 : vector<32xf32> to vector<1x32xf32>
    %19 = arith.addf %16, %18 : vector<1x32xf32>
    %c0_14 = arith.constant 0 : index
    %c0_15 = arith.constant 0 : index
    %20 = vector.load %arg6[%c0_14, %c0_15] : memref<1x32xf32, #tpu.memory_space<vmem>>, vector<1x32xf32>
    tpu.vector_store %arg6[%c0_14, %c0_15], %19 {strides = array<i32>} : memref<1x32xf32, #tpu.memory_space<vmem>>, vector<1x32xf32>,
    %c0_16 = arith.constant 0 : index
    %c0_17 = arith.constant 0 : index
    %21 = vector.load %arg7[%c0_16, %c0_17] : memref<1x32xf32, #tpu.memory_space<vmem>>, vector<1x32xf32>
    %22 = arith.mulf %14, %14 : vector<256x32xf32>
    %cst_18 = arith.constant dense<0.000000e+00> : vector<32xf32>
    %23 = vector.multi_reduction <add>, %22, %cst_18 [0] : vector<256x32xf32> to vector<32xf32>
    %24 = vector.shape_cast %23 : vector<32xf32> to vector<1x32xf32>
    %25 = arith.addf %21, %24 : vector<1x32xf32>
    %c0_19 = arith.constant 0 : index
    %c0_20 = arith.constant 0 : index
    %26 = vector.load %arg7[%c0_19, %c0_20] : memref<1x32xf32, #tpu.memory_space<vmem>>, vector<1x32xf32>
    tpu.vector_store %arg7[%c0_19, %c0_20], %25 {strides = array<i32>} : memref<1x32xf32, #tpu.memory_space<vmem>>, vector<1x32xf32>,
    return
  }
  func.func @transform_0(%arg0: i32) -> (i32, i32) {
    %c0_i32 = arith.constant 0 : i32
    %c0_i32_0 = arith.constant 0 : i32
    return %arg0, %c0_i32 : i32, i32
  }
  func.func @transform_1(%arg0: i32) -> (i32, i32) {
    %c0_i32 = arith.constant 0 : i32
    %c0_i32_0 = arith.constant 0 : i32
    %c0_i32_1 = arith.constant 0 : i32
    return %c0_i32, %c0_i32_0 : i32, i32
  }
  func.func @transform_2(%arg0: i32) -> (i32, i32) {
    %c0_i32 = arith.constant 0 : i32
    %c0_i32_0 = arith.constant 0 : i32
    %c0_i32_1 = arith.constant 0 : i32
    return %c0_i32, %c0_i32_0 : i32, i32
  }
  func.func @transform_3(%arg0: i32) -> (i32, i32) {
    %c0_i32 = arith.constant 0 : i32
    %c0_i32_0 = arith.constant 0 : i32
    %c0_i32_1 = arith.constant 0 : i32
    return %c0_i32, %c0_i32_0 : i32, i32
  }
  func.func @transform_4(%arg0: i32) -> (i32, i32) {
    %c0_i32 = arith.constant 0 : i32
    %c0_i32_0 = arith.constant 0 : i32
    return %arg0, %c0_i32 : i32, i32
  }
  func.func @transform_5(%arg0: i32) -> (i32, i32) {
    %c0_i32 = arith.constant 0 : i32
    %c0_i32_0 = arith.constant 0 : i32
    %c0_i32_1 = arith.constant 0 : i32
    return %c0_i32, %c0_i32_0 : i32, i32
  }
  func.func @transform_6(%arg0: i32) -> (i32, i32) {
    %c0_i32 = arith.constant 0 : i32
    %c0_i32_0 = arith.constant 0 : i32
    %c0_i32_1 = arith.constant 0 : i32
    return %c0_i32, %c0_i32_0 : i32, i32
  }
}

module attributes {stable_mosaic.version = 11 : i64} {
  func.func @bn_relu_conv3x3_kernel(%arg0: i32, %arg1: memref<1x16x16x32xf32, #tpu.memory_space<vmem>>, %arg2: memref<1x32xf32, #tpu.memory_space<vmem>>, %arg3: memref<1x32xf32, #tpu.memory_space<vmem>>, %arg4: memref<8x288xbf16, #tpu.memory_space<vmem>>, %arg5: memref<1x8x256xf32, #tpu.memory_space<vmem>>, %arg6: memref<18x18x32xf32, #tpu.memory_space<vmem>>, %arg7: memref<256x288xbf16, #tpu.memory_space<vmem>>) attributes {dimension_semantics = [#tpu.dimension_semantics<parallel>], iteration_bounds = array<i64: 2>, scalar_prefetch = 0 : i64, scratch_operands = 2 : i64, tpu.core_type = #tpu.core_type<tc>, window_params = [{transform_indices = @transform_0, window_bounds = array<i64: 1, 16, 16, 32>}, {pipeline_mode = #tpu.pipeline_mode<synchronous>, transform_indices = @transform_1, window_bounds = array<i64: 1, 32>}, {pipeline_mode = #tpu.pipeline_mode<synchronous>, transform_indices = @transform_2, window_bounds = array<i64: 1, 32>}, {pipeline_mode = #tpu.pipeline_mode<synchronous>, transform_indices = @transform_3, window_bounds = array<i64: 8, 288>}, {transform_indices = @transform_4, window_bounds = array<i64: 1, 8, 256>}]} {
    %c0 = arith.constant 0 : index
    %c0_0 = arith.constant 0 : index
    %c0_1 = arith.constant 0 : index
    %c0_2 = arith.constant 0 : index
    %0 = vector.load %arg1[%c0, %c0_0, %c0_1, %c0_2] : memref<1x16x16x32xf32, #tpu.memory_space<vmem>>, vector<1x16x16x32xf32>
    %1 = vector.shape_cast %0 : vector<1x16x16x32xf32> to vector<16x16x32xf32>
    %c0_3 = arith.constant 0 : index
    %c0_4 = arith.constant 0 : index
    %2 = vector.load %arg2[%c0_3, %c0_4] : memref<1x32xf32, #tpu.memory_space<vmem>>, vector<1x32xf32>
    %3 = vector.shape_cast %2 : vector<1x32xf32> to vector<1x1x32xf32>
    %4 = vector.broadcast %3 : vector<1x1x32xf32> to vector<16x16x32xf32>
    %5 = arith.mulf %1, %4 : vector<16x16x32xf32>
    %c0_5 = arith.constant 0 : index
    %c0_6 = arith.constant 0 : index
    %6 = vector.load %arg3[%c0_5, %c0_6] : memref<1x32xf32, #tpu.memory_space<vmem>>, vector<1x32xf32>
    %7 = vector.shape_cast %6 : vector<1x32xf32> to vector<1x1x32xf32>
    %8 = vector.broadcast %7 : vector<1x1x32xf32> to vector<16x16x32xf32>
    %9 = arith.addf %5, %8 : vector<16x16x32xf32>
    %cst = arith.constant 0.000000e+00 : f32
    %10 = vector.broadcast %cst : f32 to vector<16x16x32xf32>
    %11 = arith.maximumf %9, %10 : vector<16x16x32xf32>
    %cst_7 = arith.constant 0.000000e+00 : f32
    %12 = vector.broadcast %cst_7 : f32 to vector<1x18x32xf32>
    %c0_8 = arith.constant 0 : index
    %c0_9 = arith.constant 0 : index
    %c0_10 = arith.constant 0 : index
    %13 = vector.load %arg6[%c0_8, %c0_9, %c0_10] : memref<18x18x32xf32, #tpu.memory_space<vmem>>, vector<1x18x32xf32>
    tpu.vector_store %arg6[%c0_8, %c0_9, %c0_10], %12 {strides = array<i32>} : memref<18x18x32xf32, #tpu.memory_space<vmem>>, vector<1x18x32xf32>,
    %cst_11 = arith.constant 0.000000e+00 : f32
    %14 = vector.broadcast %cst_11 : f32 to vector<1x18x32xf32>
    %c17 = arith.constant 17 : index
    %c0_12 = arith.constant 0 : index
    %c0_13 = arith.constant 0 : index
    %15 = vector.load %arg6[%c17, %c0_12, %c0_13] : memref<18x18x32xf32, #tpu.memory_space<vmem>>, vector<1x18x32xf32>
    tpu.vector_store %arg6[%c17, %c0_12, %c0_13], %14 {strides = array<i32>} : memref<18x18x32xf32, #tpu.memory_space<vmem>>, vector<1x18x32xf32>,
    %cst_14 = arith.constant 0.000000e+00 : f32
    %16 = vector.broadcast %cst_14 : f32 to vector<16x1x32xf32>
    %c1 = arith.constant 1 : index
    %c0_15 = arith.constant 0 : index
    %c0_16 = arith.constant 0 : index
    %17 = vector.load %arg6[%c1, %c0_15, %c0_16] : memref<18x18x32xf32, #tpu.memory_space<vmem>>, vector<16x1x32xf32>
    tpu.vector_store %arg6[%c1, %c0_15, %c0_16], %16 {strides = array<i32>} : memref<18x18x32xf32, #tpu.memory_space<vmem>>, vector<16x1x32xf32>,
    %cst_17 = arith.constant 0.000000e+00 : f32
    %18 = vector.broadcast %cst_17 : f32 to vector<16x1x32xf32>
    %c1_18 = arith.constant 1 : index
    %c17_19 = arith.constant 17 : index
    %c0_20 = arith.constant 0 : index
    %19 = vector.load %arg6[%c1_18, %c17_19, %c0_20] : memref<18x18x32xf32, #tpu.memory_space<vmem>>, vector<16x1x32xf32>
    tpu.vector_store %arg6[%c1_18, %c17_19, %c0_20], %18 {strides = array<i32>} : memref<18x18x32xf32, #tpu.memory_space<vmem>>, vector<16x1x32xf32>,
    %c1_21 = arith.constant 1 : index
    %c1_22 = arith.constant 1 : index
    %c0_23 = arith.constant 0 : index
    %20 = vector.load %arg6[%c1_21, %c1_22, %c0_23] : memref<18x18x32xf32, #tpu.memory_space<vmem>>, vector<16x16x32xf32>
    tpu.vector_store %arg6[%c1_21, %c1_22, %c0_23], %11 {strides = array<i32>} : memref<18x18x32xf32, #tpu.memory_space<vmem>>, vector<16x16x32xf32>,
    %c0_24 = arith.constant 0 : index
    %c0_25 = arith.constant 0 : index
    %c0_26 = arith.constant 0 : index
    %21 = vector.load %arg6[%c0_24, %c0_25, %c0_26] : memref<18x18x32xf32, #tpu.memory_space<vmem>>, vector<16x16x32xf32>
    %22 = vector.shape_cast %21 : vector<16x16x32xf32> to vector<256x32xf32>
    %23 = arith.truncf %22 : vector<256x32xf32> to vector<256x32xbf16>
    %c0_27 = arith.constant 0 : index
    %c0_28 = arith.constant 0 : index
    %24 = vector.load %arg7[%c0_27, %c0_28] : memref<256x288xbf16, #tpu.memory_space<vmem>>, vector<256x32xbf16>
    tpu.vector_store %arg7[%c0_27, %c0_28], %23 {strides = array<i32>} : memref<256x288xbf16, #tpu.memory_space<vmem>>, vector<256x32xbf16>,
    %c0_29 = arith.constant 0 : index
    %c1_30 = arith.constant 1 : index
    %c0_31 = arith.constant 0 : index
    %25 = vector.load %arg6[%c0_29, %c1_30, %c0_31] : memref<18x18x32xf32, #tpu.memory_space<vmem>>, vector<16x16x32xf32>
    %26 = vector.shape_cast %25 : vector<16x16x32xf32> to vector<256x32xf32>
    %27 = arith.truncf %26 : vector<256x32xf32> to vector<256x32xbf16>
    %c0_32 = arith.constant 0 : index
    %c32 = arith.constant 32 : index
    %28 = vector.load %arg7[%c0_32, %c32] : memref<256x288xbf16, #tpu.memory_space<vmem>>, vector<256x32xbf16>
    tpu.vector_store %arg7[%c0_32, %c32], %27 {strides = array<i32>} : memref<256x288xbf16, #tpu.memory_space<vmem>>, vector<256x32xbf16>,
    %c0_33 = arith.constant 0 : index
    %c2 = arith.constant 2 : index
    %c0_34 = arith.constant 0 : index
    %29 = vector.load %arg6[%c0_33, %c2, %c0_34] : memref<18x18x32xf32, #tpu.memory_space<vmem>>, vector<16x16x32xf32>
    %30 = vector.shape_cast %29 : vector<16x16x32xf32> to vector<256x32xf32>
    %31 = arith.truncf %30 : vector<256x32xf32> to vector<256x32xbf16>
    %c0_35 = arith.constant 0 : index
    %c64 = arith.constant 64 : index
    %32 = vector.load %arg7[%c0_35, %c64] : memref<256x288xbf16, #tpu.memory_space<vmem>>, vector<256x32xbf16>
    tpu.vector_store %arg7[%c0_35, %c64], %31 {strides = array<i32>} : memref<256x288xbf16, #tpu.memory_space<vmem>>, vector<256x32xbf16>,
    %c1_36 = arith.constant 1 : index
    %c0_37 = arith.constant 0 : index
    %c0_38 = arith.constant 0 : index
    %33 = vector.load %arg6[%c1_36, %c0_37, %c0_38] : memref<18x18x32xf32, #tpu.memory_space<vmem>>, vector<16x16x32xf32>
    %34 = vector.shape_cast %33 : vector<16x16x32xf32> to vector<256x32xf32>
    %35 = arith.truncf %34 : vector<256x32xf32> to vector<256x32xbf16>
    %c0_39 = arith.constant 0 : index
    %c96 = arith.constant 96 : index
    %36 = vector.load %arg7[%c0_39, %c96] : memref<256x288xbf16, #tpu.memory_space<vmem>>, vector<256x32xbf16>
    tpu.vector_store %arg7[%c0_39, %c96], %35 {strides = array<i32>} : memref<256x288xbf16, #tpu.memory_space<vmem>>, vector<256x32xbf16>,
    %c1_40 = arith.constant 1 : index
    %c1_41 = arith.constant 1 : index
    %c0_42 = arith.constant 0 : index
    %37 = vector.load %arg6[%c1_40, %c1_41, %c0_42] : memref<18x18x32xf32, #tpu.memory_space<vmem>>, vector<16x16x32xf32>
    %38 = vector.shape_cast %37 : vector<16x16x32xf32> to vector<256x32xf32>
    %39 = arith.truncf %38 : vector<256x32xf32> to vector<256x32xbf16>
    %c0_43 = arith.constant 0 : index
    %c128 = arith.constant 128 : index
    %40 = vector.load %arg7[%c0_43, %c128] : memref<256x288xbf16, #tpu.memory_space<vmem>>, vector<256x32xbf16>
    tpu.vector_store %arg7[%c0_43, %c128], %39 {strides = array<i32>} : memref<256x288xbf16, #tpu.memory_space<vmem>>, vector<256x32xbf16>,
    %c1_44 = arith.constant 1 : index
    %c2_45 = arith.constant 2 : index
    %c0_46 = arith.constant 0 : index
    %41 = vector.load %arg6[%c1_44, %c2_45, %c0_46] : memref<18x18x32xf32, #tpu.memory_space<vmem>>, vector<16x16x32xf32>
    %42 = vector.shape_cast %41 : vector<16x16x32xf32> to vector<256x32xf32>
    %43 = arith.truncf %42 : vector<256x32xf32> to vector<256x32xbf16>
    %c0_47 = arith.constant 0 : index
    %c160 = arith.constant 160 : index
    %44 = vector.load %arg7[%c0_47, %c160] : memref<256x288xbf16, #tpu.memory_space<vmem>>, vector<256x32xbf16>
    tpu.vector_store %arg7[%c0_47, %c160], %43 {strides = array<i32>} : memref<256x288xbf16, #tpu.memory_space<vmem>>, vector<256x32xbf16>,
    %c2_48 = arith.constant 2 : index
    %c0_49 = arith.constant 0 : index
    %c0_50 = arith.constant 0 : index
    %45 = vector.load %arg6[%c2_48, %c0_49, %c0_50] : memref<18x18x32xf32, #tpu.memory_space<vmem>>, vector<16x16x32xf32>
    %46 = vector.shape_cast %45 : vector<16x16x32xf32> to vector<256x32xf32>
    %47 = arith.truncf %46 : vector<256x32xf32> to vector<256x32xbf16>
    %c0_51 = arith.constant 0 : index
    %c192 = arith.constant 192 : index
    %48 = vector.load %arg7[%c0_51, %c192] : memref<256x288xbf16, #tpu.memory_space<vmem>>, vector<256x32xbf16>
    tpu.vector_store %arg7[%c0_51, %c192], %47 {strides = array<i32>} : memref<256x288xbf16, #tpu.memory_space<vmem>>, vector<256x32xbf16>,
    %c2_52 = arith.constant 2 : index
    %c1_53 = arith.constant 1 : index
    %c0_54 = arith.constant 0 : index
    %49 = vector.load %arg6[%c2_52, %c1_53, %c0_54] : memref<18x18x32xf32, #tpu.memory_space<vmem>>, vector<16x16x32xf32>
    %50 = vector.shape_cast %49 : vector<16x16x32xf32> to vector<256x32xf32>
    %51 = arith.truncf %50 : vector<256x32xf32> to vector<256x32xbf16>
    %c0_55 = arith.constant 0 : index
    %c224 = arith.constant 224 : index
    %52 = vector.load %arg7[%c0_55, %c224] : memref<256x288xbf16, #tpu.memory_space<vmem>>, vector<256x32xbf16>
    tpu.vector_store %arg7[%c0_55, %c224], %51 {strides = array<i32>} : memref<256x288xbf16, #tpu.memory_space<vmem>>, vector<256x32xbf16>,
    %c2_56 = arith.constant 2 : index
    %c2_57 = arith.constant 2 : index
    %c0_58 = arith.constant 0 : index
    %53 = vector.load %arg6[%c2_56, %c2_57, %c0_58] : memref<18x18x32xf32, #tpu.memory_space<vmem>>, vector<16x16x32xf32>
    %54 = vector.shape_cast %53 : vector<16x16x32xf32> to vector<256x32xf32>
    %55 = arith.truncf %54 : vector<256x32xf32> to vector<256x32xbf16>
    %c0_59 = arith.constant 0 : index
    %c256 = arith.constant 256 : index
    %56 = vector.load %arg7[%c0_59, %c256] : memref<256x288xbf16, #tpu.memory_space<vmem>>, vector<256x32xbf16>
    tpu.vector_store %arg7[%c0_59, %c256], %55 {strides = array<i32>} : memref<256x288xbf16, #tpu.memory_space<vmem>>, vector<256x32xbf16>,
    %c0_60 = arith.constant 0 : index
    %c0_61 = arith.constant 0 : index
    %57 = vector.load %arg4[%c0_60, %c0_61] : memref<8x288xbf16, #tpu.memory_space<vmem>>, vector<8x288xbf16>
    %c0_62 = arith.constant 0 : index
    %c0_63 = arith.constant 0 : index
    %58 = vector.load %arg7[%c0_62, %c0_63] : memref<256x288xbf16, #tpu.memory_space<vmem>>, vector<256x288xbf16>
    %cst_64 = arith.constant dense<0.000000e+00> : vector<8x256xf32>
    %59 = tpu.matmul %57, %58, %cst_64 {dimension_numbers = #tpu.dot_dimension_numbers<[1], [1], [0], [0], [0, 0, 1, 0], [], []>} : vector<8x288xbf16>, vector<256x288xbf16>, vector<8x256xf32> -> vector<8x256xf32>
    %c0_65 = arith.constant 0 : index
    %c0_66 = arith.constant 0 : index
    %c0_67 = arith.constant 0 : index
    %60 = vector.load %arg5[%c0_65, %c0_66, %c0_67] : memref<1x8x256xf32, #tpu.memory_space<vmem>>, vector<1x8x256xf32>
    %61 = vector.shape_cast %60 : vector<1x8x256xf32> to vector<8x256xf32>
    %62 = vector.shape_cast %59 : vector<8x256xf32> to vector<1x8x256xf32>
    tpu.vector_store %arg5[%c0_65, %c0_66, %c0_67], %62 {strides = array<i32>} : memref<1x8x256xf32, #tpu.memory_space<vmem>>, vector<1x8x256xf32>,
    return
  }
  func.func @transform_0(%arg0: i32) -> (i32, i32, i32, i32) {
    %c0_i32 = arith.constant 0 : i32
    %c0_i32_0 = arith.constant 0 : i32
    %c0_i32_1 = arith.constant 0 : i32
    %c0_i32_2 = arith.constant 0 : i32
    return %arg0, %c0_i32, %c0_i32_0, %c0_i32_1 : i32, i32, i32, i32
  }
  func.func @transform_1(%arg0: i32) -> (i32, i32) {
    %c0_i32 = arith.constant 0 : i32
    %c0_i32_0 = arith.constant 0 : i32
    %c0_i32_1 = arith.constant 0 : i32
    return %c0_i32, %c0_i32_0 : i32, i32
  }
  func.func @transform_2(%arg0: i32) -> (i32, i32) {
    %c0_i32 = arith.constant 0 : i32
    %c0_i32_0 = arith.constant 0 : i32
    %c0_i32_1 = arith.constant 0 : i32
    return %c0_i32, %c0_i32_0 : i32, i32
  }
  func.func @transform_3(%arg0: i32) -> (i32, i32) {
    %c0_i32 = arith.constant 0 : i32
    %c0_i32_0 = arith.constant 0 : i32
    %c0_i32_1 = arith.constant 0 : i32
    return %c0_i32, %c0_i32_0 : i32, i32
  }
  func.func @transform_4(%arg0: i32) -> (i32, i32, i32) {
    %c0_i32 = arith.constant 0 : i32
    %c0_i32_0 = arith.constant 0 : i32
    %c0_i32_1 = arith.constant 0 : i32
    return %arg0, %c0_i32, %c0_i32_0 : i32, i32, i32
  }
}

</mosaic_0001>

<llo_original>
// kernel: bottleneck_forward.3
$region0: #{bottleneck_forward.3}
  #allocation0 [shape = 'u32[]', space=smem, size = 0x4, offset = 0x4, fixed_abs, tag = 'smem constant byte address 0x4 - core index']
  #allocation1 [shape = 'u32[144,128]{1,0:T(1,128)}', space=vmem, size = 0x12000, scoped, tag = 'internal scratch']
  %s0 = inlined_call_operand.vmem [shape: f32[512,4], index: 0, kind: input, shape index: {}]
  %s1 = inlined_call_operand.vmem [shape: f32[1,4], index: 1, kind: output, shape index: {0}]
  %s2 = inlined_call_operand.vmem [shape: f32[1,4], index: 2, kind: output, shape index: {1}]
  %3 = xla_tuple %s1, %s2
  %s4 = sld [smem:[#allocation0]]
  $region49: #{bottleneck_forward.3} parent=0
    _
  %s6 = ssub.s32 1, %s4
  %s7 = scalar_select 0, %s6, %s4
  loop: start=0, step=1, limit=4
  $region2: #{bottleneck_forward.3} parent=0 // loop_pre_header
    _
  $region3: #{bottleneck_forward.3} parent=0 // loop_header
    %s9 = sphi 0, %s13
    %p10 = scmp.ge.s32.totalorder %s9, 4
    %s19 = sphi 0, %s21
    %s22 = sphi 0, %s19
    %s23 = sphi 0, %s22
    %s39 = sphi 0, %s23
    %s43 = sphi 0, %s43
    %s45 = sphi 0, %s43
    %s46 = sphi 0, %s45
    %s60 = sphi 0, %s46
    %s64 = sphi 0, %s64
    %s66 = sphi 0, %s64
    %s67 = sphi 0, %s66
    %s81 = sphi 0, %s67
  $region4: #{bottleneck_forward.3} parent=0 // loop_header_branch
    %12 = sbr.rel (%p10) target = $region8
  $region5: #{bottleneck_forward.3} parent=0 // loop_body
    %s14 = ssub.s32 %s9, 1
    %s15 = ssub.s32 %s9, 2
    %s16 = sadd.s32 %s9, 1
    %s17 = ssub.s32 %s9, %s16
    %p18 = scmp.eq.s32.totalorder %s17, 0
    %s20 = sadd.s32 %s19, 1
    %s21 = scalar_select %p18, %s19, %s20
    %p24 = pneg %p18
    %p25 = scmp.eq.s32.totalorder %s9, 1
    %p26 = por %p24, %p25
    %p27 = scmp.ne.s32.totalorder %s19, %s22
    %p28 = scmp.eq.s32.totalorder %s9, 0
    %p29 = por %p27, %p28
    %p30 = scmp.ne.s32.totalorder %s19, %s22
    %p31 = scmp.eq.s32.totalorder %s14, 1
    %p32 = por %p30, %p31
    %p33 = scmp.ne.s32.totalorder %s22, %s23
    %p34 = scmp.eq.s32.totalorder %s14, 0
    %p35 = por %p33, %p34
    %p36 = scmp.ne.s32.totalorder %s22, %s23
    %p37 = scmp.eq.s32.totalorder %s15, 1
    %p38 = por %p36, %p37
    %p40 = scmp.ne.s32.totalorder %s23, %s39
    %p41 = scmp.eq.s32.totalorder %s15, 0
    %p42 = por %p40, %p41
    %s44 = sadd.s32 %s43, 1
    %p47 = scmp.eq.s32.totalorder %s9, 1
    %p48 = scmp.ne.s32.totalorder %s43, %s45
    %p49 = scmp.eq.s32.totalorder %s9, 0
    %p50 = por %p48, %p49
    %p51 = scmp.ne.s32.totalorder %s43, %s45
    %p52 = scmp.eq.s32.totalorder %s14, 1
    %p53 = por %p51, %p52
    %p54 = scmp.ne.s32.totalorder %s45, %s46
    %p55 = scmp.eq.s32.totalorder %s14, 0
    %p56 = por %p54, %p55
    %p57 = scmp.ne.s32.totalorder %s45, %s46
    %p58 = scmp.eq.s32.totalorder %s15, 1
    %p59 = por %p57, %p58
    %p61 = scmp.ne.s32.totalorder %s46, %s60
    %p62 = scmp.eq.s32.totalorder %s15, 0
    %p63 = por %p61, %p62
    %s65 = sadd.s32 %s64, 1
    %p68 = scmp.eq.s32.totalorder %s9, 1
    %p69 = scmp.ne.s32.totalorder %s64, %s66
    %p70 = scmp.eq.s32.totalorder %s9, 0
    %p71 = por %p69, %p70
    %p72 = scmp.ne.s32.totalorder %s64, %s66
    %p73 = scmp.eq.s32.totalorder %s14, 1
    %p74 = por %p72, %p73
    %p75 = scmp.ne.s32.totalorder %s66, %s67
    %p76 = scmp.eq.s32.totalorder %s14, 0
    %p77 = por %p75, %p76
    %p78 = scmp.ne.s32.totalorder %s66, %s67
    %p79 = scmp.eq.s32.totalorder %s15, 1
    %p80 = por %p78, %p79
    %p82 = scmp.ne.s32.totalorder %s67, %s81
    %p83 = scmp.eq.s32.totalorder %s15, 0
    %p84 = por %p82, %p83
    %p85 = scmp.le.s32.totalorder 1, %s9
    %p86 = scmp.lt.s32.totalorder %s9, 3
    %p87 = pnand %p85, %p86
    %p88 = pneg %p87
    // Predicated region
    $region9: #{bottleneck_forward.3} parent=5 // pred_check
      _
    $region10: #{bottleneck_forward.3} parent=5 // pred_check_branch
      %90 = sbr.rel (%p87) target = $region12
    $region11: #{bottleneck_forward.3} parent=5 // pred_region
      %s91 = ssub.s32 %s9, 1
    $region12: #{bottleneck_forward.3} parent=5 // pred_fallthru
      _
    %p92 = scmp.lt.s32.totalorder %s9, 2
    // Predicated region
    $region13: #{bottleneck_forward.3} parent=5 // pred_check
      %p93 = pneg %p92
    $region14: #{bottleneck_forward.3} parent=5 // pred_check_branch
      %95 = sbr.rel (%p93) target = $region16
    $region15: #{bottleneck_forward.3} parent=5 // pred_region
      // Predicated region
      $region17: #{bottleneck_forward.3} parent=15 // pred_check
        %p96 = pneg %p29
      $region18: #{bottleneck_forward.3} parent=15 // pred_check_branch
        %98 = sbr.rel (%p96) target = $region20
      $region19: #{bottleneck_forward.3} parent=15 // pred_region
        %s99 = smul.u32 32, %s9
        %p100 = scmp.lt.s32.totalorder %s99, 63
        %s101 = scalar_select %p100, %s99, 63
        %s102 = smul.addr %s101, 8
        %s103 = scalar_lea.vmem %s0, %s102
        %s104 = smul.u32 32, %s9
      $region20: #{bottleneck_forward.3} parent=15 // pred_fallthru
        _
    $region16: #{bottleneck_forward.3} parent=5 // pred_fallthru
      _
    %p105 = scmp.le.s32.totalorder 1, %s9
    %p106 = scmp.lt.s32.totalorder %s9, 3
    %p107 = pnand %p105, %p106
    %p108 = pneg %p107
    // Predicated region
    $region21: #{bottleneck_forward.3} parent=5 // pred_check
      _
    $region22: #{bottleneck_forward.3} parent=5 // pred_check_branch
      %110 = sbr.rel (%p107) target = $region24
    $region23: #{bottleneck_forward.3} parent=5 // pred_region
      %s111 = ssub.s32 %s9, 1
      %s112 = smul.u32 32, %s14
      %p113 = scmp.lt.s32.totalorder %s112, 63
      %s114 = scalar_select %p113, %s112, 63
      %s115 = smul.addr %s114, 8
      %s116 = scalar_lea.vmem %s0, %s115
      %p117 = pneg %p35
      %p118 = pneg %p32
      %p119 = pneg %p56
      %p120 = pneg %p53
      %p121 = pneg %p77
      %p122 = pneg %p74
      %s123 = smul.u32 32, %s14
      %p124 = scmp.lt.s32.totalorder %s123, 63
      %s125 = scalar_select %p124, %s123, 63
      %s126 = smul.addr %s125, 8
      %s127 = scalar_lea.vmem %s0, %s126
      %s128 = smul.u32 32, %s14
      %p129 = scmp.eq.s32.totalorder %s14, 0
      // Predicated region
      $region25: #{bottleneck_forward.3} parent=23 // pred_check
        %p130 = pneg %p129
      $region26: #{bottleneck_forward.3} parent=23 // pred_check_branch
        %132 = sbr.rel (%p130) target = $region28
      $region27: #{bottleneck_forward.3} parent=23 // pred_region
        %vm133 = vcmask 24576
        %134 = vst.msk [vmem:[%s1] sm:$0x1] %vm133, 0.0
        %135 = vst.msk [vmem:[%s2] sm:$0x1] %vm133, 0.0
      $region28: #{bottleneck_forward.3} parent=23 // pred_fallthru
        _
      %v136 = vld [vmem:[%s127] sm:$0xff]
      %v137 = vld [vmem:[%s127 + $0x8] sm:$0xff]
      %v138 = vld [vmem:[%s127 + $0x10] sm:$0xff]
      %v139 = vld [vmem:[%s127 + $0x18] sm:$0xff]
      %v140 = vld [vmem:[%s127 + $0x20] sm:$0xff]
      %v141 = vld [vmem:[%s127 + $0x28] sm:$0xff]
      %v142 = vld [vmem:[%s127 + $0x30] sm:$0xff]
      %v143 = vld [vmem:[%s127 + $0x38] sm:$0xff]
      %v144 = vld [vmem:[%s127 + $0x40] sm:$0xff]
      %v145 = vld [vmem:[%s127 + $0x48] sm:$0xff]
      %v146 = vld [vmem:[%s127 + $0x50] sm:$0xff]
      %v147 = vld [vmem:[%s127 + $0x58] sm:$0xff]
      %v148 = vld [vmem:[%s127 + $0x60] sm:$0xff]
      %v149 = vld [vmem:[%s127 + $0x68] sm:$0xff]
      %v150 = vld [vmem:[%s127 + $0x70] sm:$0xff]
      %v151 = vld [vmem:[%s127 + $0x78] sm:$0xff]
      %v152 = vld [vmem:[%s127 + $0x80] sm:$0xff]
      %v153 = vld [vmem:[%s127 + $0x88] sm:$0xff]
      %v154 = vld [vmem:[%s127 + $0x90] sm:$0xff]
      %v155 = vld [vmem:[%s127 + $0x98] sm:$0xff]
      %v156 = vld [vmem:[%s127 + $0xa0] sm:$0xff]
      %v157 = vld [vmem:[%s127 + $0xa8] sm:$0xff]
      %v158 = vld [vmem:[%s127 + $0xb0] sm:$0xff]
      %v159 = vld [vmem:[%s127 + $0xb8] sm:$0xff]
      %v160 = vld [vmem:[%s127 + $0xc0] sm:$0xff]
      %v161 = vld [vmem:[%s127 + $0xc8] sm:$0xff]
      %v162 = vld [vmem:[%s127 + $0xd0] sm:$0xff]
      %v163 = vld [vmem:[%s127 + $0xd8] sm:$0xff]
      %v164 = vld [vmem:[%s127 + $0xe0] sm:$0xff]
      %v165 = vld [vmem:[%s127 + $0xe8] sm:$0xff]
      %v166 = vld [vmem:[%s127 + $0xf0] sm:$0xff]
      %v167 = vld [vmem:[%s127 + $0xf8] sm:$0xff]
      %v168 = vld [vmem:[%s1] sm:$0x1]
      %vm169 = vcmask 31744
      %v170 = vsel %vm169, %v136, 0.0
      %v171 = vsel %vm169, %v137, 0.0
      %v172 = vadd.f32 %v170, %v171
      %v173 = vsel %vm169, %v138, 0.0
      %v174 = vadd.f32 %v172, %v173
      %v175 = vsel %vm169, %v139, 0.0
      %v176 = vadd.f32 %v174, %v175
      %v177 = vsel %vm169, %v140, 0.0
      %v178 = vadd.f32 %v176, %v177
      %v179 = vsel %vm169, %v141, 0.0
      %v180 = vadd.f32 %v178, %v179
      %v181 = vsel %vm169, %v142, 0.0
      %v182 = vadd.f32 %v180, %v181
      %v183 = vsel %vm169, %v143, 0.0
      %v184 = vadd.f32 %v182, %v183
      %v185 = vsel %vm169, %v144, 0.0
      %v186 = vadd.f32 %v184, %v185
      %v187 = vsel %vm169, %v145, 0.0
      %v188 = vadd.f32 %v186, %v187
      %v189 = vsel %vm169, %v146, 0.0
      %v190 = vadd.f32 %v188, %v189
      %v191 = vsel %vm169, %v147, 0.0
      %v192 = vadd.f32 %v190, %v191
      %v193 = vsel %vm169, %v148, 0.0
      %v194 = vadd.f32 %v192, %v193
      %v195 = vsel %vm169, %v149, 0.0
      %v196 = vadd.f32 %v194, %v195
      %v197 = vsel %vm169, %v150, 0.0
      %v198 = vadd.f32 %v196, %v197
      %v199 = vsel %vm169, %v151, 0.0
      %v200 = vadd.f32 %v198, %v199
      %v201 = vsel %vm169, %v152, 0.0
      %v202 = vadd.f32 %v200, %v201
      %v203 = vsel %vm169, %v153, 0.0
      %v204 = vadd.f32 %v202, %v203
      %v205 = vsel %vm169, %v154, 0.0
      %v206 = vadd.f32 %v204, %v205
      %v207 = vsel %vm169, %v155, 0.0
      %v208 = vadd.f32 %v206, %v207
      %v209 = vsel %vm169, %v156, 0.0
      %v210 = vadd.f32 %v208, %v209
      %v211 = vsel %vm169, %v157, 0.0
      %v212 = vadd.f32 %v210, %v211
      %v213 = vsel %vm169, %v158, 0.0
      %v214 = vadd.f32 %v212, %v213
      %v215 = vsel %vm169, %v159, 0.0
      %v216 = vadd.f32 %v214, %v215
      %v217 = vsel %vm169, %v160, 0.0
      %v218 = vadd.f32 %v216, %v217
      %v219 = vsel %vm169, %v161, 0.0
      %v220 = vadd.f32 %v218, %v219
      %v221 = vsel %vm169, %v162, 0.0
      %v222 = vadd.f32 %v220, %v221
      %v223 = vsel %vm169, %v163, 0.0
      %v224 = vadd.f32 %v222, %v223
      %v225 = vsel %vm169, %v164, 0.0
      %v226 = vadd.f32 %v224, %v225
      %v227 = vsel %vm169, %v165, 0.0
      %v228 = vadd.f32 %v226, %v227
      %v229 = vsel %vm169, %v166, 0.0
      %v230 = vadd.f32 %v228, %v229
      %v231 = vsel %vm169, %v167, 0.0
      %v232 = vadd.f32 %v230, %v231
      %v233 = vrot.slane %v232, 4
      %v234 = vadd.f32 %v232, %v233
      %v235 = vrot.slane %v234, 2
      %v236 = vadd.f32 %v234, %v235
      %v237 = vrot.slane %v236, 1
      %v238 = vadd.f32 %v236, %v237
      %v239 = vadd.f32 %v168, %v238
      %vm240 = vcmask 24576
      %241 = vst.msk [vmem:[%s1] sm:$0x1] %vm240, %v239
      %v242 = vld [vmem:[%s2] sm:$0x1]
      %v243 = vmul.f32 %v136, %v136
      %v244 = vmul.f32 %v137, %v137
      %v245 = vmul.f32 %v138, %v138
      %v246 = vmul.f32 %v139, %v139
      %v247 = vmul.f32 %v140, %v140
      %v248 = vmul.f32 %v141, %v141
      %v249 = vmul.f32 %v142, %v142
      %v250 = vmul.f32 %v143, %v143
      %v251 = vmul.f32 %v144, %v144
      %v252 = vmul.f32 %v145, %v145
      %v253 = vmul.f32 %v146, %v146
      %v254 = vmul.f32 %v147, %v147
      %v255 = vmul.f32 %v148, %v148
      %v256 = vmul.f32 %v149, %v149
      %v257 = vmul.f32 %v150, %v150
      %v258 = vmul.f32 %v151, %v151
      %v259 = vmul.f32 %v152, %v152
      %v260 = vmul.f32 %v153, %v153
      %v261 = vmul.f32 %v154, %v154
      %v262 = vmul.f32 %v155, %v155
      %v263 = vmul.f32 %v156, %v156
      %v264 = vmul.f32 %v157, %v157
      %v265 = vmul.f32 %v158, %v158
      %v266 = vmul.f32 %v159, %v159
      %v267 = vmul.f32 %v160, %v160
      %v268 = vmul.f32 %v161, %v161
      %v269 = vmul.f32 %v162, %v162
      %v270 = vmul.f32 %v163, %v163
      %v271 = vmul.f32 %v164, %v164
      %v272 = vmul.f32 %v165, %v165
      %v273 = vmul.f32 %v166, %v166
      %v274 = vmul.f32 %v167, %v167
      %v275 = vsel %vm169, %v243, 0.0
      %v276 = vsel %vm169, %v244, 0.0
      %v277 = vadd.f32 %v275, %v276
      %v278 = vsel %vm169, %v245, 0.0
      %v279 = vadd.f32 %v277, %v278
      %v280 = vsel %vm169, %v246, 0.0
      %v281 = vadd.f32 %v279, %v280
      %v282 = vsel %vm169, %v247, 0.0
      %v283 = vadd.f32 %v281, %v282
      %v284 = vsel %vm169, %v248, 0.0
      %v285 = vadd.f32 %v283, %v284
      %v286 = vsel %vm169, %v249, 0.0
      %v287 = vadd.f32 %v285, %v286
      %v288 = vsel %vm169, %v250, 0.0
      %v289 = vadd.f32 %v287, %v288
      %v290 = vsel %vm169, %v251, 0.0
      %v291 = vadd.f32 %v289, %v290
      %v292 = vsel %vm169, %v252, 0.0
      %v293 = vadd.f32 %v291, %v292
      %v294 = vsel %vm169, %v253, 0.0
      %v295 = vadd.f32 %v293, %v294
      %v296 = vsel %vm169, %v254, 0.0
      %v297 = vadd.f32 %v295, %v296
      %v298 = vsel %vm169, %v255, 0.0
      %v299 = vadd.f32 %v297, %v298
      %v300 = vsel %vm169, %v256, 0.0
      %v301 = vadd.f32 %v299, %v300
      %v302 = vsel %vm169, %v257, 0.0
      %v303 = vadd.f32 %v301, %v302
      %v304 = vsel %vm169, %v258, 0.0
      %v305 = vadd.f32 %v303, %v304
      %v306 = vsel %vm169, %v259, 0.0
      %v307 = vadd.f32 %v305, %v306
      %v308 = vsel %vm169, %v260, 0.0
      %v309 = vadd.f32 %v307, %v308
      %v310 = vsel %vm169, %v261, 0.0
      %v311 = vadd.f32 %v309, %v310
      %v312 = vsel %vm169, %v262, 0.0
      %v313 = vadd.f32 %v311, %v312
      %v314 = vsel %vm169, %v263, 0.0
      %v315 = vadd.f32 %v313, %v314
      %v316 = vsel %vm169, %v264, 0.0
      %v317 = vadd.f32 %v315, %v316
      %v318 = vsel %vm169, %v265, 0.0
      %v319 = vadd.f32 %v317, %v318
      %v320 = vsel %vm169, %v266, 0.0
      %v321 = vadd.f32 %v319, %v320
      %v322 = vsel %vm169, %v267, 0.0
      %v323 = vadd.f32 %v321, %v322
      %v324 = vsel %vm169, %v268, 0.0
      %v325 = vadd.f32 %v323, %v324
      %v326 = vsel %vm169, %v269, 0.0
      %v327 = vadd.f32 %v325, %v326
      %v328 = vsel %vm169, %v270, 0.0
      %v329 = vadd.f32 %v327, %v328
      %v330 = vsel %vm169, %v271, 0.0
      %v331 = vadd.f32 %v329, %v330
      %v332 = vsel %vm169, %v272, 0.0
      %v333 = vadd.f32 %v331, %v332
      %v334 = vsel %vm169, %v273, 0.0
      %v335 = vadd.f32 %v333, %v334
      %v336 = vsel %vm169, %v274, 0.0
      %v337 = vadd.f32 %v335, %v336
      %v338 = vrot.slane %v337, 4
      %v339 = vadd.f32 %v337, %v338
      %v340 = vrot.slane %v339, 2
      %v341 = vadd.f32 %v339, %v340
      %v342 = vrot.slane %v341, 1
      %v343 = vadd.f32 %v341, %v342
      %v344 = vadd.f32 %v242, %v343
      %345 = vst.msk [vmem:[%s2] sm:$0x1] %vm240, %v344
      // Predicated region
      $region29: #{bottleneck_forward.3} parent=23 // pred_check
        %p346 = pneg %p53
      $region30: #{bottleneck_forward.3} parent=23 // pred_check_branch
        %348 = sbr.rel (%p346) target = $region32
      $region31: #{bottleneck_forward.3} parent=23 // pred_region
        _
      $region32: #{bottleneck_forward.3} parent=23 // pred_fallthru
        _
      // Predicated region
      $region33: #{bottleneck_forward.3} parent=23 // pred_check
        %p349 = pneg %p74
      $region34: #{bottleneck_forward.3} parent=23 // pred_check_branch
        %351 = sbr.rel (%p349) target = $region36
      $region35: #{bottleneck_forward.3} parent=23 // pred_region
        _
      $region36: #{bottleneck_forward.3} parent=23 // pred_fallthru
        _
      // Predicated region
      $region37: #{bottleneck_forward.3} parent=23 // pred_check
        %p352 = pneg %p53
      $region38: #{bottleneck_forward.3} parent=23 // pred_check_branch
        %354 = sbr.rel (%p352) target = $region40
      $region39: #{bottleneck_forward.3} parent=23 // pred_region
        _
      $region40: #{bottleneck_forward.3} parent=23 // pred_fallthru
        _
      // Predicated region
      $region41: #{bottleneck_forward.3} parent=23 // pred_check
        %p355 = pneg %p74
      $region42: #{bottleneck_forward.3} parent=23 // pred_check_branch
        %357 = sbr.rel (%p355) target = $region44
      $region43: #{bottleneck_forward.3} parent=23 // pred_region
        _
      $region44: #{bottleneck_forward.3} parent=23 // pred_fallthru
        _
    $region24: #{bottleneck_forward.3} parent=5 // pred_fallthru
      _
    %p358 = scmp.le.s32.totalorder 2, %s9
    // Predicated region
    $region45: #{bottleneck_forward.3} parent=5 // pred_check
      %p359 = pneg %p358
    $region46: #{bottleneck_forward.3} parent=5 // pred_check_branch
      %361 = sbr.rel (%p359) target = $region48
    $region47: #{bottleneck_forward.3} parent=5 // pred_region
      %s362 = ssub.s32 %s9, 2
    $region48: #{bottleneck_forward.3} parent=5 // pred_fallthru
      _
  $region6: #{bottleneck_forward.3} parent=0 // loop_footer
    %s13 = sadd.s32 1, %s9
  $region7: #{bottleneck_forward.3} parent=0 // loop_footer_branch
    %8 = sbr.rel target = $region3
  $region8: #{bottleneck_forward.3} parent=0 // loop_exit
    _

// kernel: bottleneck_forward.4
$region0: #{bottleneck_forward.4}
  #allocation0 [shape = 'u32[]', space=smem, size = 0x4, offset = 0x4, fixed_abs, tag = 'smem constant byte address 0x4 - core index']
  #allocation1 [shape = 'u32[144,128]{1,0:T(1,128)}', space=vmem, size = 0x12000, scoped, tag = 'internal scratch']
  %s0 = inlined_call_operand.vmem [shape: f32[512,4], index: 0, kind: input, shape index: {}]
  %s1 = inlined_call_operand.vmem [shape: f32[1,4], index: 1, kind: input, shape index: {}]
  %s2 = inlined_call_operand.vmem [shape: f32[1,4], index: 2, kind: input, shape index: {}]
  %s3 = inlined_call_operand.vmem [shape: bf16[4,32], index: 3, kind: input, shape index: {}]
  %s4 = inlined_call_operand.vmem [shape: f32[512,32], index: 4, kind: output, shape index: {0}]
  %s5 = inlined_call_operand.vmem [shape: f32[1,32], index: 5, kind: output, shape index: {1}]
  %s6 = inlined_call_operand.vmem [shape: f32[1,32], index: 6, kind: output, shape index: {2}]
  %7 = xla_tuple %s4, %s5, %s6
  %s8 = sld [smem:[#allocation0]]
  $region69: #{bottleneck_forward.4} parent=0
    _
  %s10 = ssub.s32 1, %s8
  %s11 = scalar_select 0, %s10, %s8
  loop: start=0, step=1, limit=4
  $region2: #{bottleneck_forward.4} parent=0 // loop_pre_header
    _
  $region3: #{bottleneck_forward.4} parent=0 // loop_header
    %s13 = sphi 0, %s17
    %p14 = scmp.ge.s32.totalorder %s13, 4
    %s23 = sphi 0, %s25
    %s26 = sphi 0, %s23
    %s27 = sphi 0, %s26
    %s43 = sphi 0, %s27
    %s47 = sphi 0, %s47
    %s49 = sphi 0, %s47
    %s50 = sphi 0, %s49
    %s64 = sphi 0, %s50
    %s68 = sphi 0, %s68
    %s70 = sphi 0, %s68
    %s71 = sphi 0, %s70
    %s85 = sphi 0, %s71
    %s89 = sphi 0, %s89
    %s91 = sphi 0, %s89
    %s92 = sphi 0, %s91
    %s106 = sphi 0, %s92
    %s112 = sphi 0, %s114
    %s115 = sphi 0, %s112
    %s116 = sphi 0, %s115
    %s132 = sphi 0, %s116
    %s136 = sphi 0, %s136
    %s138 = sphi 0, %s136
    %s139 = sphi 0, %s138
    %s153 = sphi 0, %s139
    %s157 = sphi 0, %s157
    %s159 = sphi 0, %s157
    %s160 = sphi 0, %s159
    %s174 = sphi 0, %s160
  $region4: #{bottleneck_forward.4} parent=0 // loop_header_branch
    %16 = sbr.rel (%p14) target = $region8
  $region5: #{bottleneck_forward.4} parent=0 // loop_body
    %s18 = ssub.s32 %s13, 1
    %s19 = ssub.s32 %s13, 2
    %s20 = sadd.s32 %s13, 1
    %s21 = ssub.s32 %s13, %s20
    %p22 = scmp.eq.s32.totalorder %s21, 0
    %s24 = sadd.s32 %s23, 1
    %s25 = scalar_select %p22, %s23, %s24
    %p28 = pneg %p22
    %p29 = scmp.eq.s32.totalorder %s13, 1
    %p30 = por %p28, %p29
    %p31 = scmp.ne.s32.totalorder %s23, %s26
    %p32 = scmp.eq.s32.totalorder %s13, 0
    %p33 = por %p31, %p32
    %p34 = scmp.ne.s32.totalorder %s23, %s26
    %p35 = scmp.eq.s32.totalorder %s18, 1
    %p36 = por %p34, %p35
    %p37 = scmp.ne.s32.totalorder %s26, %s27
    %p38 = scmp.eq.s32.totalorder %s18, 0
    %p39 = por %p37, %p38
    %p40 = scmp.ne.s32.totalorder %s26, %s27
    %p41 = scmp.eq.s32.totalorder %s19, 1
    %p42 = por %p40, %p41
    %p44 = scmp.ne.s32.totalorder %s27, %s43
    %p45 = scmp.eq.s32.totalorder %s19, 0
    %p46 = por %p44, %p45
    %s48 = sadd.s32 %s47, 1
    %p51 = scmp.eq.s32.totalorder %s13, 1
    %p52 = scmp.ne.s32.totalorder %s47, %s49
    %p53 = scmp.eq.s32.totalorder %s13, 0
    %p54 = por %p52, %p53
    %p55 = scmp.ne.s32.totalorder %s47, %s49
    %p56 = scmp.eq.s32.totalorder %s18, 1
    %p57 = por %p55, %p56
    %p58 = scmp.ne.s32.totalorder %s49, %s50
    %p59 = scmp.eq.s32.totalorder %s18, 0
    %p60 = por %p58, %p59
    %p61 = scmp.ne.s32.totalorder %s49, %s50
    %p62 = scmp.eq.s32.totalorder %s19, 1
    %p63 = por %p61, %p62
    %p65 = scmp.ne.s32.totalorder %s50, %s64
    %p66 = scmp.eq.s32.totalorder %s19, 0
    %p67 = por %p65, %p66
    %s69 = sadd.s32 %s68, 1
    %p72 = scmp.eq.s32.totalorder %s13, 1
    %p73 = scmp.ne.s32.totalorder %s68, %s70
    %p74 = scmp.eq.s32.totalorder %s13, 0
    %p75 = por %p73, %p74
    %p76 = scmp.ne.s32.totalorder %s68, %s70
    %p77 = scmp.eq.s32.totalorder %s18, 1
    %p78 = por %p76, %p77
    %p79 = scmp.ne.s32.totalorder %s70, %s71
    %p80 = scmp.eq.s32.totalorder %s18, 0
    %p81 = por %p79, %p80
    %p82 = scmp.ne.s32.totalorder %s70, %s71
    %p83 = scmp.eq.s32.totalorder %s19, 1
    %p84 = por %p82, %p83
    %p86 = scmp.ne.s32.totalorder %s71, %s85
    %p87 = scmp.eq.s32.totalorder %s19, 0
    %p88 = por %p86, %p87
    %s90 = sadd.s32 %s89, 1
    %p93 = scmp.eq.s32.totalorder %s13, 1
    %p94 = scmp.ne.s32.totalorder %s89, %s91
    %p95 = scmp.eq.s32.totalorder %s13, 0
    %p96 = por %p94, %p95
    %p97 = scmp.ne.s32.totalorder %s89, %s91
    %p98 = scmp.eq.s32.totalorder %s18, 1
    %p99 = por %p97, %p98
    %p100 = scmp.ne.s32.totalorder %s91, %s92
    %p101 = scmp.eq.s32.totalorder %s18, 0
    %p102 = por %p100, %p101
    %p103 = scmp.ne.s32.totalorder %s91, %s92
    %p104 = scmp.eq.s32.totalorder %s19, 1
    %p105 = por %p103, %p104
    %p107 = scmp.ne.s32.totalorder %s92, %s106
    %p108 = scmp.eq.s32.totalorder %s19, 0
    %p109 = por %p107, %p108
    %s110 = ssub.s32 %s13, %s20
    %p111 = scmp.eq.s32.totalorder %s110, 0
    %s113 = sadd.s32 %s112, 1
    %s114 = scalar_select %p111, %s112, %s113
    %p117 = pneg %p111
    %p118 = scmp.eq.s32.totalorder %s13, 1
    %p119 = por %p117, %p118
    %p120 = scmp.ne.s32.totalorder %s112, %s115
    %p121 = scmp.eq.s32.totalorder %s13, 0
    %p122 = por %p120, %p121
    %p123 = scmp.ne.s32.totalorder %s112, %s115
    %p124 = scmp.eq.s32.totalorder %s18, 1
    %p125 = por %p123, %p124
    %p126 = scmp.ne.s32.totalorder %s115, %s116
    %p127 = scmp.eq.s32.totalorder %s18, 0
    %p128 = por %p126, %p127
    %p129 = scmp.ne.s32.totalorder %s115, %s116
    %p130 = scmp.eq.s32.totalorder %s19, 1
    %p131 = por %p129, %p130
    %p133 = scmp.ne.s32.totalorder %s116, %s132
    %p134 = scmp.eq.s32.totalorder %s19, 0
    %p135 = por %p133, %p134
    %s137 = sadd.s32 %s136, 1
    %p140 = scmp.eq.s32.totalorder %s13, 1
    %p141 = scmp.ne.s32.totalorder %s136, %s138
    %p142 = scmp.eq.s32.totalorder %s13, 0
    %p143 = por %p141, %p142
    %p144 = scmp.ne.s32.totalorder %s136, %s138
    %p145 = scmp.eq.s32.totalorder %s18, 1
    %p146 = por %p144, %p145
    %p147 = scmp.ne.s32.totalorder %s138, %s139
    %p148 = scmp.eq.s32.totalorder %s18, 0
    %p149 = por %p147, %p148
    %p150 = scmp.ne.s32.totalorder %s138, %s139
    %p151 = scmp.eq.s32.totalorder %s19, 1
    %p152 = por %p150, %p151
    %p154 = scmp.ne.s32.totalorder %s139, %s153
    %p155 = scmp.eq.s32.totalorder %s19, 0
    %p156 = por %p154, %p155
    %s158 = sadd.s32 %s157, 1
    %p161 = scmp.eq.s32.totalorder %s13, 1
    %p162 = scmp.ne.s32.totalorder %s157, %s159
    %p163 = scmp.eq.s32.totalorder %s13, 0
    %p164 = por %p162, %p163
    %p165 = scmp.ne.s32.totalorder %s157, %s159
    %p166 = scmp.eq.s32.totalorder %s18, 1
    %p167 = por %p165, %p166
    %p168 = scmp.ne.s32.totalorder %s159, %s160
    %p169 = scmp.eq.s32.totalorder %s18, 0
    %p170 = por %p168, %p169
    %p171 = scmp.ne.s32.totalorder %s159, %s160
    %p172 = scmp.eq.s32.totalorder %s19, 1
    %p173 = por %p171, %p172
    %p175 = scmp.ne.s32.totalorder %s160, %s174
    %p176 = scmp.eq.s32.totalorder %s19, 0
    %p177 = por %p175, %p176
    %p178 = scmp.le.s32.totalorder 1, %s13
    %p179 = scmp.lt.s32.totalorder %s13, 3
    %p180 = pnand %p178, %p179
    %p181 = pneg %p180
    // Predicated region
    $region9: #{bottleneck_forward.4} parent=5 // pred_check
      _
    $region10: #{bottleneck_forward.4} parent=5 // pred_check_branch
      %183 = sbr.rel (%p180) target = $region12
    $region11: #{bottleneck_forward.4} parent=5 // pred_region
      %s184 = ssub.s32 %s13, 1
      // Predicated region
      $region13: #{bottleneck_forward.4} parent=11 // pred_check
        %p185 = pneg %p60
      $region14: #{bottleneck_forward.4} parent=11 // pred_check_branch
        %187 = sbr.rel (%p185) target = $region16
      $region15: #{bottleneck_forward.4} parent=11 // pred_region
        _
      $region16: #{bottleneck_forward.4} parent=11 // pred_fallthru
        _
      // Predicated region
      $region17: #{bottleneck_forward.4} parent=11 // pred_check
        %p188 = pneg %p81
      $region18: #{bottleneck_forward.4} parent=11 // pred_check_branch
        %190 = sbr.rel (%p188) target = $region20
      $region19: #{bottleneck_forward.4} parent=11 // pred_region
        _
      $region20: #{bottleneck_forward.4} parent=11 // pred_fallthru
        _
      // Predicated region
      $region21: #{bottleneck_forward.4} parent=11 // pred_check
        %p191 = pneg %p102
      $region22: #{bottleneck_forward.4} parent=11 // pred_check_branch
        %193 = sbr.rel (%p191) target = $region24
      $region23: #{bottleneck_forward.4} parent=11 // pred_region
        _
      $region24: #{bottleneck_forward.4} parent=11 // pred_fallthru
        _
    $region12: #{bottleneck_forward.4} parent=5 // pred_fallthru
      _
    %p194 = scmp.lt.s32.totalorder %s13, 2
    // Predicated region
    $region25: #{bottleneck_forward.4} parent=5 // pred_check
      %p195 = pneg %p194
    $region26: #{bottleneck_forward.4} parent=5 // pred_check_branch
      %197 = sbr.rel (%p195) target = $region28
    $region27: #{bottleneck_forward.4} parent=5 // pred_region
      // Predicated region
      $region29: #{bottleneck_forward.4} parent=27 // pred_check
        %p198 = pneg %p33
      $region30: #{bottleneck_forward.4} parent=27 // pred_check_branch
        %200 = sbr.rel (%p198) target = $region32
      $region31: #{bottleneck_forward.4} parent=27 // pred_region
        %s201 = smul.u32 32, %s13
        %p202 = scmp.lt.s32.totalorder %s201, 63
        %s203 = scalar_select %p202, %s201, 63
        %s204 = smul.addr %s203, 8
        %s205 = scalar_lea.vmem %s0, %s204
        %s206 = smul.u32 32, %s13
      $region32: #{bottleneck_forward.4} parent=27 // pred_fallthru
        _
    $region28: #{bottleneck_forward.4} parent=5 // pred_fallthru
      _
    %p207 = scmp.le.s32.totalorder 1, %s13
    %p208 = scmp.lt.s32.totalorder %s13, 3
    %p209 = pnand %p207, %p208
    %p210 = pneg %p209
    // Predicated region
    $region33: #{bottleneck_forward.4} parent=5 // pred_check
      _
    $region34: #{bottleneck_forward.4} parent=5 // pred_check_branch
      %212 = sbr.rel (%p209) target = $region36
    $region35: #{bottleneck_forward.4} parent=5 // pred_region
      %s213 = ssub.s32 %s13, 1
      %s214 = smul.u32 32, %s18
      %p215 = scmp.lt.s32.totalorder %s214, 63
      %s216 = scalar_select %p215, %s214, 63
      %s217 = smul.addr %s216, 8
      %s218 = scalar_lea.vmem %s0, %s217
      %p219 = pneg %p39
      %p220 = pneg %p36
      %p221 = pneg %p60
      %p222 = pneg %p57
      %p223 = pneg %p81
      %p224 = pneg %p78
      %p225 = pneg %p102
      %p226 = pneg %p99
      %p227 = pneg %p128
      %p228 = pneg %p125
      %s229 = smul.u32 32, %s18
      %p230 = scmp.lt.s32.totalorder %s229, 63
      %s231 = scalar_select %p230, %s229, 63
      %s232 = smul.addr %s231, 8
      %s233 = scalar_lea.vmem %s4, %s232
      %p234 = pneg %p149
      %p235 = pneg %p146
      %p236 = pneg %p170
      %p237 = pneg %p167
      %s238 = smul.u32 32, %s18
      %p239 = scmp.lt.s32.totalorder %s238, 63
      %s240 = scalar_select %p239, %s238, 63
      %s241 = smul.addr %s240, 8
      %s242 = scalar_lea.vmem %s0, %s241
      %s243 = smul.u32 32, %s18
      %s244 = smul.u32 32, %s18
      %p245 = scmp.lt.s32.totalorder %s244, 63
      %s246 = scalar_select %p245, %s244, 63
      %s247 = smul.addr %s246, 8
      %s248 = scalar_lea.vmem %s4, %s247
      %s249 = smul.u32 32, %s18
      %p251 = scmp.eq.s32.totalorder %s18, 0
      // Predicated region
      $region37: #{bottleneck_forward.4} parent=35 // pred_check
        %p252 = pneg %p251
      $region38: #{bottleneck_forward.4} parent=35 // pred_check_branch
        %254 = sbr.rel (%p252) target = $region40
      $region39: #{bottleneck_forward.4} parent=35 // pred_region
        %vm255 = vcmask 253952
        %256 = vst.msk [vmem:[%s5] sm:$0x1] %vm255, 0.0
        %257 = vst.msk [vmem:[%s6] sm:$0x1] %vm255, 0.0
      $region40: #{bottleneck_forward.4} parent=35 // pred_fallthru
        _
      %v258 = vld [vmem:[%s242] sm:$0xff]
      %v259 = vld [vmem:[%s242 + $0x8] sm:$0xff]
      %v260 = vld [vmem:[%s242 + $0x10] sm:$0xff]
      %v261 = vld [vmem:[%s242 + $0x18] sm:$0xff]
      %v262 = vld [vmem:[%s242 + $0x20] sm:$0xff]
      %v263 = vld [vmem:[%s242 + $0x28] sm:$0xff]
      %v264 = vld [vmem:[%s242 + $0x30] sm:$0xff]
      %v265 = vld [vmem:[%s242 + $0x38] sm:$0xff]
      %v266 = vld [vmem:[%s242 + $0x40] sm:$0xff]
      %v267 = vld [vmem:[%s242 + $0x48] sm:$0xff]
      %v268 = vld [vmem:[%s242 + $0x50] sm:$0xff]
      %v269 = vld [vmem:[%s242 + $0x58] sm:$0xff]
      %v270 = vld [vmem:[%s242 + $0x60] sm:$0xff]
      %v271 = vld [vmem:[%s242 + $0x68] sm:$0xff]
      %v272 = vld [vmem:[%s242 + $0x70] sm:$0xff]
      %v273 = vld [vmem:[%s242 + $0x78] sm:$0xff]
      %v274 = vld [vmem:[%s242 + $0x80] sm:$0xff]
      %v275 = vld [vmem:[%s242 + $0x88] sm:$0xff]
      %v276 = vld [vmem:[%s242 + $0x90] sm:$0xff]
      %v277 = vld [vmem:[%s242 + $0x98] sm:$0xff]
      %v278 = vld [vmem:[%s242 + $0xa0] sm:$0xff]
      %v279 = vld [vmem:[%s242 + $0xa8] sm:$0xff]
      %v280 = vld [vmem:[%s242 + $0xb0] sm:$0xff]
      %v281 = vld [vmem:[%s242 + $0xb8] sm:$0xff]
      %v282 = vld [vmem:[%s242 + $0xc0] sm:$0xff]
      %v283 = vld [vmem:[%s242 + $0xc8] sm:$0xff]
      %v284 = vld [vmem:[%s242 + $0xd0] sm:$0xff]
      %v285 = vld [vmem:[%s242 + $0xd8] sm:$0xff]
      %v286 = vld [vmem:[%s242 + $0xe0] sm:$0xff]
      %v287 = vld [vmem:[%s242 + $0xe8] sm:$0xff]
      %v288 = vld [vmem:[%s242 + $0xf0] sm:$0xff]
      %v289 = vld [vmem:[%s242 + $0xf8] sm:$0xff]
      %v290 = vld [vmem:[%s1] sm:$0x1]
      %v292 = vlaneseq
      %v293 = vshrl.u32 %v292, 7
      %v294 = vsub.s32 0, %v293
      %v295 = vrot.slane %v290, %v294
      %v297 = vmul.f32 %v258, %v295
      %v298 = vmul.f32 %v259, %v295
      %v299 = vmul.f32 %v260, %v295
      %v300 = vmul.f32 %v261, %v295
      %v301 = vmul.f32 %v262, %v295
      %v302 = vmul.f32 %v263, %v295
      %v303 = vmul.f32 %v264, %v295
      %v304 = vmul.f32 %v265, %v295
      %v305 = vmul.f32 %v266, %v295
      %v306 = vmul.f32 %v267, %v295
      %v307 = vmul.f32 %v268, %v295
      %v308 = vmul.f32 %v269, %v295
      %v309 = vmul.f32 %v270, %v295
      %v310 = vmul.f32 %v271, %v295
      %v311 = vmul.f32 %v272, %v295
      %v312 = vmul.f32 %v273, %v295
      %v313 = vmul.f32 %v274, %v295
      %v314 = vmul.f32 %v275, %v295
      %v315 = vmul.f32 %v276, %v295
      %v316 = vmul.f32 %v277, %v295
      %v317 = vmul.f32 %v278, %v295
      %v318 = vmul.f32 %v279, %v295
      %v319 = vmul.f32 %v280, %v295
      %v320 = vmul.f32 %v281, %v295
      %v321 = vmul.f32 %v282, %v295
      %v322 = vmul.f32 %v283, %v295
      %v323 = vmul.f32 %v284, %v295
      %v324 = vmul.f32 %v285, %v295
      %v325 = vmul.f32 %v286, %v295
      %v326 = vmul.f32 %v287, %v295
      %v327 = vmul.f32 %v288, %v295
      %v328 = vmul.f32 %v289, %v295
      %v329 = vld [vmem:[%s2] sm:$0x1]
      %v331 = vlaneseq
      %v332 = vshrl.u32 %v331, 7
      %v333 = vsub.s32 0, %v332
      %v334 = vrot.slane %v329, %v333
      %v336 = vadd.f32 %v297, %v334
      %v337 = vadd.f32 %v298, %v334
      %v338 = vadd.f32 %v299, %v334
      %v339 = vadd.f32 %v300, %v334
      %v340 = vadd.f32 %v301, %v334
      %v341 = vadd.f32 %v302, %v334
      %v342 = vadd.f32 %v303, %v334
      %v343 = vadd.f32 %v304, %v334
      %v344 = vadd.f32 %v305, %v334
      %v345 = vadd.f32 %v306, %v334
      %v346 = vadd.f32 %v307, %v334
      %v347 = vadd.f32 %v308, %v334
      %v348 = vadd.f32 %v309, %v334
      %v349 = vadd.f32 %v310, %v334
      %v350 = vadd.f32 %v311, %v334
      %v351 = vadd.f32 %v312, %v334
      %v352 = vadd.f32 %v313, %v334
      %v353 = vadd.f32 %v314, %v334
      %v354 = vadd.f32 %v315, %v334
      %v355 = vadd.f32 %v316, %v334
      %v356 = vadd.f32 %v317, %v334
      %v357 = vadd.f32 %v318, %v334
      %v358 = vadd.f32 %v319, %v334
      %v359 = vadd.f32 %v320, %v334
      %v360 = vadd.f32 %v321, %v334
      %v361 = vadd.f32 %v322, %v334
      %v362 = vadd.f32 %v323, %v334
      %v363 = vadd.f32 %v324, %v334
      %v364 = vadd.f32 %v325, %v334
      %v365 = vadd.f32 %v326, %v334
      %v366 = vadd.f32 %v327, %v334
      %v367 = vadd.f32 %v328, %v334
      %v368 = vmax.f32 %v336, 0.0
      %v369 = vmax.f32 %v337, 0.0
      %v370 = vmax.f32 %v338, 0.0
      %v371 = vmax.f32 %v339, 0.0
      %v372 = vmax.f32 %v340, 0.0
      %v373 = vmax.f32 %v341, 0.0
      %v374 = vmax.f32 %v342, 0.0
      %v375 = vmax.f32 %v343, 0.0
      %v376 = vmax.f32 %v344, 0.0
      %v377 = vmax.f32 %v345, 0.0
      %v378 = vmax.f32 %v346, 0.0
      %v379 = vmax.f32 %v347, 0.0
      %v380 = vmax.f32 %v348, 0.0
      %v381 = vmax.f32 %v349, 0.0
      %v382 = vmax.f32 %v350, 0.0
      %v383 = vmax.f32 %v351, 0.0
      %v384 = vmax.f32 %v352, 0.0
      %v385 = vmax.f32 %v353, 0.0
      %v386 = vmax.f32 %v354, 0.0
      %v387 = vmax.f32 %v355, 0.0
      %v388 = vmax.f32 %v356, 0.0
      %v389 = vmax.f32 %v357, 0.0
      %v390 = vmax.f32 %v358, 0.0
      %v391 = vmax.f32 %v359, 0.0
      %v392 = vmax.f32 %v360, 0.0
      %v393 = vmax.f32 %v361, 0.0
      %v394 = vmax.f32 %v362, 0.0
      %v395 = vmax.f32 %v363, 0.0
      %v396 = vmax.f32 %v364, 0.0
      %v397 = vmax.f32 %v365, 0.0
      %v398 = vmax.f32 %v366, 0.0
      %v399 = vmax.f32 %v367, 0.0
      %v400 = vpack.c.bf16 %v369, %v368
      %v401 = vpack.c.bf16 %v371, %v370
      %v402 = vpack.c.bf16 %v373, %v372
      %v403 = vpack.c.bf16 %v375, %v374
      %v404 = vpack.c.bf16 %v377, %v376
      %v405 = vpack.c.bf16 %v379, %v378
      %v406 = vpack.c.bf16 %v381, %v380
      %v407 = vpack.c.bf16 %v383, %v382
      %v408 = vpack.c.bf16 %v385, %v384
      %v409 = vpack.c.bf16 %v387, %v386
      %v410 = vpack.c.bf16 %v389, %v388
      %v411 = vpack.c.bf16 %v391, %v390
      %v412 = vpack.c.bf16 %v393, %v392
      %v413 = vpack.c.bf16 %v395, %v394
      %v414 = vpack.c.bf16 %v397, %v396
      %v415 = vpack.c.bf16 %v399, %v398
      %v416 = vld [vmem:[%s3] sm:$0x3]
      %vm417 = vcmask 31744
      %v419 = vsel %vm417, %v400, 0
      %v422 = vsel %vm417, %v401, 0
      %v425 = vsel %vm417, %v402, 0
      %v428 = vsel %vm417, %v403, 0
      %v431 = vsel %vm417, %v404, 0
      %v434 = vsel %vm417, %v405, 0
      %v437 = vsel %vm417, %v406, 0
      %v440 = vsel %vm417, %v407, 0
      %v443 = vsel %vm417, %v408, 0
      %v446 = vsel %vm417, %v409, 0
      %v449 = vsel %vm417, %v410, 0
      %v452 = vsel %vm417, %v411, 0
      %v455 = vsel %vm417, %v412, 0
      %v458 = vsel %vm417, %v413, 0
      %v461 = vsel %vm417, %v414, 0
      %v464 = vsel %vm417, %v415, 0
      %vm466 = vcmask 1041408
      %v468 = vsel %vm466, %v416, 0
      %470 = vmatprep.subr.bf16.mxu0 0
      %471 = vmatpush1.bf16.msra.mxu0 %v468
      %472 = vmatprep.subr.bf16.mxu0 0
      %473 = vmatpush1.bf16.msra.mxu0 0
      %474 = vmatprep.subr.bf16.mxu0 0
      %475 = vmatpush1.bf16.msra.mxu0 0
      %476 = vmatprep.subr.bf16.mxu0 0
      %477 = vmatpush1.bf16.msra.mxu0 0
      %478 = vmatprep.subr.bf16.mxu0 0
      %479 = vmatpush1.bf16.msra.mxu0 0
      %480 = vmatprep.subr.bf16.mxu0 0
      %481 = vmatpush1.bf16.msra.mxu0 0
      %482 = vmatprep.subr.bf16.mxu0 0
      %483 = vmatpush1.bf16.msra.mxu0 0
      %484 = vmatprep.subr.bf16.mxu0 0
      %485 = vmatpush1.bf16.msra.mxu0 0
      %486 = vmatprep.subr.bf16.mxu0 0
      %487 = vmatpush1.bf16.msra.mxu0 0
      %488 = vmatprep.subr.bf16.mxu0 0
      %489 = vmatpush1.bf16.msra.mxu0 0
      %490 = vmatprep.subr.bf16.mxu0 0
      %491 = vmatpush1.bf16.msra.mxu0 0
      %492 = vmatprep.subr.bf16.mxu0 0
      %493 = vmatpush1.bf16.msra.mxu0 0
      %494 = vmatprep.subr.bf16.mxu0 0
      %495 = vmatpush1.bf16.msra.mxu0 0
      %496 = vmatprep.subr.bf16.mxu0 0
      %497 = vmatpush1.bf16.msra.mxu0 0
      %498 = vmatprep.subr.bf16.mxu0 0
      %499 = vmatpush1.bf16.msra.mxu0 0
      %500 = vmatprep.subr.bf16.mxu0 0
      %501 = vmatpush1.bf16.msra.mxu0 0
      %502 = vmatprep.mubr.bf16.mxu0 0
      %503 = vmatmul.mubr.bf16.gmra.mrb[0].mxu0 %v419
      %v504 = vpop.f32.mrb[0].mxu0
      %v505 = vadd.f32 0.0, %v504
      %v506 = vpop.f32.mrb[0].mxu0
      %v507 = vpop.f32.mrb[0].mxu0
      %v508 = vadd.f32 0.0, %v507
      %v509 = vpop.f32.mrb[0].mxu0
      %510 = vmatprep.mubr.bf16.mxu0 0
      %511 = vmatmul.mubr.bf16.gmra.mrb[0].mxu0 %v422
      %v512 = vpop.f32.mrb[0].mxu0
      %v513 = vadd.f32 0.0, %v512
      %v514 = vpop.f32.mrb[0].mxu0
      %v515 = vpop.f32.mrb[0].mxu0
      %v516 = vadd.f32 0.0, %v515
      %v517 = vpop.f32.mrb[0].mxu0
      %518 = vmatprep.mubr.bf16.mxu0 0
      %519 = vmatmul.mubr.bf16.gmra.mrb[0].mxu0 %v425
      %v520 = vpop.f32.mrb[0].mxu0
      %v521 = vadd.f32 0.0, %v520
      %v522 = vpop.f32.mrb[0].mxu0
      %v523 = vpop.f32.mrb[0].mxu0
      %v524 = vadd.f32 0.0, %v523
      %v525 = vpop.f32.mrb[0].mxu0
      %526 = vmatprep.mubr.bf16.mxu0 0
      %527 = vmatmul.mubr.bf16.gmra.mrb[0].mxu0 %v428
      %v528 = vpop.f32.mrb[0].mxu0
      %v529 = vadd.f32 0.0, %v528
      %v530 = vpop.f32.mrb[0].mxu0
      %v531 = vpop.f32.mrb[0].mxu0
      %v532 = vadd.f32 0.0, %v531
      %v533 = vpop.f32.mrb[0].mxu0
      %534 = vmatprep.mubr.bf16.mxu0 0
      %535 = vmatmul.mubr.bf16.gmra.mrb[0].mxu0 %v431
      %v536 = vpop.f32.mrb[0].mxu0
      %v537 = vadd.f32 0.0, %v536
      %v538 = vpop.f32.mrb[0].mxu0
      %v539 = vpop.f32.mrb[0].mxu0
      %v540 = vadd.f32 0.0, %v539
      %v541 = vpop.f32.mrb[0].mxu0
      %542 = vmatprep.mubr.bf16.mxu0 0
      %543 = vmatmul.mubr.bf16.gmra.mrb[0].mxu0 %v434
      %v544 = vpop.f32.mrb[0].mxu0
      %v545 = vadd.f32 0.0, %v544
      %v546 = vpop.f32.mrb[0].mxu0
      %v547 = vpop.f32.mrb[0].mxu0
      %v548 = vadd.f32 0.0, %v547
      %v549 = vpop.f32.mrb[0].mxu0
      %550 = vmatprep.mubr.bf16.mxu0 0
      %551 = vmatmul.mubr.bf16.gmra.mrb[0].mxu0 %v437
      %v552 = vpop.f32.mrb[0].mxu0
      %v553 = vadd.f32 0.0, %v552
      %v554 = vpop.f32.mrb[0].mxu0
      %v555 = vpop.f32.mrb[0].mxu0
      %v556 = vadd.f32 0.0, %v555
      %v557 = vpop.f32.mrb[0].mxu0
      %558 = vmatprep.mubr.bf16.mxu0 0
      %559 = vmatmul.mubr.bf16.gmra.mrb[0].mxu0 %v440
      %v560 = vpop.f32.mrb[0].mxu0
      %v561 = vadd.f32 0.0, %v560
      %v562 = vpop.f32.mrb[0].mxu0
      %v563 = vpop.f32.mrb[0].mxu0
      %v564 = vadd.f32 0.0, %v563
      %v565 = vpop.f32.mrb[0].mxu0
      %566 = vmatprep.mubr.bf16.mxu0 0
      %567 = vmatmul.mubr.bf16.gmra.mrb[0].mxu0 %v443
      %v568 = vpop.f32.mrb[0].mxu0
      %v569 = vadd.f32 0.0, %v568
      %v570 = vpop.f32.mrb[0].mxu0
      %v571 = vpop.f32.mrb[0].mxu0
      %v572 = vadd.f32 0.0, %v571
      %v573 = vpop.f32.mrb[0].mxu0
      %574 = vmatprep.mubr.bf16.mxu0 0
      %575 = vmatmul.mubr.bf16.gmra.mrb[0].mxu0 %v446
      %v576 = vpop.f32.mrb[0].mxu0
      %v577 = vadd.f32 0.0, %v576
      %v578 = vpop.f32.mrb[0].mxu0
      %v579 = vpop.f32.mrb[0].mxu0
      %v580 = vadd.f32 0.0, %v579
      %v581 = vpop.f32.mrb[0].mxu0
      %582 = vmatprep.mubr.bf16.mxu0 0
      %583 = vmatmul.mubr.bf16.gmra.mrb[0].mxu0 %v449
      %v584 = vpop.f32.mrb[0].mxu0
      %v585 = vadd.f32 0.0, %v584
      %v586 = vpop.f32.mrb[0].mxu0
      %v587 = vpop.f32.mrb[0].mxu0
      %v588 = vadd.f32 0.0, %v587
      %v589 = vpop.f32.mrb[0].mxu0
      %590 = vmatprep.mubr.bf16.mxu0 0
      %591 = vmatmul.mubr.bf16.gmra.mrb[0].mxu0 %v452
      %v592 = vpop.f32.mrb[0].mxu0
      %v593 = vadd.f32 0.0, %v592
      %v594 = vpop.f32.mrb[0].mxu0
      %v595 = vpop.f32.mrb[0].mxu0
      %v596 = vadd.f32 0.0, %v595
      %v597 = vpop.f32.mrb[0].mxu0
      %598 = vmatprep.mubr.bf16.mxu0 0
      %599 = vmatmul.mubr.bf16.gmra.mrb[0].mxu0 %v455
      %v600 = vpop.f32.mrb[0].mxu0
      %v601 = vadd.f32 0.0, %v600
      %v602 = vpop.f32.mrb[0].mxu0
      %v603 = vpop.f32.mrb[0].mxu0
      %v604 = vadd.f32 0.0, %v603
      %v605 = vpop.f32.mrb[0].mxu0
      %606 = vmatprep.mubr.bf16.mxu0 0
      %607 = vmatmul.mubr.bf16.gmra.mrb[0].mxu0 %v458
      %v608 = vpop.f32.mrb[0].mxu0
      %v609 = vadd.f32 0.0, %v608
      %v610 = vpop.f32.mrb[0].mxu0
      %v611 = vpop.f32.mrb[0].mxu0
      %v612 = vadd.f32 0.0, %v611
      %v613 = vpop.f32.mrb[0].mxu0
      %614 = vmatprep.mubr.bf16.mxu0 0
      %615 = vmatmul.mubr.bf16.gmra.mrb[0].mxu0 %v461
      %v616 = vpop.f32.mrb[0].mxu0
      %v617 = vadd.f32 0.0, %v616
      %v618 = vpop.f32.mrb[0].mxu0
      %v619 = vpop.f32.mrb[0].mxu0
      %v620 = vadd.f32 0.0, %v619
      %v621 = vpop.f32.mrb[0].mxu0
      %622 = vmatprep.mubr.bf16.mxu0 0
      %623 = vmatmul.mubr.bf16.gmra.mrb[0].mxu0 %v464
      %v624 = vpop.f32.mrb[0].mxu0
      %v625 = vadd.f32 0.0, %v624
      %v626 = vpop.f32.mrb[0].mxu0
      %v627 = vpop.f32.mrb[0].mxu0
      %v628 = vadd.f32 0.0, %v627
      %v629 = vpop.f32.mrb[0].mxu0
      %630 = vdwg.mxu0
      %vm631 = vcmask 261120
      %632 = vst.msk [vmem:[%s248] sm:$0xff] %vm631, %v505
      %633 = vst.msk [vmem:[%s248 + $0x8] sm:$0xff] %vm631, %v508
      %634 = vst.msk [vmem:[%s248 + $0x10] sm:$0xff] %vm631, %v513
      %635 = vst.msk [vmem:[%s248 + $0x18] sm:$0xff] %vm631, %v516
      %636 = vst.msk [vmem:[%s248 + $0x20] sm:$0xff] %vm631, %v521
      %637 = vst.msk [vmem:[%s248 + $0x28] sm:$0xff] %vm631, %v524
      %638 = vst.msk [vmem:[%s248 + $0x30] sm:$0xff] %vm631, %v529
      %639 = vst.msk [vmem:[%s248 + $0x38] sm:$0xff] %vm631, %v532
      %640 = vst.msk [vmem:[%s248 + $0x40] sm:$0xff] %vm631, %v537
      %641 = vst.msk [vmem:[%s248 + $0x48] sm:$0xff] %vm631, %v540
      %642 = vst.msk [vmem:[%s248 + $0x50] sm:$0xff] %vm631, %v545
      %643 = vst.msk [vmem:[%s248 + $0x58] sm:$0xff] %vm631, %v548
      %644 = vst.msk [vmem:[%s248 + $0x60] sm:$0xff] %vm631, %v553
      %645 = vst.msk [vmem:[%s248 + $0x68] sm:$0xff] %vm631, %v556
      %646 = vst.msk [vmem:[%s248 + $0x70] sm:$0xff] %vm631, %v561
      %647 = vst.msk [vmem:[%s248 + $0x78] sm:$0xff] %vm631, %v564
      %648 = vst.msk [vmem:[%s248 + $0x80] sm:$0xff] %vm631, %v569
      %649 = vst.msk [vmem:[%s248 + $0x88] sm:$0xff] %vm631, %v572
      %650 = vst.msk [vmem:[%s248 + $0x90] sm:$0xff] %vm631, %v577
      %651 = vst.msk [vmem:[%s248 + $0x98] sm:$0xff] %vm631, %v580
      %652 = vst.msk [vmem:[%s248 + $0xa0] sm:$0xff] %vm631, %v585
      %653 = vst.msk [vmem:[%s248 + $0xa8] sm:$0xff] %vm631, %v588
      %654 = vst.msk [vmem:[%s248 + $0xb0] sm:$0xff] %vm631, %v593
      %655 = vst.msk [vmem:[%s248 + $0xb8] sm:$0xff] %vm631, %v596
      %656 = vst.msk [vmem:[%s248 + $0xc0] sm:$0xff] %vm631, %v601
      %657 = vst.msk [vmem:[%s248 + $0xc8] sm:$0xff] %vm631, %v604
      %658 = vst.msk [vmem:[%s248 + $0xd0] sm:$0xff] %vm631, %v609
      %659 = vst.msk [vmem:[%s248 + $0xd8] sm:$0xff] %vm631, %v612
      %660 = vst.msk [vmem:[%s248 + $0xe0] sm:$0xff] %vm631, %v617
      %661 = vst.msk [vmem:[%s248 + $0xe8] sm:$0xff] %vm631, %v620
      %662 = vst.msk [vmem:[%s248 + $0xf0] sm:$0xff] %vm631, %v625
      %663 = vst.msk [vmem:[%s248 + $0xf8] sm:$0xff] %vm631, %v628
      %v664 = vld [vmem:[%s5] sm:$0x1]
      %v665 = vsel %vm631, %v505, 0.0
      %v666 = vsel %vm631, %v508, 0.0
      %v667 = vadd.f32 %v665, %v666
      %v668 = vsel %vm631, %v513, 0.0
      %v669 = vadd.f32 %v667, %v668
      %v670 = vsel %vm631, %v516, 0.0
      %v671 = vadd.f32 %v669, %v670
      %v672 = vsel %vm631, %v521, 0.0
      %v673 = vadd.f32 %v671, %v672
      %v674 = vsel %vm631, %v524, 0.0
      %v675 = vadd.f32 %v673, %v674
      %v676 = vsel %vm631, %v529, 0.0
      %v677 = vadd.f32 %v675, %v676
      %v678 = vsel %vm631, %v532, 0.0
      %v679 = vadd.f32 %v677, %v678
      %v680 = vsel %vm631, %v537, 0.0
      %v681 = vadd.f32 %v679, %v680
      %v682 = vsel %vm631, %v540, 0.0
      %v683 = vadd.f32 %v681, %v682
      %v684 = vsel %vm631, %v545, 0.0
      %v685 = vadd.f32 %v683, %v684
      %v686 = vsel %vm631, %v548, 0.0
      %v687 = vadd.f32 %v685, %v686
      %v688 = vsel %vm631, %v553, 0.0
      %v689 = vadd.f32 %v687, %v688
      %v690 = vsel %vm631, %v556, 0.0
      %v691 = vadd.f32 %v689, %v690
      %v692 = vsel %vm631, %v561, 0.0
      %v693 = vadd.f32 %v691, %v692
      %v694 = vsel %vm631, %v564, 0.0
      %v695 = vadd.f32 %v693, %v694
      %v696 = vsel %vm631, %v569, 0.0
      %v697 = vadd.f32 %v695, %v696
      %v698 = vsel %vm631, %v572, 0.0
      %v699 = vadd.f32 %v697, %v698
      %v700 = vsel %vm631, %v577, 0.0
      %v701 = vadd.f32 %v699, %v700
      %v702 = vsel %vm631, %v580, 0.0
      %v703 = vadd.f32 %v701, %v702
      %v704 = vsel %vm631, %v585, 0.0
      %v705 = vadd.f32 %v703, %v704
      %v706 = vsel %vm631, %v588, 0.0
      %v707 = vadd.f32 %v705, %v706
      %v708 = vsel %vm631, %v593, 0.0
      %v709 = vadd.f32 %v707, %v708
      %v710 = vsel %vm631, %v596, 0.0
      %v711 = vadd.f32 %v709, %v710
      %v712 = vsel %vm631, %v601, 0.0
      %v713 = vadd.f32 %v711, %v712
      %v714 = vsel %vm631, %v604, 0.0
      %v715 = vadd.f32 %v713, %v714
      %v716 = vsel %vm631, %v609, 0.0
      %v717 = vadd.f32 %v715, %v716
      %v718 = vsel %vm631, %v612, 0.0
      %v719 = vadd.f32 %v717, %v718
      %v720 = vsel %vm631, %v617, 0.0
      %v721 = vadd.f32 %v719, %v720
      %v722 = vsel %vm631, %v620, 0.0
      %v723 = vadd.f32 %v721, %v722
      %v724 = vsel %vm631, %v625, 0.0
      %v725 = vadd.f32 %v723, %v724
      %v726 = vsel %vm631, %v628, 0.0
      %v727 = vadd.f32 %v725, %v726
      %v728 = vrot.slane %v727, 4
      %v729 = vadd.f32 %v727, %v728
      %v730 = vrot.slane %v729, 2
      %v731 = vadd.f32 %v729, %v730
      %v732 = vrot.slane %v731, 1
      %v733 = vadd.f32 %v731, %v732
      %v734 = vadd.f32 %v664, %v733
      %vm735 = vcmask 253952
      %736 = vst.msk [vmem:[%s5] sm:$0x1] %vm735, %v734
      %v737 = vld [vmem:[%s6] sm:$0x1]
      %v738 = vmul.f32 %v505, %v505
      %v739 = vmul.f32 %v508, %v508
      %v740 = vmul.f32 %v513, %v513
      %v741 = vmul.f32 %v516, %v516
      %v742 = vmul.f32 %v521, %v521
      %v743 = vmul.f32 %v524, %v524
      %v744 = vmul.f32 %v529, %v529
      %v745 = vmul.f32 %v532, %v532
      %v746 = vmul.f32 %v537, %v537
      %v747 = vmul.f32 %v540, %v540
      %v748 = vmul.f32 %v545, %v545
      %v749 = vmul.f32 %v548, %v548
      %v750 = vmul.f32 %v553, %v553
      %v751 = vmul.f32 %v556, %v556
      %v752 = vmul.f32 %v561, %v561
      %v753 = vmul.f32 %v564, %v564
      %v754 = vmul.f32 %v569, %v569
      %v755 = vmul.f32 %v572, %v572
      %v756 = vmul.f32 %v577, %v577
      %v757 = vmul.f32 %v580, %v580
      %v758 = vmul.f32 %v585, %v585
      %v759 = vmul.f32 %v588, %v588
      %v760 = vmul.f32 %v593, %v593
      %v761 = vmul.f32 %v596, %v596
      %v762 = vmul.f32 %v601, %v601
      %v763 = vmul.f32 %v604, %v604
      %v764 = vmul.f32 %v609, %v609
      %v765 = vmul.f32 %v612, %v612
      %v766 = vmul.f32 %v617, %v617
      %v767 = vmul.f32 %v620, %v620
      %v768 = vmul.f32 %v625, %v625
      %v769 = vmul.f32 %v628, %v628
      %v770 = vsel %vm631, %v738, 0.0
      %v771 = vsel %vm631, %v739, 0.0
      %v772 = vadd.f32 %v770, %v771
      %v773 = vsel %vm631, %v740, 0.0
      %v774 = vadd.f32 %v772, %v773
      %v775 = vsel %vm631, %v741, 0.0
      %v776 = vadd.f32 %v774, %v775
      %v777 = vsel %vm631, %v742, 0.0
      %v778 = vadd.f32 %v776, %v777
      %v779 = vsel %vm631, %v743, 0.0
      %v780 = vadd.f32 %v778, %v779
      %v781 = vsel %vm631, %v744, 0.0
      %v782 = vadd.f32 %v780, %v781
      %v783 = vsel %vm631, %v745, 0.0
      %v784 = vadd.f32 %v782, %v783
      %v785 = vsel %vm631, %v746, 0.0
      %v786 = vadd.f32 %v784, %v785
      %v787 = vsel %vm631, %v747, 0.0
      %v788 = vadd.f32 %v786, %v787
      %v789 = vsel %vm631, %v748, 0.0
      %v790 = vadd.f32 %v788, %v789
      %v791 = vsel %vm631, %v749, 0.0
      %v792 = vadd.f32 %v790, %v791
      %v793 = vsel %vm631, %v750, 0.0
      %v794 = vadd.f32 %v792, %v793
      %v795 = vsel %vm631, %v751, 0.0
      %v796 = vadd.f32 %v794, %v795
      %v797 = vsel %vm631, %v752, 0.0
      %v798 = vadd.f32 %v796, %v797
      %v799 = vsel %vm631, %v753, 0.0
      %v800 = vadd.f32 %v798, %v799
      %v801 = vsel %vm631, %v754, 0.0
      %v802 = vadd.f32 %v800, %v801
      %v803 = vsel %vm631, %v755, 0.0
      %v804 = vadd.f32 %v802, %v803
      %v805 = vsel %vm631, %v756, 0.0
      %v806 = vadd.f32 %v804, %v805
      %v807 = vsel %vm631, %v757, 0.0
      %v808 = vadd.f32 %v806, %v807
      %v809 = vsel %vm631, %v758, 0.0
      %v810 = vadd.f32 %v808, %v809
      %v811 = vsel %vm631, %v759, 0.0
      %v812 = vadd.f32 %v810, %v811
      %v813 = vsel %vm631, %v760, 0.0
      %v814 = vadd.f32 %v812, %v813
      %v815 = vsel %vm631, %v761, 0.0
      %v816 = vadd.f32 %v814, %v815
      %v817 = vsel %vm631, %v762, 0.0
      %v818 = vadd.f32 %v816, %v817
      %v819 = vsel %vm631, %v763, 0.0
      %v820 = vadd.f32 %v818, %v819
      %v821 = vsel %vm631, %v764, 0.0
      %v822 = vadd.f32 %v820, %v821
      %v823 = vsel %vm631, %v765, 0.0
      %v824 = vadd.f32 %v822, %v823
      %v825 = vsel %vm631, %v766, 0.0
      %v826 = vadd.f32 %v824, %v825
      %v827 = vsel %vm631, %v767, 0.0
      %v828 = vadd.f32 %v826, %v827
      %v829 = vsel %vm631, %v768, 0.0
      %v830 = vadd.f32 %v828, %v829
      %v831 = vsel %vm631, %v769, 0.0
      %v832 = vadd.f32 %v830, %v831
      %v833 = vrot.slane %v832, 4
      %v834 = vadd.f32 %v832, %v833
      %v835 = vrot.slane %v834, 2
      %v836 = vadd.f32 %v834, %v835
      %v837 = vrot.slane %v836, 1
      %v838 = vadd.f32 %v836, %v837
      %v839 = vadd.f32 %v737, %v838
      %840 = vst.msk [vmem:[%s6] sm:$0x1] %vm735, %v839
      %s841 = smul.u32 32, %s18
      %p842 = scmp.lt.s32.totalorder %s841, 63
      %s843 = scalar_select %p842, %s841, 63
      %s844 = smul.addr %s843, 8
      %s845 = scalar_lea.vmem %s4, %s844
      // Predicated region
      $region41: #{bottleneck_forward.4} parent=35 // pred_check
        %p846 = pneg %p125
      $region42: #{bottleneck_forward.4} parent=35 // pred_check_branch
        %848 = sbr.rel (%p846) target = $region44
      $region43: #{bottleneck_forward.4} parent=35 // pred_region
        %s849 = smul.u32 32, %s18
      $region44: #{bottleneck_forward.4} parent=35 // pred_fallthru
        _
      // Predicated region
      $region45: #{bottleneck_forward.4} parent=35 // pred_check
        %p850 = pneg %p146
      $region46: #{bottleneck_forward.4} parent=35 // pred_check_branch
        %852 = sbr.rel (%p850) target = $region48
      $region47: #{bottleneck_forward.4} parent=35 // pred_region
        _
      $region48: #{bottleneck_forward.4} parent=35 // pred_fallthru
        _
      // Predicated region
      $region49: #{bottleneck_forward.4} parent=35 // pred_check
        %p853 = pneg %p167
      $region50: #{bottleneck_forward.4} parent=35 // pred_check_branch
        %855 = sbr.rel (%p853) target = $region52
      $region51: #{bottleneck_forward.4} parent=35 // pred_region
        _
      $region52: #{bottleneck_forward.4} parent=35 // pred_fallthru
        _
      // Predicated region
      $region53: #{bottleneck_forward.4} parent=35 // pred_check
        %p856 = pneg %p146
      $region54: #{bottleneck_forward.4} parent=35 // pred_check_branch
        %858 = sbr.rel (%p856) target = $region56
      $region55: #{bottleneck_forward.4} parent=35 // pred_region
        _
      $region56: #{bottleneck_forward.4} parent=35 // pred_fallthru
        _
      // Predicated region
      $region57: #{bottleneck_forward.4} parent=35 // pred_check
        %p859 = pneg %p167
      $region58: #{bottleneck_forward.4} parent=35 // pred_check_branch
        %861 = sbr.rel (%p859) target = $region60
      $region59: #{bottleneck_forward.4} parent=35 // pred_region
        _
      $region60: #{bottleneck_forward.4} parent=35 // pred_fallthru
        _
    $region36: #{bottleneck_forward.4} parent=5 // pred_fallthru
      _
    %p862 = scmp.le.s32.totalorder 2, %s13
    // Predicated region
    $region61: #{bottleneck_forward.4} parent=5 // pred_check
      %p863 = pneg %p862
    $region62: #{bottleneck_forward.4} parent=5 // pred_check_branch
      %865 = sbr.rel (%p863) target = $region64
    $region63: #{bottleneck_forward.4} parent=5 // pred_region
      %s866 = ssub.s32 %s13, 2
      // Predicated region
      $region65: #{bottleneck_forward.4} parent=63 // pred_check
        %p867 = pneg %p131
      $region66: #{bottleneck_forward.4} parent=63 // pred_check_branch
        %869 = sbr.rel (%p867) target = $region68
      $region67: #{bottleneck_forward.4} parent=63 // pred_region
        %s870 = smul.u32 32, %s19
        %p871 = scmp.lt.s32.totalorder %s870, 63
        %s872 = scalar_select %p871, %s870, 63
        %s873 = smul.addr %s872, 8
        %s874 = scalar_lea.vmem %s4, %s873
      $region68: #{bottleneck_forward.4} parent=63 // pred_fallthru
        _
    $region64: #{bottleneck_forward.4} parent=5 // pred_fallthru
      _
  $region6: #{bottleneck_forward.4} parent=0 // loop_footer
    %s17 = sadd.s32 1, %s13
  $region7: #{bottleneck_forward.4} parent=0 // loop_footer_branch
    %12 = sbr.rel target = $region3
  $region8: #{bottleneck_forward.4} parent=0 // loop_exit
    _

// kernel: bottleneck_forward.5
$region0: #{bottleneck_forward.5}
  #allocation0 [shape = 'u32[]', space=smem, size = 0x4, offset = 0x4, fixed_abs, tag = 'smem constant byte address 0x4 - core index']
  #allocation1 [shape = 'u32[144,128]{1,0:T(1,128)}', space=vmem, size = 0x12000, scoped, tag = 'internal scratch']
  #allocation2 [shape = 'f32[18,18,32]{2,1,0:T(8,128)}', space=vmem, size = 0x36000, scoped, tag = 'scratch operand']
  #allocation3 [shape = 'bf16[256,288]{1,0:T(16,128)(2,1)}', space=vmem, size = 0x30000, scoped, tag = 'scratch operand']
  %s0 = inlined_call_operand.vmem [shape: f32[2,16,16,32], index: 0, kind: input, shape index: {}]
  %s1 = inlined_call_operand.vmem [shape: f32[1,32], index: 1, kind: input, shape index: {}]
  %s2 = inlined_call_operand.vmem [shape: f32[1,32], index: 2, kind: input, shape index: {}]
  %s3 = inlined_call_operand.vmem [shape: bf16[8,288], index: 3, kind: input, shape index: {}]
  %s4 = inlined_call_operand.vmem [shape: f32[2,8,256], index: 4, kind: output, shape index: {}]
  %s5 = sld [smem:[#allocation0]]
  $region49: #{bottleneck_forward.5} parent=0
    _
  %s7 = ssub.s32 1, %s5
  %s8 = scalar_select 0, %s7, %s5
  loop: start=0, step=1, limit=4
  $region2: #{bottleneck_forward.5} parent=0 // loop_pre_header
    _
  $region3: #{bottleneck_forward.5} parent=0 // loop_header
    %s10 = sphi 0, %s14
    %p11 = scmp.ge.s32.totalorder %s10, 4
    %s20 = sphi 0, %s22
    %s23 = sphi 0, %s20
    %s24 = sphi 0, %s23
    %s40 = sphi 0, %s24
    %s44 = sphi 0, %s44
    %s46 = sphi 0, %s44
    %s47 = sphi 0, %s46
    %s61 = sphi 0, %s47
    %s65 = sphi 0, %s65
    %s67 = sphi 0, %s65
    %s68 = sphi 0, %s67
    %s82 = sphi 0, %s68
    %s86 = sphi 0, %s86
    %s88 = sphi 0, %s86
    %s89 = sphi 0, %s88
    %s103 = sphi 0, %s89
    %s109 = sphi 0, %s111
    %s112 = sphi 0, %s109
    %s113 = sphi 0, %s112
    %s129 = sphi 0, %s113
  $region4: #{bottleneck_forward.5} parent=0 // loop_header_branch
    %13 = sbr.rel (%p11) target = $region8
  $region5: #{bottleneck_forward.5} parent=0 // loop_body
    %s15 = ssub.s32 %s10, 1
    %s16 = ssub.s32 %s10, 2
    %s17 = sadd.s32 %s10, 1
    %s18 = ssub.s32 %s10, %s17
    %p19 = scmp.eq.s32.totalorder %s18, 0
    %s21 = sadd.s32 %s20, 1
    %s22 = scalar_select %p19, %s20, %s21
    %p25 = pneg %p19
    %p26 = scmp.eq.s32.totalorder %s10, 1
    %p27 = por %p25, %p26
    %p28 = scmp.ne.s32.totalorder %s20, %s23
    %p29 = scmp.eq.s32.totalorder %s10, 0
    %p30 = por %p28, %p29
    %p31 = scmp.ne.s32.totalorder %s20, %s23
    %p32 = scmp.eq.s32.totalorder %s15, 1
    %p33 = por %p31, %p32
    %p34 = scmp.ne.s32.totalorder %s23, %s24
    %p35 = scmp.eq.s32.totalorder %s15, 0
    %p36 = por %p34, %p35
    %p37 = scmp.ne.s32.totalorder %s23, %s24
    %p38 = scmp.eq.s32.totalorder %s16, 1
    %p39 = por %p37, %p38
    %p41 = scmp.ne.s32.totalorder %s24, %s40
    %p42 = scmp.eq.s32.totalorder %s16, 0
    %p43 = por %p41, %p42
    %s45 = sadd.s32 %s44, 1
    %p48 = scmp.eq.s32.totalorder %s10, 1
    %p49 = scmp.ne.s32.totalorder %s44, %s46
    %p50 = scmp.eq.s32.totalorder %s10, 0
    %p51 = por %p49, %p50
    %p52 = scmp.ne.s32.totalorder %s44, %s46
    %p53 = scmp.eq.s32.totalorder %s15, 1
    %p54 = por %p52, %p53
    %p55 = scmp.ne.s32.totalorder %s46, %s47
    %p56 = scmp.eq.s32.totalorder %s15, 0
    %p57 = por %p55, %p56
    %p58 = scmp.ne.s32.totalorder %s46, %s47
    %p59 = scmp.eq.s32.totalorder %s16, 1
    %p60 = por %p58, %p59
    %p62 = scmp.ne.s32.totalorder %s47, %s61
    %p63 = scmp.eq.s32.totalorder %s16, 0
    %p64 = por %p62, %p63
    %s66 = sadd.s32 %s65, 1
    %p69 = scmp.eq.s32.totalorder %s10, 1
    %p70 = scmp.ne.s32.totalorder %s65, %s67
    %p71 = scmp.eq.s32.totalorder %s10, 0
    %p72 = por %p70, %p71
    %p73 = scmp.ne.s32.totalorder %s65, %s67
    %p74 = scmp.eq.s32.totalorder %s15, 1
    %p75 = por %p73, %p74
    %p76 = scmp.ne.s32.totalorder %s67, %s68
    %p77 = scmp.eq.s32.totalorder %s15, 0
    %p78 = por %p76, %p77
    %p79 = scmp.ne.s32.totalorder %s67, %s68
    %p80 = scmp.eq.s32.totalorder %s16, 1
    %p81 = por %p79, %p80
    %p83 = scmp.ne.s32.totalorder %s68, %s82
    %p84 = scmp.eq.s32.totalorder %s16, 0
    %p85 = por %p83, %p84
    %s87 = sadd.s32 %s86, 1
    %p90 = scmp.eq.s32.totalorder %s10, 1
    %p91 = scmp.ne.s32.totalorder %s86, %s88
    %p92 = scmp.eq.s32.totalorder %s10, 0
    %p93 = por %p91, %p92
    %p94 = scmp.ne.s32.totalorder %s86, %s88
    %p95 = scmp.eq.s32.totalorder %s15, 1
    %p96 = por %p94, %p95
    %p97 = scmp.ne.s32.totalorder %s88, %s89
    %p98 = scmp.eq.s32.totalorder %s15, 0
    %p99 = por %p97, %p98
    %p100 = scmp.ne.s32.totalorder %s88, %s89
    %p101 = scmp.eq.s32.totalorder %s16, 1
    %p102 = por %p100, %p101
    %p104 = scmp.ne.s32.totalorder %s89, %s103
    %p105 = scmp.eq.s32.totalorder %s16, 0
    %p106 = por %p104, %p105
    %s107 = ssub.s32 %s10, %s17
    %p108 = scmp.eq.s32.totalorder %s107, 0
    %s110 = sadd.s32 %s109, 1
    %s111 = scalar_select %p108, %s109, %s110
    %p114 = pneg %p108
    %p115 = scmp.eq.s32.totalorder %s10, 1
    %p116 = por %p114, %p115
    %p117 = scmp.ne.s32.totalorder %s109, %s112
    %p118 = scmp.eq.s32.totalorder %s10, 0
    %p119 = por %p117, %p118
    %p120 = scmp.ne.s32.totalorder %s109, %s112
    %p121 = scmp.eq.s32.totalorder %s15, 1
    %p122 = por %p120, %p121
    %p123 = scmp.ne.s32.totalorder %s112, %s113
    %p124 = scmp.eq.s32.totalorder %s15, 0
    %p125 = por %p123, %p124
    %p126 = scmp.ne.s32.totalorder %s112, %s113
    %p127 = scmp.eq.s32.totalorder %s16, 1
    %p128 = por %p126, %p127
    %p130 = scmp.ne.s32.totalorder %s113, %s129
    %p131 = scmp.eq.s32.totalorder %s16, 0
    %p132 = por %p130, %p131
    %p133 = scmp.le.s32.totalorder 1, %s10
    %p134 = scmp.lt.s32.totalorder %s10, 3
    %p135 = pnand %p133, %p134
    %p136 = pneg %p135
    // Predicated region
    $region9: #{bottleneck_forward.5} parent=5 // pred_check
      _
    $region10: #{bottleneck_forward.5} parent=5 // pred_check_branch
      %138 = sbr.rel (%p135) target = $region12
    $region11: #{bottleneck_forward.5} parent=5 // pred_region
      %s139 = ssub.s32 %s10, 1
      // Predicated region
      $region13: #{bottleneck_forward.5} parent=11 // pred_check
        %p140 = pneg %p57
      $region14: #{bottleneck_forward.5} parent=11 // pred_check_branch
        %142 = sbr.rel (%p140) target = $region16
      $region15: #{bottleneck_forward.5} parent=11 // pred_region
        _
      $region16: #{bottleneck_forward.5} parent=11 // pred_fallthru
        _
      // Predicated region
      $region17: #{bottleneck_forward.5} parent=11 // pred_check
        %p143 = pneg %p78
      $region18: #{bottleneck_forward.5} parent=11 // pred_check_branch
        %145 = sbr.rel (%p143) target = $region20
      $region19: #{bottleneck_forward.5} parent=11 // pred_region
        _
      $region20: #{bottleneck_forward.5} parent=11 // pred_fallthru
        _
      // Predicated region
      $region21: #{bottleneck_forward.5} parent=11 // pred_check
        %p146 = pneg %p99
      $region22: #{bottleneck_forward.5} parent=11 // pred_check_branch
        %148 = sbr.rel (%p146) target = $region24
      $region23: #{bottleneck_forward.5} parent=11 // pred_region
        _
      $region24: #{bottleneck_forward.5} parent=11 // pred_fallthru
        _
    $region12: #{bottleneck_forward.5} parent=5 // pred_fallthru
      _
    %p149 = scmp.lt.s32.totalorder %s10, 2
    // Predicated region
    $region25: #{bottleneck_forward.5} parent=5 // pred_check
      %p150 = pneg %p149
    $region26: #{bottleneck_forward.5} parent=5 // pred_check_branch
      %152 = sbr.rel (%p150) target = $region28
    $region27: #{bottleneck_forward.5} parent=5 // pred_region
      // Predicated region
      $region29: #{bottleneck_forward.5} parent=27 // pred_check
        %p153 = pneg %p30
      $region30: #{bottleneck_forward.5} parent=27 // pred_check_branch
        %155 = sbr.rel (%p153) target = $region32
      $region31: #{bottleneck_forward.5} parent=27 // pred_region
        %p156 = scmp.lt.s32.totalorder %s10, 1
        %s157 = scalar_select %p156, %s10, 1
        %s158 = smul.addr %s157, 32
        %s159 = smul.addr %s158, 8
        %s160 = scalar_lea.vmem %s0, %s159
      $region32: #{bottleneck_forward.5} parent=27 // pred_fallthru
        _
    $region28: #{bottleneck_forward.5} parent=5 // pred_fallthru
      _
    %p161 = scmp.le.s32.totalorder 1, %s10
    %p162 = scmp.lt.s32.totalorder %s10, 3
    %p163 = pnand %p161, %p162
    %p164 = pneg %p163
    // Predicated region
    $region33: #{bottleneck_forward.5} parent=5 // pred_check
      _
    $region34: #{bottleneck_forward.5} parent=5 // pred_check_branch
      %166 = sbr.rel (%p163) target = $region36
    $region35: #{bottleneck_forward.5} parent=5 // pred_region
      %s167 = ssub.s32 %s10, 1
      %p168 = scmp.lt.s32.totalorder %s15, 1
      %s169 = scalar_select %p168, %s15, 1
      %s170 = smul.addr %s169, 32
      %s171 = smul.addr %s170, 8
      %s172 = scalar_lea.vmem %s0, %s171
      %p173 = pneg %p36
      %p174 = pneg %p33
      %p175 = pneg %p57
      %p176 = pneg %p54
      %p177 = pneg %p78
      %p178 = pneg %p75
      %p179 = pneg %p99
      %p180 = pneg %p96
      %p181 = pneg %p125
      %p182 = pneg %p122
      %p183 = scmp.lt.s32.totalorder %s15, 1
      %s184 = scalar_select %p183, %s15, 1
      %s185 = smul.addr %s184, 2
      %s186 = smul.addr %s185, 8
      %s187 = scalar_lea.vmem %s4, %s186
      %p188 = scmp.lt.s32.totalorder %s15, 1
      %s189 = scalar_select %p188, %s15, 1
      %s190 = smul.addr %s189, 32
      %s191 = smul.addr %s190, 8
      %s192 = scalar_lea.vmem %s0, %s191
      %p193 = scmp.lt.s32.totalorder %s15, 1
      %s194 = scalar_select %p193, %s15, 1
      %s195 = smul.addr %s194, 2
      %s196 = smul.addr %s195, 8
      %s197 = scalar_lea.vmem %s4, %s196
      %v199 = vld [vmem:[%s192] sm:$0xff]
      %v200 = vld [vmem:[%s192 + $0x8] sm:$0xff]
      %v201 = vld [vmem:[%s192 + $0x10] sm:$0xff]
      %v202 = vld [vmem:[%s192 + $0x18] sm:$0xff]
      %v203 = vld [vmem:[%s192 + $0x20] sm:$0xff]
      %v204 = vld [vmem:[%s192 + $0x28] sm:$0xff]
      %v205 = vld [vmem:[%s192 + $0x30] sm:$0xff]
      %v206 = vld [vmem:[%s192 + $0x38] sm:$0xff]
      %v207 = vld [vmem:[%s192 + $0x40] sm:$0xff]
      %v208 = vld [vmem:[%s192 + $0x48] sm:$0xff]
      %v209 = vld [vmem:[%s192 + $0x50] sm:$0xff]
      %v210 = vld [vmem:[%s192 + $0x58] sm:$0xff]
      %v211 = vld [vmem:[%s192 + $0x60] sm:$0xff]
      %v212 = vld [vmem:[%s192 + $0x68] sm:$0xff]
      %v213 = vld [vmem:[%s192 + $0x70] sm:$0xff]
      %v214 = vld [vmem:[%s192 + $0x78] sm:$0xff]
      %v215 = vld [vmem:[%s192 + $0x80] sm:$0xff]
      %v216 = vld [vmem:[%s192 + $0x88] sm:$0xff]
      %v217 = vld [vmem:[%s192 + $0x90] sm:$0xff]
      %v218 = vld [vmem:[%s192 + $0x98] sm:$0xff]
      %v219 = vld [vmem:[%s192 + $0xa0] sm:$0xff]
      %v220 = vld [vmem:[%s192 + $0xa8] sm:$0xff]
      %v221 = vld [vmem:[%s192 + $0xb0] sm:$0xff]
      %v222 = vld [vmem:[%s192 + $0xb8] sm:$0xff]
      %v223 = vld [vmem:[%s192 + $0xc0] sm:$0xff]
      %v224 = vld [vmem:[%s192 + $0xc8] sm:$0xff]
      %v225 = vld [vmem:[%s192 + $0xd0] sm:$0xff]
      %v226 = vld [vmem:[%s192 + $0xd8] sm:$0xff]
      %v227 = vld [vmem:[%s192 + $0xe0] sm:$0xff]
      %v228 = vld [vmem:[%s192 + $0xe8] sm:$0xff]
      %v229 = vld [vmem:[%s192 + $0xf0] sm:$0xff]
      %v230 = vld [vmem:[%s192 + $0xf8] sm:$0xff]
      %v231 = vld [vmem:[%s1] sm:$0x1]
      %v233 = vlaneseq
      %v234 = vshrl.u32 %v233, 7
      %v235 = vsub.s32 0, %v234
      %v236 = vrot.slane %v231, %v235
      %v238 = vmul.f32 %v199, %v236
      %v239 = vmul.f32 %v200, %v236
      %v240 = vmul.f32 %v201, %v236
      %v241 = vmul.f32 %v202, %v236
      %v242 = vmul.f32 %v203, %v236
      %v243 = vmul.f32 %v204, %v236
      %v244 = vmul.f32 %v205, %v236
      %v245 = vmul.f32 %v206, %v236
      %v246 = vmul.f32 %v207, %v236
      %v247 = vmul.f32 %v208, %v236
      %v248 = vmul.f32 %v209, %v236
      %v249 = vmul.f32 %v210, %v236
      %v250 = vmul.f32 %v211, %v236
      %v251 = vmul.f32 %v212, %v236
      %v252 = vmul.f32 %v213, %v236
      %v253 = vmul.f32 %v214, %v236
      %v254 = vmul.f32 %v215, %v236
      %v255 = vmul.f32 %v216, %v236
      %v256 = vmul.f32 %v217, %v236
      %v257 = vmul.f32 %v218, %v236
      %v258 = vmul.f32 %v219, %v236
      %v259 = vmul.f32 %v220, %v236
      %v260 = vmul.f32 %v221, %v236
      %v261 = vmul.f32 %v222, %v236
      %v262 = vmul.f32 %v223, %v236
      %v263 = vmul.f32 %v224, %v236
      %v264 = vmul.f32 %v225, %v236
      %v265 = vmul.f32 %v226, %v236
      %v266 = vmul.f32 %v227, %v236
      %v267 = vmul.f32 %v228, %v236
      %v268 = vmul.f32 %v229, %v236
      %v269 = vmul.f32 %v230, %v236
      %v270 = vld [vmem:[%s2] sm:$0x1]
      %v272 = vlaneseq
      %v273 = vshrl.u32 %v272, 7
      %v274 = vsub.s32 0, %v273
      %v275 = vrot.slane %v270, %v274
      %v277 = vadd.f32 %v238, %v275
      %v278 = vadd.f32 %v239, %v275
      %v279 = vadd.f32 %v240, %v275
      %v280 = vadd.f32 %v241, %v275
      %v281 = vadd.f32 %v242, %v275
      %v282 = vadd.f32 %v243, %v275
      %v283 = vadd.f32 %v244, %v275
      %v284 = vadd.f32 %v245, %v275
      %v285 = vadd.f32 %v246, %v275
      %v286 = vadd.f32 %v247, %v275
      %v287 = vadd.f32 %v248, %v275
      %v288 = vadd.f32 %v249, %v275
      %v289 = vadd.f32 %v250, %v275
      %v290 = vadd.f32 %v251, %v275
      %v291 = vadd.f32 %v252, %v275
      %v292 = vadd.f32 %v253, %v275
      %v293 = vadd.f32 %v254, %v275
      %v294 = vadd.f32 %v255, %v275
      %v295 = vadd.f32 %v256, %v275
      %v296 = vadd.f32 %v257, %v275
      %v297 = vadd.f32 %v258, %v275
      %v298 = vadd.f32 %v259, %v275
      %v299 = vadd.f32 %v260, %v275
      %v300 = vadd.f32 %v261, %v275
      %v301 = vadd.f32 %v262, %v275
      %v302 = vadd.f32 %v263, %v275
      %v303 = vadd.f32 %v264, %v275
      %v304 = vadd.f32 %v265, %v275
      %v305 = vadd.f32 %v266, %v275
      %v306 = vadd.f32 %v267, %v275
      %v307 = vadd.f32 %v268, %v275
      %v308 = vadd.f32 %v269, %v275
      %v309 = vmax.f32 %v277, 0.0
      %v310 = vmax.f32 %v278, 0.0
      %v311 = vmax.f32 %v279, 0.0
      %v312 = vmax.f32 %v280, 0.0
      %v313 = vmax.f32 %v281, 0.0
      %v314 = vmax.f32 %v282, 0.0
      %v315 = vmax.f32 %v283, 0.0
      %v316 = vmax.f32 %v284, 0.0
      %v317 = vmax.f32 %v285, 0.0
      %v318 = vmax.f32 %v286, 0.0
      %v319 = vmax.f32 %v287, 0.0
      %v320 = vmax.f32 %v288, 0.0
      %v321 = vmax.f32 %v289, 0.0
      %v322 = vmax.f32 %v290, 0.0
      %v323 = vmax.f32 %v291, 0.0
      %v324 = vmax.f32 %v292, 0.0
      %v325 = vmax.f32 %v293, 0.0
      %v326 = vmax.f32 %v294, 0.0
      %v327 = vmax.f32 %v295, 0.0
      %v328 = vmax.f32 %v296, 0.0
      %v329 = vmax.f32 %v297, 0.0
      %v330 = vmax.f32 %v298, 0.0
      %v331 = vmax.f32 %v299, 0.0
      %v332 = vmax.f32 %v300, 0.0
      %v333 = vmax.f32 %v301, 0.0
      %v334 = vmax.f32 %v302, 0.0
      %v335 = vmax.f32 %v303, 0.0
      %v336 = vmax.f32 %v304, 0.0
      %v337 = vmax.f32 %v305, 0.0
      %v338 = vmax.f32 %v306, 0.0
      %v339 = vmax.f32 %v307, 0.0
      %v340 = vmax.f32 %v308, 0.0
      %vm341 = vcmask 261120
      %342 = vst.msk [vmem:[#allocation2] sm:$0xff] %vm341, 0.0
      %343 = vst.msk [vmem:[#allocation2 + $0x8] sm:$0xff] %vm341, 0.0
      %vm344 = vcmask 254976
      %345 = vst.msk [vmem:[#allocation2 + $0x10] sm:$0x3] %vm344, 0.0
      %s346 = scalar_lea.vmem [#allocation2], 408
      %347 = vst.msk [vmem:[%s346] sm:$0xff] %vm341, 0.0
      %348 = vst.msk [vmem:[%s346 + $0x8] sm:$0xff] %vm341, 0.0
      %349 = vst.msk [vmem:[%s346 + $0x10] sm:$0x3] %vm344, 0.0
      %s350 = scalar_lea.vmem [#allocation2], 24
      %vm351 = vcmask 253952
      %352 = vst.msk [vmem:[%s350] sm:$0x1] %vm351, 0.0
      %353 = vst.msk [vmem:[%s350 + $0x18] sm:$0x1] %vm351, 0.0
      %354 = vst.msk [vmem:[%s350 + $0x30] sm:$0x1] %vm351, 0.0
      %355 = vst.msk [vmem:[%s350 + $0x48] sm:$0x1] %vm351, 0.0
      %356 = vst.msk [vmem:[%s350 + $0x60] sm:$0x1] %vm351, 0.0
      %357 = vst.msk [vmem:[%s350 + $0x78] sm:$0x1] %vm351, 0.0
      %358 = vst.msk [vmem:[%s350 + $0x90] sm:$0x1] %vm351, 0.0
      %359 = vst.msk [vmem:[%s350 + $0xa8] sm:$0x1] %vm351, 0.0
      %360 = vst.msk [vmem:[%s350 + $0xc0] sm:$0x1] %vm351, 0.0
      %361 = vst.msk [vmem:[%s350 + $0xd8] sm:$0x1] %vm351, 0.0
      %362 = vst.msk [vmem:[%s350 + $0xf0] sm:$0x1] %vm351, 0.0
      %363 = vst.msk [vmem:[%s350 + $0x108] sm:$0x1] %vm351, 0.0
      %364 = vst.msk [vmem:[%s350 + $0x120] sm:$0x1] %vm351, 0.0
      %365 = vst.msk [vmem:[%s350 + $0x138] sm:$0x1] %vm351, 0.0
      %366 = vst.msk [vmem:[%s350 + $0x150] sm:$0x1] %vm351, 0.0
      %367 = vst.msk [vmem:[%s350 + $0x168] sm:$0x1] %vm351, 0.0
      %368 = vst.msk [vmem:[%s350 + $0x11] sm:$0x1] %vm351, 0.0
      %369 = vst.msk [vmem:[%s350 + $0x29] sm:$0x1] %vm351, 0.0
      %370 = vst.msk [vmem:[%s350 + $0x41] sm:$0x1] %vm351, 0.0
      %371 = vst.msk [vmem:[%s350 + $0x59] sm:$0x1] %vm351, 0.0
      %372 = vst.msk [vmem:[%s350 + $0x71] sm:$0x1] %vm351, 0.0
      %373 = vst.msk [vmem:[%s350 + $0x89] sm:$0x1] %vm351, 0.0
      %374 = vst.msk [vmem:[%s350 + $0xa1] sm:$0x1] %vm351, 0.0
      %375 = vst.msk [vmem:[%s350 + $0xb9] sm:$0x1] %vm351, 0.0
      %376 = vst.msk [vmem:[%s350 + $0xd1] sm:$0x1] %vm351, 0.0
      %377 = vst.msk [vmem:[%s350 + $0xe9] sm:$0x1] %vm351, 0.0
      %378 = vst.msk [vmem:[%s350 + $0x101] sm:$0x1] %vm351, 0.0
      %379 = vst.msk [vmem:[%s350 + $0x119] sm:$0x1] %vm351, 0.0
      %380 = vst.msk [vmem:[%s350 + $0x131] sm:$0x1] %vm351, 0.0
      %381 = vst.msk [vmem:[%s350 + $0x149] sm:$0x1] %vm351, 0.0
      %382 = vst.msk [vmem:[%s350 + $0x161] sm:$0x1] %vm351, 0.0
      %383 = vst.msk [vmem:[%s350 + $0x179] sm:$0x1] %vm351, 0.0
      %384 = vst.msk [vmem:[%s350 + $0x1] sm:$0xff] %vm341, %v309
      %385 = vst.msk [vmem:[%s350 + $0x9] sm:$0xff] %vm341, %v310
      %386 = vst.msk [vmem:[%s350 + $0x19] sm:$0xff] %vm341, %v311
      %387 = vst.msk [vmem:[%s350 + $0x21] sm:$0xff] %vm341, %v312
      %388 = vst.msk [vmem:[%s350 + $0x31] sm:$0xff] %vm341, %v313
      %389 = vst.msk [vmem:[%s350 + $0x39] sm:$0xff] %vm341, %v314
      %390 = vst.msk [vmem:[%s350 + $0x49] sm:$0xff] %vm341, %v315
      %391 = vst.msk [vmem:[%s350 + $0x51] sm:$0xff] %vm341, %v316
      %392 = vst.msk [vmem:[%s350 + $0x61] sm:$0xff] %vm341, %v317
      %393 = vst.msk [vmem:[%s350 + $0x69] sm:$0xff] %vm341, %v318
      %394 = vst.msk [vmem:[%s350 + $0x79] sm:$0xff] %vm341, %v319
      %395 = vst.msk [vmem:[%s350 + $0x81] sm:$0xff] %vm341, %v320
      %396 = vst.msk [vmem:[%s350 + $0x91] sm:$0xff] %vm341, %v321
      %397 = vst.msk [vmem:[%s350 + $0x99] sm:$0xff] %vm341, %v322
      %398 = vst.msk [vmem:[%s350 + $0xa9] sm:$0xff] %vm341, %v323
      %399 = vst.msk [vmem:[%s350 + $0xb1] sm:$0xff] %vm341, %v324
      %400 = vst.msk [vmem:[%s350 + $0xc1] sm:$0xff] %vm341, %v325
      %401 = vst.msk [vmem:[%s350 + $0xc9] sm:$0xff] %vm341, %v326
      %402 = vst.msk [vmem:[%s350 + $0xd9] sm:$0xff] %vm341, %v327
      %403 = vst.msk [vmem:[%s350 + $0xe1] sm:$0xff] %vm341, %v328
      %404 = vst.msk [vmem:[%s350 + $0xf1] sm:$0xff] %vm341, %v329
      %405 = vst.msk [vmem:[%s350 + $0xf9] sm:$0xff] %vm341, %v330
      %406 = vst.msk [vmem:[%s350 + $0x109] sm:$0xff] %vm341, %v331
      %407 = vst.msk [vmem:[%s350 + $0x111] sm:$0xff] %vm341, %v332
      %408 = vst.msk [vmem:[%s350 + $0x121] sm:$0xff] %vm341, %v333
      %409 = vst.msk [vmem:[%s350 + $0x129] sm:$0xff] %vm341, %v334
      %410 = vst.msk [vmem:[%s350 + $0x139] sm:$0xff] %vm341, %v335
      %411 = vst.msk [vmem:[%s350 + $0x141] sm:$0xff] %vm341, %v336
      %412 = vst.msk [vmem:[%s350 + $0x151] sm:$0xff] %vm341, %v337
      %413 = vst.msk [vmem:[%s350 + $0x159] sm:$0xff] %vm341, %v338
      %414 = vst.msk [vmem:[%s350 + $0x169] sm:$0xff] %vm341, %v339
      %415 = vst.msk [vmem:[%s350 + $0x171] sm:$0xff] %vm341, %v340
      %v416 = vld [vmem:[#allocation2] sm:$0xff]
      %v417 = vld [vmem:[#allocation2 + $0x8] sm:$0xff]
      %v418 = vld [vmem:[#allocation2 + $0x18] sm:$0xff]
      %v419 = vld [vmem:[#allocation2 + $0x20] sm:$0xff]
      %v420 = vld [vmem:[#allocation2 + $0x30] sm:$0xff]
      %v421 = vld [vmem:[#allocation2 + $0x38] sm:$0xff]
      %v422 = vld [vmem:[#allocation2 + $0x48] sm:$0xff]
      %v423 = vld [vmem:[#allocation2 + $0x50] sm:$0xff]
      %v424 = vld [vmem:[#allocation2 + $0x60] sm:$0xff]
      %v425 = vld [vmem:[#allocation2 + $0x68] sm:$0xff]
      %v426 = vld [vmem:[#allocation2 + $0x78] sm:$0xff]
      %v427 = vld [vmem:[#allocation2 + $0x80] sm:$0xff]
      %v428 = vld [vmem:[#allocation2 + $0x90] sm:$0xff]
      %v429 = vld [vmem:[#allocation2 + $0x98] sm:$0xff]
      %v430 = vld [vmem:[#allocation2 + $0xa8] sm:$0xff]
      %v431 = vld [vmem:[#allocation2 + $0xb0] sm:$0xff]
      %v432 = vld [vmem:[#allocation2 + $0xc0] sm:$0xff]
      %v433 = vld [vmem:[#allocation2 + $0xc8] sm:$0xff]
      %v434 = vld [vmem:[#allocation2 + $0xd8] sm:$0xff]
      %v435 = vld [vmem:[#allocation2 + $0xe0] sm:$0xff]
      %v436 = vld [vmem:[#allocation2 + $0xf0] sm:$0xff]
      %v437 = vld [vmem:[#allocation2 + $0xf8] sm:$0xff]
      %v438 = vld [vmem:[#allocation2 + $0x108] sm:$0xff]
      %v439 = vld [vmem:[#allocation2 + $0x110] sm:$0xff]
      %v440 = vld [vmem:[#allocation2 + $0x120] sm:$0xff]
      %v441 = vld [vmem:[#allocation2 + $0x128] sm:$0xff]
      %v442 = vld [vmem:[#allocation2 + $0x138] sm:$0xff]
      %v443 = vld [vmem:[#allocation2 + $0x140] sm:$0xff]
      %v444 = vld [vmem:[#allocation2 + $0x150] sm:$0xff]
      %v445 = vld [vmem:[#allocation2 + $0x158] sm:$0xff]
      %v446 = vld [vmem:[#allocation2 + $0x168] sm:$0xff]
      %v447 = vld [vmem:[#allocation2 + $0x170] sm:$0xff]
      %v448 = vpack.c.bf16 %v417, %v416
      %v449 = vpack.c.bf16 %v419, %v418
      %v450 = vpack.c.bf16 %v421, %v420
      %v451 = vpack.c.bf16 %v423, %v422
      %v452 = vpack.c.bf16 %v425, %v424
      %v453 = vpack.c.bf16 %v427, %v426
      %v454 = vpack.c.bf16 %v429, %v428
      %v455 = vpack.c.bf16 %v431, %v430
      %v456 = vpack.c.bf16 %v433, %v432
      %v457 = vpack.c.bf16 %v435, %v434
      %v458 = vpack.c.bf16 %v437, %v436
      %v459 = vpack.c.bf16 %v439, %v438
      %v460 = vpack.c.bf16 %v441, %v440
      %v461 = vpack.c.bf16 %v443, %v442
      %v462 = vpack.c.bf16 %v445, %v444
      %v463 = vpack.c.bf16 %v447, %v446
      %464 = vst.msk [vmem:[#allocation3] sm:$0xff] %vm341, %v448
      %465 = vst.msk [vmem:[#allocation3 + $0x18] sm:$0xff] %vm341, %v449
      %466 = vst.msk [vmem:[#allocation3 + $0x30] sm:$0xff] %vm341, %v450
      %467 = vst.msk [vmem:[#allocation3 + $0x48] sm:$0xff] %vm341, %v451
      %468 = vst.msk [vmem:[#allocation3 + $0x60] sm:$0xff] %vm341, %v452
      %469 = vst.msk [vmem:[#allocation3 + $0x78] sm:$0xff] %vm341, %v453
      %470 = vst.msk [vmem:[#allocation3 + $0x90] sm:$0xff] %vm341, %v454
      %471 = vst.msk [vmem:[#allocation3 + $0xa8] sm:$0xff] %vm341, %v455
      %472 = vst.msk [vmem:[#allocation3 + $0xc0] sm:$0xff] %vm341, %v456
      %473 = vst.msk [vmem:[#allocation3 + $0xd8] sm:$0xff] %vm341, %v457
      %474 = vst.msk [vmem:[#allocation3 + $0xf0] sm:$0xff] %vm341, %v458
      %475 = vst.msk [vmem:[#allocation3 + $0x108] sm:$0xff] %vm341, %v459
      %476 = vst.msk [vmem:[#allocation3 + $0x120] sm:$0xff] %vm341, %v460
      %477 = vst.msk [vmem:[#allocation3 + $0x138] sm:$0xff] %vm341, %v461
      %478 = vst.msk [vmem:[#allocation3 + $0x150] sm:$0xff] %vm341, %v462
      %479 = vst.msk [vmem:[#allocation3 + $0x168] sm:$0xff] %vm341, %v463
      %v480 = vld [vmem:[#allocation2 + $0x1] sm:$0xff]
      %v481 = vld [vmem:[#allocation2 + $0x9] sm:$0xff]
      %v482 = vld [vmem:[#allocation2 + $0x19] sm:$0xff]
      %v483 = vld [vmem:[#allocation2 + $0x21] sm:$0xff]
      %v484 = vld [vmem:[#allocation2 + $0x31] sm:$0xff]
      %v485 = vld [vmem:[#allocation2 + $0x39] sm:$0xff]
      %v486 = vld [vmem:[#allocation2 + $0x49] sm:$0xff]
      %v487 = vld [vmem:[#allocation2 + $0x51] sm:$0xff]
      %v488 = vld [vmem:[#allocation2 + $0x61] sm:$0xff]
      %v489 = vld [vmem:[#allocation2 + $0x69] sm:$0xff]
      %v490 = vld [vmem:[#allocation2 + $0x79] sm:$0xff]
      %v491 = vld [vmem:[#allocation2 + $0x81] sm:$0xff]
      %v492 = vld [vmem:[#allocation2 + $0x91] sm:$0xff]
      %v493 = vld [vmem:[#allocation2 + $0x99] sm:$0xff]
      %v494 = vld [vmem:[#allocation2 + $0xa9] sm:$0xff]
      %v495 = vld [vmem:[#allocation2 + $0xb1] sm:$0xff]
      %v496 = vld [vmem:[#allocation2 + $0xc1] sm:$0xff]
      %v497 = vld [vmem:[#allocation2 + $0xc9] sm:$0xff]
      %v498 = vld [vmem:[#allocation2 + $0xd9] sm:$0xff]
      %v499 = vld [vmem:[#allocation2 + $0xe1] sm:$0xff]
      %v500 = vld [vmem:[#allocation2 + $0xf1] sm:$0xff]
      %v501 = vld [vmem:[#allocation2 + $0xf9] sm:$0xff]
      %v502 = vld [vmem:[#allocation2 + $0x109] sm:$0xff]
      %v503 = vld [vmem:[#allocation2 + $0x111] sm:$0xff]
      %v504 = vld [vmem:[#allocation2 + $0x121] sm:$0xff]
      %v505 = vld [vmem:[#allocation2 + $0x129] sm:$0xff]
      %v506 = vld [vmem:[#allocation2 + $0x139] sm:$0xff]
      %v507 = vld [vmem:[#allocation2 + $0x141] sm:$0xff]
      %v508 = vld [vmem:[#allocation2 + $0x151] sm:$0xff]
      %v509 = vld [vmem:[#allocation2 + $0x159] sm:$0xff]
      %v510 = vld [vmem:[#allocation2 + $0x169] sm:$0xff]
      %v511 = vld [vmem:[#allocation2 + $0x171] sm:$0xff]
      %v512 = vpack.c.bf16 %v481, %v480
      %v513 = vpack.c.bf16 %v483, %v482
      %v514 = vpack.c.bf16 %v485, %v484
      %v515 = vpack.c.bf16 %v487, %v486
      %v516 = vpack.c.bf16 %v489, %v488
      %v517 = vpack.c.bf16 %v491, %v490
      %v518 = vpack.c.bf16 %v493, %v492
      %v519 = vpack.c.bf16 %v495, %v494
      %v520 = vpack.c.bf16 %v497, %v496
      %v521 = vpack.c.bf16 %v499, %v498
      %v522 = vpack.c.bf16 %v501, %v500
      %v523 = vpack.c.bf16 %v503, %v502
      %v524 = vpack.c.bf16 %v505, %v504
      %v525 = vpack.c.bf16 %v507, %v506
      %v526 = vpack.c.bf16 %v509, %v508
      %v527 = vpack.c.bf16 %v511, %v510
      %544 = vrot.lane.b32.xlu0 %v512, 32
      %v545 = vpop.permute.xlu0 %544
      %546 = vrot.lane.b32.xlu0 %v513, 32
      %v547 = vpop.permute.xlu0 %546
      %548 = vrot.lane.b32.xlu0 %v514, 32
      %v549 = vpop.permute.xlu0 %548
      %550 = vrot.lane.b32.xlu0 %v515, 32
      %v551 = vpop.permute.xlu0 %550
      %552 = vrot.lane.b32.xlu0 %v516, 32
      %v553 = vpop.permute.xlu0 %552
      %554 = vrot.lane.b32.xlu0 %v517, 32
      %v555 = vpop.permute.xlu0 %554
      %556 = vrot.lane.b32.xlu0 %v518, 32
      %v557 = vpop.permute.xlu0 %556
      %558 = vrot.lane.b32.xlu0 %v519, 32
      %v559 = vpop.permute.xlu0 %558
      %560 = vrot.lane.b32.xlu0 %v520, 32
      %v561 = vpop.permute.xlu0 %560
      %562 = vrot.lane.b32.xlu0 %v521, 32
      %v563 = vpop.permute.xlu0 %562
      %564 = vrot.lane.b32.xlu0 %v522, 32
      %v565 = vpop.permute.xlu0 %564
      %566 = vrot.lane.b32.xlu0 %v523, 32
      %v567 = vpop.permute.xlu0 %566
      %568 = vrot.lane.b32.xlu0 %v524, 32
      %v569 = vpop.permute.xlu0 %568
      %570 = vrot.lane.b32.xlu0 %v525, 32
      %v571 = vpop.permute.xlu0 %570
      %572 = vrot.lane.b32.xlu0 %v526, 32
      %v573 = vpop.permute.xlu0 %572
      %574 = vrot.lane.b32.xlu0 %v527, 32
      %v575 = vpop.permute.xlu0 %574
      %vm592 = vcmask 523520
      %593 = vst.msk [vmem:[#allocation3] sm:$0xff] %vm592, %v545
      %594 = vst.msk [vmem:[#allocation3 + $0x18] sm:$0xff] %vm592, %v547
      %595 = vst.msk [vmem:[#allocation3 + $0x30] sm:$0xff] %vm592, %v549
      %596 = vst.msk [vmem:[#allocation3 + $0x48] sm:$0xff] %vm592, %v551
      %597 = vst.msk [vmem:[#allocation3 + $0x60] sm:$0xff] %vm592, %v553
      %598 = vst.msk [vmem:[#allocation3 + $0x78] sm:$0xff] %vm592, %v555
      %599 = vst.msk [vmem:[#allocation3 + $0x90] sm:$0xff] %vm592, %v557
      %600 = vst.msk [vmem:[#allocation3 + $0xa8] sm:$0xff] %vm592, %v559
      %601 = vst.msk [vmem:[#allocation3 + $0xc0] sm:$0xff] %vm592, %v561
      %602 = vst.msk [vmem:[#allocation3 + $0xd8] sm:$0xff] %vm592, %v563
      %603 = vst.msk [vmem:[#allocation3 + $0xf0] sm:$0xff] %vm592, %v565
      %604 = vst.msk [vmem:[#allocation3 + $0x108] sm:$0xff] %vm592, %v567
      %605 = vst.msk [vmem:[#allocation3 + $0x120] sm:$0xff] %vm592, %v569
      %606 = vst.msk [vmem:[#allocation3 + $0x138] sm:$0xff] %vm592, %v571
      %607 = vst.msk [vmem:[#allocation3 + $0x150] sm:$0xff] %vm592, %v573
      %608 = vst.msk [vmem:[#allocation3 + $0x168] sm:$0xff] %vm592, %v575
      %v609 = vld [vmem:[#allocation2 + $0x2] sm:$0xff]
      %v610 = vld [vmem:[#allocation2 + $0xa] sm:$0xff]
      %v611 = vld [vmem:[#allocation2 + $0x1a] sm:$0xff]
      %v612 = vld [vmem:[#allocation2 + $0x22] sm:$0xff]
      %v613 = vld [vmem:[#allocation2 + $0x32] sm:$0xff]
      %v614 = vld [vmem:[#allocation2 + $0x3a] sm:$0xff]
      %v615 = vld [vmem:[#allocation2 + $0x4a] sm:$0xff]
      %v616 = vld [vmem:[#allocation2 + $0x52] sm:$0xff]
      %v617 = vld [vmem:[#allocation2 + $0x62] sm:$0xff]
      %v618 = vld [vmem:[#allocation2 + $0x6a] sm:$0xff]
      %v619 = vld [vmem:[#allocation2 + $0x7a] sm:$0xff]
      %v620 = vld [vmem:[#allocation2 + $0x82] sm:$0xff]
      %v621 = vld [vmem:[#allocation2 + $0x92] sm:$0xff]
      %v622 = vld [vmem:[#allocation2 + $0x9a] sm:$0xff]
      %v623 = vld [vmem:[#allocation2 + $0xaa] sm:$0xff]
      %v624 = vld [vmem:[#allocation2 + $0xb2] sm:$0xff]
      %v625 = vld [vmem:[#allocation2 + $0xc2] sm:$0xff]
      %v626 = vld [vmem:[#allocation2 + $0xca] sm:$0xff]
      %v627 = vld [vmem:[#allocation2 + $0xda] sm:$0xff]
      %v628 = vld [vmem:[#allocation2 + $0xe2] sm:$0xff]
      %v629 = vld [vmem:[#allocation2 + $0xf2] sm:$0xff]
      %v630 = vld [vmem:[#allocation2 + $0xfa] sm:$0xff]
      %v631 = vld [vmem:[#allocation2 + $0x10a] sm:$0xff]
      %v632 = vld [vmem:[#allocation2 + $0x112] sm:$0xff]
      %v633 = vld [vmem:[#allocation2 + $0x122] sm:$0xff]
      %v634 = vld [vmem:[#allocation2 + $0x12a] sm:$0xff]
      %v635 = vld [vmem:[#allocation2 + $0x13a] sm:$0xff]
      %v636 = vld [vmem:[#allocation2 + $0x142] sm:$0xff]
      %v637 = vld [vmem:[#allocation2 + $0x152] sm:$0xff]
      %v638 = vld [vmem:[#allocation2 + $0x15a] sm:$0xff]
      %v639 = vld [vmem:[#allocation2 + $0x16a] sm:$0xff]
      %v640 = vld [vmem:[#allocation2 + $0x172] sm:$0xff]
      %v641 = vpack.c.bf16 %v610, %v609
      %v642 = vpack.c.bf16 %v612, %v611
      %v643 = vpack.c.bf16 %v614, %v613
      %v644 = vpack.c.bf16 %v616, %v615
      %v645 = vpack.c.bf16 %v618, %v617
      %v646 = vpack.c.bf16 %v620, %v619
      %v647 = vpack.c.bf16 %v622, %v621
      %v648 = vpack.c.bf16 %v624, %v623
      %v649 = vpack.c.bf16 %v626, %v625
      %v650 = vpack.c.bf16 %v628, %v627
      %v651 = vpack.c.bf16 %v630, %v629
      %v652 = vpack.c.bf16 %v632, %v631
      %v653 = vpack.c.bf16 %v634, %v633
      %v654 = vpack.c.bf16 %v636, %v635
      %v655 = vpack.c.bf16 %v638, %v637
      %v656 = vpack.c.bf16 %v640, %v639
      %673 = vrot.lane.b32.xlu0 %v641, 64
      %v674 = vpop.permute.xlu0 %673
      %675 = vrot.lane.b32.xlu0 %v642, 64
      %v676 = vpop.permute.xlu0 %675
      %677 = vrot.lane.b32.xlu0 %v643, 64
      %v678 = vpop.permute.xlu0 %677
      %679 = vrot.lane.b32.xlu0 %v644, 64
      %v680 = vpop.permute.xlu0 %679
      %681 = vrot.lane.b32.xlu0 %v645, 64
      %v682 = vpop.permute.xlu0 %681
      %683 = vrot.lane.b32.xlu0 %v646, 64
      %v684 = vpop.permute.xlu0 %683
      %685 = vrot.lane.b32.xlu0 %v647, 64
      %v686 = vpop.permute.xlu0 %685
      %687 = vrot.lane.b32.xlu0 %v648, 64
      %v688 = vpop.permute.xlu0 %687
      %689 = vrot.lane.b32.xlu0 %v649, 64
      %v690 = vpop.permute.xlu0 %689
      %691 = vrot.lane.b32.xlu0 %v650, 64
      %v692 = vpop.permute.xlu0 %691
      %693 = vrot.lane.b32.xlu0 %v651, 64
      %v694 = vpop.permute.xlu0 %693
      %695 = vrot.lane.b32.xlu0 %v652, 64
      %v696 = vpop.permute.xlu0 %695
      %697 = vrot.lane.b32.xlu0 %v653, 64
      %v698 = vpop.permute.xlu0 %697
      %699 = vrot.lane.b32.xlu0 %v654, 64
      %v700 = vpop.permute.xlu0 %699
      %701 = vrot.lane.b32.xlu0 %v655, 64
      %v702 = vpop.permute.xlu0 %701
      %703 = vrot.lane.b32.xlu0 %v656, 64
      %v704 = vpop.permute.xlu0 %703
      %vm721 = vcmask 785920
      %722 = vst.msk [vmem:[#allocation3] sm:$0xff] %vm721, %v674
      %723 = vst.msk [vmem:[#allocation3 + $0x18] sm:$0xff] %vm721, %v676
      %724 = vst.msk [vmem:[#allocation3 + $0x30] sm:$0xff] %vm721, %v678
      %725 = vst.msk [vmem:[#allocation3 + $0x48] sm:$0xff] %vm721, %v680
      %726 = vst.msk [vmem:[#allocation3 + $0x60] sm:$0xff] %vm721, %v682
      %727 = vst.msk [vmem:[#allocation3 + $0x78] sm:$0xff] %vm721, %v684
      %728 = vst.msk [vmem:[#allocation3 + $0x90] sm:$0xff] %vm721, %v686
      %729 = vst.msk [vmem:[#allocation3 + $0xa8] sm:$0xff] %vm721, %v688
      %730 = vst.msk [vmem:[#allocation3 + $0xc0] sm:$0xff] %vm721, %v690
      %731 = vst.msk [vmem:[#allocation3 + $0xd8] sm:$0xff] %vm721, %v692
      %732 = vst.msk [vmem:[#allocation3 + $0xf0] sm:$0xff] %vm721, %v694
      %733 = vst.msk [vmem:[#allocation3 + $0x108] sm:$0xff] %vm721, %v696
      %734 = vst.msk [vmem:[#allocation3 + $0x120] sm:$0xff] %vm721, %v698
      %735 = vst.msk [vmem:[#allocation3 + $0x138] sm:$0xff] %vm721, %v700
      %736 = vst.msk [vmem:[#allocation3 + $0x150] sm:$0xff] %vm721, %v702
      %737 = vst.msk [vmem:[#allocation3 + $0x168] sm:$0xff] %vm721, %v704
      %v738 = vld [vmem:[%s350] sm:$0xff]
      %v739 = vld [vmem:[%s350 + $0x8] sm:$0xff]
      %v740 = vld [vmem:[%s350 + $0x18] sm:$0xff]
      %v741 = vld [vmem:[%s350 + $0x20] sm:$0xff]
      %v742 = vld [vmem:[%s350 + $0x30] sm:$0xff]
      %v743 = vld [vmem:[%s350 + $0x38] sm:$0xff]
      %v744 = vld [vmem:[%s350 + $0x48] sm:$0xff]
      %v745 = vld [vmem:[%s350 + $0x50] sm:$0xff]
      %v746 = vld [vmem:[%s350 + $0x60] sm:$0xff]
      %v747 = vld [vmem:[%s350 + $0x68] sm:$0xff]
      %v748 = vld [vmem:[%s350 + $0x78] sm:$0xff]
      %v749 = vld [vmem:[%s350 + $0x80] sm:$0xff]
      %v750 = vld [vmem:[%s350 + $0x90] sm:$0xff]
      %v751 = vld [vmem:[%s350 + $0x98] sm:$0xff]
      %v752 = vld [vmem:[%s350 + $0xa8] sm:$0xff]
      %v753 = vld [vmem:[%s350 + $0xb0] sm:$0xff]
      %v754 = vld [vmem:[%s350 + $0xc0] sm:$0xff]
      %v755 = vld [vmem:[%s350 + $0xc8] sm:$0xff]
      %v756 = vld [vmem:[%s350 + $0xd8] sm:$0xff]
      %v757 = vld [vmem:[%s350 + $0xe0] sm:$0xff]
      %v758 = vld [vmem:[%s350 + $0xf0] sm:$0xff]
      %v759 = vld [vmem:[%s350 + $0xf8] sm:$0xff]
      %v760 = vld [vmem:[%s350 + $0x108] sm:$0xff]
      %v761 = vld [vmem:[%s350 + $0x110] sm:$0xff]
      %v762 = vld [vmem:[%s350 + $0x120] sm:$0xff]
      %v763 = vld [vmem:[%s350 + $0x128] sm:$0xff]
      %v764 = vld [vmem:[%s350 + $0x138] sm:$0xff]
      %v765 = vld [vmem:[%s350 + $0x140] sm:$0xff]
      %v766 = vld [vmem:[%s350 + $0x150] sm:$0xff]
      %v767 = vld [vmem:[%s350 + $0x158] sm:$0xff]
      %v768 = vld [vmem:[%s350 + $0x168] sm:$0xff]
      %v769 = vld [vmem:[%s350 + $0x170] sm:$0xff]
      %v770 = vpack.c.bf16 %v739, %v738
      %v771 = vpack.c.bf16 %v741, %v740
      %v772 = vpack.c.bf16 %v743, %v742
      %v773 = vpack.c.bf16 %v745, %v744
      %v774 = vpack.c.bf16 %v747, %v746
      %v775 = vpack.c.bf16 %v749, %v748
      %v776 = vpack.c.bf16 %v751, %v750
      %v777 = vpack.c.bf16 %v753, %v752
      %v778 = vpack.c.bf16 %v755, %v754
      %v779 = vpack.c.bf16 %v757, %v756
      %v780 = vpack.c.bf16 %v759, %v758
      %v781 = vpack.c.bf16 %v761, %v760
      %v782 = vpack.c.bf16 %v763, %v762
      %v783 = vpack.c.bf16 %v765, %v764
      %v784 = vpack.c.bf16 %v767, %v766
      %v785 = vpack.c.bf16 %v769, %v768
      %802 = vrot.lane.b32.xlu0 %v770, 96
      %v803 = vpop.permute.xlu0 %802
      %804 = vrot.lane.b32.xlu0 %v771, 96
      %v805 = vpop.permute.xlu0 %804
      %806 = vrot.lane.b32.xlu0 %v772, 96
      %v807 = vpop.permute.xlu0 %806
      %808 = vrot.lane.b32.xlu0 %v773, 96
      %v809 = vpop.permute.xlu0 %808
      %810 = vrot.lane.b32.xlu0 %v774, 96
      %v811 = vpop.permute.xlu0 %810
      %812 = vrot.lane.b32.xlu0 %v775, 96
      %v813 = vpop.permute.xlu0 %812
      %814 = vrot.lane.b32.xlu0 %v776, 96
      %v815 = vpop.permute.xlu0 %814
      %816 = vrot.lane.b32.xlu0 %v777, 96
      %v817 = vpop.permute.xlu0 %816
      %818 = vrot.lane.b32.xlu0 %v778, 96
      %v819 = vpop.permute.xlu0 %818
      %820 = vrot.lane.b32.xlu0 %v779, 96
      %v821 = vpop.permute.xlu0 %820
      %822 = vrot.lane.b32.xlu0 %v780, 96
      %v823 = vpop.permute.xlu0 %822
      %824 = vrot.lane.b32.xlu0 %v781, 96
      %v825 = vpop.permute.xlu0 %824
      %826 = vrot.lane.b32.xlu0 %v782, 96
      %v827 = vpop.permute.xlu0 %826
      %828 = vrot.lane.b32.xlu0 %v783, 96
      %v829 = vpop.permute.xlu0 %828
      %830 = vrot.lane.b32.xlu0 %v784, 96
      %v831 = vpop.permute.xlu0 %830
      %832 = vrot.lane.b32.xlu0 %v785, 96
      %v833 = vpop.permute.xlu0 %832
      %vm850 = vcmask 1048320
      %851 = vst.msk [vmem:[#allocation3] sm:$0xff] %vm850, %v803
      %852 = vst.msk [vmem:[#allocation3 + $0x18] sm:$0xff] %vm850, %v805
      %853 = vst.msk [vmem:[#allocation3 + $0x30] sm:$0xff] %vm850, %v807
      %854 = vst.msk [vmem:[#allocation3 + $0x48] sm:$0xff] %vm850, %v809
      %855 = vst.msk [vmem:[#allocation3 + $0x60] sm:$0xff] %vm850, %v811
      %856 = vst.msk [vmem:[#allocation3 + $0x78] sm:$0xff] %vm850, %v813
      %857 = vst.msk [vmem:[#allocation3 + $0x90] sm:$0xff] %vm850, %v815
      %858 = vst.msk [vmem:[#allocation3 + $0xa8] sm:$0xff] %vm850, %v817
      %859 = vst.msk [vmem:[#allocation3 + $0xc0] sm:$0xff] %vm850, %v819
      %860 = vst.msk [vmem:[#allocation3 + $0xd8] sm:$0xff] %vm850, %v821
      %861 = vst.msk [vmem:[#allocation3 + $0xf0] sm:$0xff] %vm850, %v823
      %862 = vst.msk [vmem:[#allocation3 + $0x108] sm:$0xff] %vm850, %v825
      %863 = vst.msk [vmem:[#allocation3 + $0x120] sm:$0xff] %vm850, %v827
      %864 = vst.msk [vmem:[#allocation3 + $0x138] sm:$0xff] %vm850, %v829
      %865 = vst.msk [vmem:[#allocation3 + $0x150] sm:$0xff] %vm850, %v831
      %866 = vst.msk [vmem:[#allocation3 + $0x168] sm:$0xff] %vm850, %v833
      %v867 = vld [vmem:[%s350 + $0x1] sm:$0xff]
      %v868 = vld [vmem:[%s350 + $0x9] sm:$0xff]
      %v869 = vld [vmem:[%s350 + $0x19] sm:$0xff]
      %v870 = vld [vmem:[%s350 + $0x21] sm:$0xff]
      %v871 = vld [vmem:[%s350 + $0x31] sm:$0xff]
      %v872 = vld [vmem:[%s350 + $0x39] sm:$0xff]
      %v873 = vld [vmem:[%s350 + $0x49] sm:$0xff]
      %v874 = vld [vmem:[%s350 + $0x51] sm:$0xff]
      %v875 = vld [vmem:[%s350 + $0x61] sm:$0xff]
      %v876 = vld [vmem:[%s350 + $0x69] sm:$0xff]
      %v877 = vld [vmem:[%s350 + $0x79] sm:$0xff]
      %v878 = vld [vmem:[%s350 + $0x81] sm:$0xff]
      %v879 = vld [vmem:[%s350 + $0x91] sm:$0xff]
      %v880 = vld [vmem:[%s350 + $0x99] sm:$0xff]
      %v881 = vld [vmem:[%s350 + $0xa9] sm:$0xff]
      %v882 = vld [vmem:[%s350 + $0xb1] sm:$0xff]
      %v883 = vld [vmem:[%s350 + $0xc1] sm:$0xff]
      %v884 = vld [vmem:[%s350 + $0xc9] sm:$0xff]
      %v885 = vld [vmem:[%s350 + $0xd9] sm:$0xff]
      %v886 = vld [vmem:[%s350 + $0xe1] sm:$0xff]
      %v887 = vld [vmem:[%s350 + $0xf1] sm:$0xff]
      %v888 = vld [vmem:[%s350 + $0xf9] sm:$0xff]
      %v889 = vld [vmem:[%s350 + $0x109] sm:$0xff]
      %v890 = vld [vmem:[%s350 + $0x111] sm:$0xff]
      %v891 = vld [vmem:[%s350 + $0x121] sm:$0xff]
      %v892 = vld [vmem:[%s350 + $0x129] sm:$0xff]
      %v893 = vld [vmem:[%s350 + $0x139] sm:$0xff]
      %v894 = vld [vmem:[%s350 + $0x141] sm:$0xff]
      %v895 = vld [vmem:[%s350 + $0x151] sm:$0xff]
      %v896 = vld [vmem:[%s350 + $0x159] sm:$0xff]
      %v897 = vld [vmem:[%s350 + $0x169] sm:$0xff]
      %v898 = vld [vmem:[%s350 + $0x171] sm:$0xff]
      %v899 = vpack.c.bf16 %v868, %v867
      %v900 = vpack.c.bf16 %v870, %v869
      %v901 = vpack.c.bf16 %v872, %v871
      %v902 = vpack.c.bf16 %v874, %v873
      %v903 = vpack.c.bf16 %v876, %v875
      %v904 = vpack.c.bf16 %v878, %v877
      %v905 = vpack.c.bf16 %v880, %v879
      %v906 = vpack.c.bf16 %v882, %v881
      %v907 = vpack.c.bf16 %v884, %v883
      %v908 = vpack.c.bf16 %v886, %v885
      %v909 = vpack.c.bf16 %v888, %v887
      %v910 = vpack.c.bf16 %v890, %v889
      %v911 = vpack.c.bf16 %v892, %v891
      %v912 = vpack.c.bf16 %v894, %v893
      %v913 = vpack.c.bf16 %v896, %v895
      %v914 = vpack.c.bf16 %v898, %v897
      %915 = vst.msk [vmem:[#allocation3 + $0x8] sm:$0xff] %vm341, %v899
      %916 = vst.msk [vmem:[#allocation3 + $0x20] sm:$0xff] %vm341, %v900
      %917 = vst.msk [vmem:[#allocation3 + $0x38] sm:$0xff] %vm341, %v901
      %918 = vst.msk [vmem:[#allocation3 + $0x50] sm:$0xff] %vm341, %v902
      %919 = vst.msk [vmem:[#allocation3 + $0x68] sm:$0xff] %vm341, %v903
      %920 = vst.msk [vmem:[#allocation3 + $0x80] sm:$0xff] %vm341, %v904
      %921 = vst.msk [vmem:[#allocation3 + $0x98] sm:$0xff] %vm341, %v905
      %922 = vst.msk [vmem:[#allocation3 + $0xb0] sm:$0xff] %vm341, %v906
      %923 = vst.msk [vmem:[#allocation3 + $0xc8] sm:$0xff] %vm341, %v907
      %924 = vst.msk [vmem:[#allocation3 + $0xe0] sm:$0xff] %vm341, %v908
      %925 = vst.msk [vmem:[#allocation3 + $0xf8] sm:$0xff] %vm341, %v909
      %926 = vst.msk [vmem:[#allocation3 + $0x110] sm:$0xff] %vm341, %v910
      %927 = vst.msk [vmem:[#allocation3 + $0x128] sm:$0xff] %vm341, %v911
      %928 = vst.msk [vmem:[#allocation3 + $0x140] sm:$0xff] %vm341, %v912
      %929 = vst.msk [vmem:[#allocation3 + $0x158] sm:$0xff] %vm341, %v913
      %930 = vst.msk [vmem:[#allocation3 + $0x170] sm:$0xff] %vm341, %v914
      %v931 = vld [vmem:[%s350 + $0x2] sm:$0xff]
      %v932 = vld [vmem:[%s350 + $0xa] sm:$0xff]
      %v933 = vld [vmem:[%s350 + $0x1a] sm:$0xff]
      %v934 = vld [vmem:[%s350 + $0x22] sm:$0xff]
      %v935 = vld [vmem:[%s350 + $0x32] sm:$0xff]
      %v936 = vld [vmem:[%s350 + $0x3a] sm:$0xff]
      %v937 = vld [vmem:[%s350 + $0x4a] sm:$0xff]
      %v938 = vld [vmem:[%s350 + $0x52] sm:$0xff]
      %v939 = vld [vmem:[%s350 + $0x62] sm:$0xff]
      %v940 = vld [vmem:[%s350 + $0x6a] sm:$0xff]
      %v941 = vld [vmem:[%s350 + $0x7a] sm:$0xff]
      %v942 = vld [vmem:[%s350 + $0x82] sm:$0xff]
      %v943 = vld [vmem:[%s350 + $0x92] sm:$0xff]
      %v944 = vld [vmem:[%s350 + $0x9a] sm:$0xff]
      %v945 = vld [vmem:[%s350 + $0xaa] sm:$0xff]
      %v946 = vld [vmem:[%s350 + $0xb2] sm:$0xff]
      %v947 = vld [vmem:[%s350 + $0xc2] sm:$0xff]
      %v948 = vld [vmem:[%s350 + $0xca] sm:$0xff]
      %v949 = vld [vmem:[%s350 + $0xda] sm:$0xff]
      %v950 = vld [vmem:[%s350 + $0xe2] sm:$0xff]
      %v951 = vld [vmem:[%s350 + $0xf2] sm:$0xff]
      %v952 = vld [vmem:[%s350 + $0xfa] sm:$0xff]
      %v953 = vld [vmem:[%s350 + $0x10a] sm:$0xff]
      %v954 = vld [vmem:[%s350 + $0x112] sm:$0xff]
      %v955 = vld [vmem:[%s350 + $0x122] sm:$0xff]
      %v956 = vld [vmem:[%s350 + $0x12a] sm:$0xff]
      %v957 = vld [vmem:[%s350 + $0x13a] sm:$0xff]
      %v958 = vld [vmem:[%s350 + $0x142] sm:$0xff]
      %v959 = vld [vmem:[%s350 + $0x152] sm:$0xff]
      %v960 = vld [vmem:[%s350 + $0x15a] sm:$0xff]
      %v961 = vld [vmem:[%s350 + $0x16a] sm:$0xff]
      %v962 = vld [vmem:[%s350 + $0x172] sm:$0xff]
      %v963 = vpack.c.bf16 %v932, %v931
      %v964 = vpack.c.bf16 %v934, %v933
      %v965 = vpack.c.bf16 %v936, %v935
      %v966 = vpack.c.bf16 %v938, %v937
      %v967 = vpack.c.bf16 %v940, %v939
      %v968 = vpack.c.bf16 %v942, %v941
      %v969 = vpack.c.bf16 %v944, %v943
      %v970 = vpack.c.bf16 %v946, %v945
      %v971 = vpack.c.bf16 %v948, %v947
      %v972 = vpack.c.bf16 %v950, %v949
      %v973 = vpack.c.bf16 %v952, %v951
      %v974 = vpack.c.bf16 %v954, %v953
      %v975 = vpack.c.bf16 %v956, %v955
      %v976 = vpack.c.bf16 %v958, %v957
      %v977 = vpack.c.bf16 %v960, %v959
      %v978 = vpack.c.bf16 %v962, %v961
      %995 = vrot.lane.b32.xlu0 %v963, 32
      %v996 = vpop.permute.xlu0 %995
      %997 = vrot.lane.b32.xlu0 %v964, 32
      %v998 = vpop.permute.xlu0 %997
      %999 = vrot.lane.b32.xlu0 %v965, 32
      %v1000 = vpop.permute.xlu0 %999
      %1001 = vrot.lane.b32.xlu0 %v966, 32
      %v1002 = vpop.permute.xlu0 %1001
      %1003 = vrot.lane.b32.xlu0 %v967, 32
      %v1004 = vpop.permute.xlu0 %1003
      %1005 = vrot.lane.b32.xlu0 %v968, 32
      %v1006 = vpop.permute.xlu0 %1005
      %1007 = vrot.lane.b32.xlu0 %v969, 32
      %v1008 = vpop.permute.xlu0 %1007
      %1009 = vrot.lane.b32.xlu0 %v970, 32
      %v1010 = vpop.permute.xlu0 %1009
      %1011 = vrot.lane.b32.xlu0 %v971, 32
      %v1012 = vpop.permute.xlu0 %1011
      %1013 = vrot.lane.b32.xlu0 %v972, 32
      %v1014 = vpop.permute.xlu0 %1013
      %1015 = vrot.lane.b32.xlu0 %v973, 32
      %v1016 = vpop.permute.xlu0 %1015
      %1017 = vrot.lane.b32.xlu0 %v974, 32
      %v1018 = vpop.permute.xlu0 %1017
      %1019 = vrot.lane.b32.xlu0 %v975, 32
      %v1020 = vpop.permute.xlu0 %1019
      %1021 = vrot.lane.b32.xlu0 %v976, 32
      %v1022 = vpop.permute.xlu0 %1021
      %1023 = vrot.lane.b32.xlu0 %v977, 32
      %v1024 = vpop.permute.xlu0 %1023
      %1025 = vrot.lane.b32.xlu0 %v978, 32
      %v1026 = vpop.permute.xlu0 %1025
      %1043 = vst.msk [vmem:[#allocation3 + $0x8] sm:$0xff] %vm592, %v996
      %1044 = vst.msk [vmem:[#allocation3 + $0x20] sm:$0xff] %vm592, %v998
      %1045 = vst.msk [vmem:[#allocation3 + $0x38] sm:$0xff] %vm592, %v1000
      %1046 = vst.msk [vmem:[#allocation3 + $0x50] sm:$0xff] %vm592, %v1002
      %1047 = vst.msk [vmem:[#allocation3 + $0x68] sm:$0xff] %vm592, %v1004
      %1048 = vst.msk [vmem:[#allocation3 + $0x80] sm:$0xff] %vm592, %v1006
      %1049 = vst.msk [vmem:[#allocation3 + $0x98] sm:$0xff] %vm592, %v1008
      %1050 = vst.msk [vmem:[#allocation3 + $0xb0] sm:$0xff] %vm592, %v1010
      %1051 = vst.msk [vmem:[#allocation3 + $0xc8] sm:$0xff] %vm592, %v1012
      %1052 = vst.msk [vmem:[#allocation3 + $0xe0] sm:$0xff] %vm592, %v1014
      %1053 = vst.msk [vmem:[#allocation3 + $0xf8] sm:$0xff] %vm592, %v1016
      %1054 = vst.msk [vmem:[#allocation3 + $0x110] sm:$0xff] %vm592, %v1018
      %1055 = vst.msk [vmem:[#allocation3 + $0x128] sm:$0xff] %vm592, %v1020
      %1056 = vst.msk [vmem:[#allocation3 + $0x140] sm:$0xff] %vm592, %v1022
      %1057 = vst.msk [vmem:[#allocation3 + $0x158] sm:$0xff] %vm592, %v1024
      %1058 = vst.msk [vmem:[#allocation3 + $0x170] sm:$0xff] %vm592, %v1026
      %s1059 = scalar_lea.vmem [#allocation2], 48
      %v1060 = vld [vmem:[%s1059] sm:$0xff]
      %v1061 = vld [vmem:[%s1059 + $0x8] sm:$0xff]
      %v1062 = vld [vmem:[%s1059 + $0x18] sm:$0xff]
      %v1063 = vld [vmem:[%s1059 + $0x20] sm:$0xff]
      %v1064 = vld [vmem:[%s1059 + $0x30] sm:$0xff]
      %v1065 = vld [vmem:[%s1059 + $0x38] sm:$0xff]
      %v1066 = vld [vmem:[%s1059 + $0x48] sm:$0xff]
      %v1067 = vld [vmem:[%s1059 + $0x50] sm:$0xff]
      %v1068 = vld [vmem:[%s1059 + $0x60] sm:$0xff]
      %v1069 = vld [vmem:[%s1059 + $0x68] sm:$0xff]
      %v1070 = vld [vmem:[%s1059 + $0x78] sm:$0xff]
      %v1071 = vld [vmem:[%s1059 + $0x80] sm:$0xff]
      %v1072 = vld [vmem:[%s1059 + $0x90] sm:$0xff]
      %v1073 = vld [vmem:[%s1059 + $0x98] sm:$0xff]
      %v1074 = vld [vmem:[%s1059 + $0xa8] sm:$0xff]
      %v1075 = vld [vmem:[%s1059 + $0xb0] sm:$0xff]
      %v1076 = vld [vmem:[%s1059 + $0xc0] sm:$0xff]
      %v1077 = vld [vmem:[%s1059 + $0xc8] sm:$0xff]
      %v1078 = vld [vmem:[%s1059 + $0xd8] sm:$0xff]
      %v1079 = vld [vmem:[%s1059 + $0xe0] sm:$0xff]
      %v1080 = vld [vmem:[%s1059 + $0xf0] sm:$0xff]
      %v1081 = vld [vmem:[%s1059 + $0xf8] sm:$0xff]
      %v1082 = vld [vmem:[%s1059 + $0x108] sm:$0xff]
      %v1083 = vld [vmem:[%s1059 + $0x110] sm:$0xff]
      %v1084 = vld [vmem:[%s1059 + $0x120] sm:$0xff]
      %v1085 = vld [vmem:[%s1059 + $0x128] sm:$0xff]
      %v1086 = vld [vmem:[%s1059 + $0x138] sm:$0xff]
      %v1087 = vld [vmem:[%s1059 + $0x140] sm:$0xff]
      %v1088 = vld [vmem:[%s1059 + $0x150] sm:$0xff]
      %v1089 = vld [vmem:[%s1059 + $0x158] sm:$0xff]
      %v1090 = vld [vmem:[%s1059 + $0x168] sm:$0xff]
      %v1091 = vld [vmem:[%s1059 + $0x170] sm:$0xff]
      %v1092 = vpack.c.bf16 %v1061, %v1060
      %v1093 = vpack.c.bf16 %v1063, %v1062
      %v1094 = vpack.c.bf16 %v1065, %v1064
      %v1095 = vpack.c.bf16 %v1067, %v1066
      %v1096 = vpack.c.bf16 %v1069, %v1068
      %v1097 = vpack.c.bf16 %v1071, %v1070
      %v1098 = vpack.c.bf16 %v1073, %v1072
      %v1099 = vpack.c.bf16 %v1075, %v1074
      %v1100 = vpack.c.bf16 %v1077, %v1076
      %v1101 = vpack.c.bf16 %v1079, %v1078
      %v1102 = vpack.c.bf16 %v1081, %v1080
      %v1103 = vpack.c.bf16 %v1083, %v1082
      %v1104 = vpack.c.bf16 %v1085, %v1084
      %v1105 = vpack.c.bf16 %v1087, %v1086
      %v1106 = vpack.c.bf16 %v1089, %v1088
      %v1107 = vpack.c.bf16 %v1091, %v1090
      %1124 = vrot.lane.b32.xlu0 %v1092, 64
      %v1125 = vpop.permute.xlu0 %1124
      %1126 = vrot.lane.b32.xlu0 %v1093, 64
      %v1127 = vpop.permute.xlu0 %1126
      %1128 = vrot.lane.b32.xlu0 %v1094, 64
      %v1129 = vpop.permute.xlu0 %1128
      %1130 = vrot.lane.b32.xlu0 %v1095, 64
      %v1131 = vpop.permute.xlu0 %1130
      %1132 = vrot.lane.b32.xlu0 %v1096, 64
      %v1133 = vpop.permute.xlu0 %1132
      %1134 = vrot.lane.b32.xlu0 %v1097, 64
      %v1135 = vpop.permute.xlu0 %1134
      %1136 = vrot.lane.b32.xlu0 %v1098, 64
      %v1137 = vpop.permute.xlu0 %1136
      %1138 = vrot.lane.b32.xlu0 %v1099, 64
      %v1139 = vpop.permute.xlu0 %1138
      %1140 = vrot.lane.b32.xlu0 %v1100, 64
      %v1141 = vpop.permute.xlu0 %1140
      %1142 = vrot.lane.b32.xlu0 %v1101, 64
      %v1143 = vpop.permute.xlu0 %1142
      %1144 = vrot.lane.b32.xlu0 %v1102, 64
      %v1145 = vpop.permute.xlu0 %1144
      %1146 = vrot.lane.b32.xlu0 %v1103, 64
      %v1147 = vpop.permute.xlu0 %1146
      %1148 = vrot.lane.b32.xlu0 %v1104, 64
      %v1149 = vpop.permute.xlu0 %1148
      %1150 = vrot.lane.b32.xlu0 %v1105, 64
      %v1151 = vpop.permute.xlu0 %1150
      %1152 = vrot.lane.b32.xlu0 %v1106, 64
      %v1153 = vpop.permute.xlu0 %1152
      %1154 = vrot.lane.b32.xlu0 %v1107, 64
      %v1155 = vpop.permute.xlu0 %1154
      %1172 = vst.msk [vmem:[#allocation3 + $0x8] sm:$0xff] %vm721, %v1125
      %1173 = vst.msk [vmem:[#allocation3 + $0x20] sm:$0xff] %vm721, %v1127
      %1174 = vst.msk [vmem:[#allocation3 + $0x38] sm:$0xff] %vm721, %v1129
      %1175 = vst.msk [vmem:[#allocation3 + $0x50] sm:$0xff] %vm721, %v1131
      %1176 = vst.msk [vmem:[#allocation3 + $0x68] sm:$0xff] %vm721, %v1133
      %1177 = vst.msk [vmem:[#allocation3 + $0x80] sm:$0xff] %vm721, %v1135
      %1178 = vst.msk [vmem:[#allocation3 + $0x98] sm:$0xff] %vm721, %v1137
      %1179 = vst.msk [vmem:[#allocation3 + $0xb0] sm:$0xff] %vm721, %v1139
      %1180 = vst.msk [vmem:[#allocation3 + $0xc8] sm:$0xff] %vm721, %v1141
      %1181 = vst.msk [vmem:[#allocation3 + $0xe0] sm:$0xff] %vm721, %v1143
      %1182 = vst.msk [vmem:[#allocation3 + $0xf8] sm:$0xff] %vm721, %v1145
      %1183 = vst.msk [vmem:[#allocation3 + $0x110] sm:$0xff] %vm721, %v1147
      %1184 = vst.msk [vmem:[#allocation3 + $0x128] sm:$0xff] %vm721, %v1149
      %1185 = vst.msk [vmem:[#allocation3 + $0x140] sm:$0xff] %vm721, %v1151
      %1186 = vst.msk [vmem:[#allocation3 + $0x158] sm:$0xff] %vm721, %v1153
      %1187 = vst.msk [vmem:[#allocation3 + $0x170] sm:$0xff] %vm721, %v1155
      %v1188 = vld [vmem:[%s1059 + $0x1] sm:$0xff]
      %v1189 = vld [vmem:[%s1059 + $0x9] sm:$0xff]
      %v1190 = vld [vmem:[%s1059 + $0x19] sm:$0xff]
      %v1191 = vld [vmem:[%s1059 + $0x21] sm:$0xff]
      %v1192 = vld [vmem:[%s1059 + $0x31] sm:$0xff]
      %v1193 = vld [vmem:[%s1059 + $0x39] sm:$0xff]
      %v1194 = vld [vmem:[%s1059 + $0x49] sm:$0xff]
      %v1195 = vld [vmem:[%s1059 + $0x51] sm:$0xff]
      %v1196 = vld [vmem:[%s1059 + $0x61] sm:$0xff]
      %v1197 = vld [vmem:[%s1059 + $0x69] sm:$0xff]
      %v1198 = vld [vmem:[%s1059 + $0x79] sm:$0xff]
      %v1199 = vld [vmem:[%s1059 + $0x81] sm:$0xff]
      %v1200 = vld [vmem:[%s1059 + $0x91] sm:$0xff]
      %v1201 = vld [vmem:[%s1059 + $0x99] sm:$0xff]
      %v1202 = vld [vmem:[%s1059 + $0xa9] sm:$0xff]
      %v1203 = vld [vmem:[%s1059 + $0xb1] sm:$0xff]
      %v1204 = vld [vmem:[%s1059 + $0xc1] sm:$0xff]
      %v1205 = vld [vmem:[%s1059 + $0xc9] sm:$0xff]
      %v1206 = vld [vmem:[%s1059 + $0xd9] sm:$0xff]
      %v1207 = vld [vmem:[%s1059 + $0xe1] sm:$0xff]
      %v1208 = vld [vmem:[%s1059 + $0xf1] sm:$0xff]
      %v1209 = vld [vmem:[%s1059 + $0xf9] sm:$0xff]
      %v1210 = vld [vmem:[%s1059 + $0x109] sm:$0xff]
      %v1211 = vld [vmem:[%s1059 + $0x111] sm:$0xff]
      %v1212 = vld [vmem:[%s1059 + $0x121] sm:$0xff]
      %v1213 = vld [vmem:[%s1059 + $0x129] sm:$0xff]
      %v1214 = vld [vmem:[%s1059 + $0x139] sm:$0xff]
      %v1215 = vld [vmem:[%s1059 + $0x141] sm:$0xff]
      %v1216 = vld [vmem:[%s1059 + $0x151] sm:$0xff]
      %v1217 = vld [vmem:[%s1059 + $0x159] sm:$0xff]
      %v1218 = vld [vmem:[%s1059 + $0x169] sm:$0xff]
      %v1219 = vld [vmem:[%s1059 + $0x171] sm:$0xff]
      %v1220 = vpack.c.bf16 %v1189, %v1188
      %v1221 = vpack.c.bf16 %v1191, %v1190
      %v1222 = vpack.c.bf16 %v1193, %v1192
      %v1223 = vpack.c.bf16 %v1195, %v1194
      %v1224 = vpack.c.bf16 %v1197, %v1196
      %v1225 = vpack.c.bf16 %v1199, %v1198
      %v1226 = vpack.c.bf16 %v1201, %v1200
      %v1227 = vpack.c.bf16 %v1203, %v1202
      %v1228 = vpack.c.bf16 %v1205, %v1204
      %v1229 = vpack.c.bf16 %v1207, %v1206
      %v1230 = vpack.c.bf16 %v1209, %v1208
      %v1231 = vpack.c.bf16 %v1211, %v1210
      %v1232 = vpack.c.bf16 %v1213, %v1212
      %v1233 = vpack.c.bf16 %v1215, %v1214
      %v1234 = vpack.c.bf16 %v1217, %v1216
      %v1235 = vpack.c.bf16 %v1219, %v1218
      %1252 = vrot.lane.b32.xlu0 %v1220, 96
      %v1253 = vpop.permute.xlu0 %1252
      %1254 = vrot.lane.b32.xlu0 %v1221, 96
      %v1255 = vpop.permute.xlu0 %1254
      %1256 = vrot.lane.b32.xlu0 %v1222, 96
      %v1257 = vpop.permute.xlu0 %1256
      %1258 = vrot.lane.b32.xlu0 %v1223, 96
      %v1259 = vpop.permute.xlu0 %1258
      %1260 = vrot.lane.b32.xlu0 %v1224, 96
      %v1261 = vpop.permute.xlu0 %1260
      %1262 = vrot.lane.b32.xlu0 %v1225, 96
      %v1263 = vpop.permute.xlu0 %1262
      %1264 = vrot.lane.b32.xlu0 %v1226, 96
      %v1265 = vpop.permute.xlu0 %1264
      %1266 = vrot.lane.b32.xlu0 %v1227, 96
      %v1267 = vpop.permute.xlu0 %1266
      %1268 = vrot.lane.b32.xlu0 %v1228, 96
      %v1269 = vpop.permute.xlu0 %1268
      %1270 = vrot.lane.b32.xlu0 %v1229, 96
      %v1271 = vpop.permute.xlu0 %1270
      %1272 = vrot.lane.b32.xlu0 %v1230, 96
      %v1273 = vpop.permute.xlu0 %1272
      %1274 = vrot.lane.b32.xlu0 %v1231, 96
      %v1275 = vpop.permute.xlu0 %1274
      %1276 = vrot.lane.b32.xlu0 %v1232, 96
      %v1277 = vpop.permute.xlu0 %1276
      %1278 = vrot.lane.b32.xlu0 %v1233, 96
      %v1279 = vpop.permute.xlu0 %1278
      %1280 = vrot.lane.b32.xlu0 %v1234, 96
      %v1281 = vpop.permute.xlu0 %1280
      %1282 = vrot.lane.b32.xlu0 %v1235, 96
      %v1283 = vpop.permute.xlu0 %1282
      %1300 = vst.msk [vmem:[#allocation3 + $0x8] sm:$0xff] %vm850, %v1253
      %1301 = vst.msk [vmem:[#allocation3 + $0x20] sm:$0xff] %vm850, %v1255
      %1302 = vst.msk [vmem:[#allocation3 + $0x38] sm:$0xff] %vm850, %v1257
      %1303 = vst.msk [vmem:[#allocation3 + $0x50] sm:$0xff] %vm850, %v1259
      %1304 = vst.msk [vmem:[#allocation3 + $0x68] sm:$0xff] %vm850, %v1261
      %1305 = vst.msk [vmem:[#allocation3 + $0x80] sm:$0xff] %vm850, %v1263
      %1306 = vst.msk [vmem:[#allocation3 + $0x98] sm:$0xff] %vm850, %v1265
      %1307 = vst.msk [vmem:[#allocation3 + $0xb0] sm:$0xff] %vm850, %v1267
      %1308 = vst.msk [vmem:[#allocation3 + $0xc8] sm:$0xff] %vm850, %v1269
      %1309 = vst.msk [vmem:[#allocation3 + $0xe0] sm:$0xff] %vm850, %v1271
      %1310 = vst.msk [vmem:[#allocation3 + $0xf8] sm:$0xff] %vm850, %v1273
      %1311 = vst.msk [vmem:[#allocation3 + $0x110] sm:$0xff] %vm850, %v1275
      %1312 = vst.msk [vmem:[#allocation3 + $0x128] sm:$0xff] %vm850, %v1277
      %1313 = vst.msk [vmem:[#allocation3 + $0x140] sm:$0xff] %vm850, %v1279
      %1314 = vst.msk [vmem:[#allocation3 + $0x158] sm:$0xff] %vm850, %v1281
      %1315 = vst.msk [vmem:[#allocation3 + $0x170] sm:$0xff] %vm850, %v1283
      %v1316 = vld [vmem:[%s1059 + $0x2] sm:$0xff]
      %v1317 = vld [vmem:[%s1059 + $0xa] sm:$0xff]
      %v1318 = vld [vmem:[%s1059 + $0x1a] sm:$0xff]
      %v1319 = vld [vmem:[%s1059 + $0x22] sm:$0xff]
      %v1320 = vld [vmem:[%s1059 + $0x32] sm:$0xff]
      %v1321 = vld [vmem:[%s1059 + $0x3a] sm:$0xff]
      %v1322 = vld [vmem:[%s1059 + $0x4a] sm:$0xff]
      %v1323 = vld [vmem:[%s1059 + $0x52] sm:$0xff]
      %v1324 = vld [vmem:[%s1059 + $0x62] sm:$0xff]
      %v1325 = vld [vmem:[%s1059 + $0x6a] sm:$0xff]
      %v1326 = vld [vmem:[%s1059 + $0x7a] sm:$0xff]
      %v1327 = vld [vmem:[%s1059 + $0x82] sm:$0xff]
      %v1328 = vld [vmem:[%s1059 + $0x92] sm:$0xff]
      %v1329 = vld [vmem:[%s1059 + $0x9a] sm:$0xff]
      %v1330 = vld [vmem:[%s1059 + $0xaa] sm:$0xff]
      %v1331 = vld [vmem:[%s1059 + $0xb2] sm:$0xff]
      %v1332 = vld [vmem:[%s1059 + $0xc2] sm:$0xff]
      %v1333 = vld [vmem:[%s1059 + $0xca] sm:$0xff]
      %v1334 = vld [vmem:[%s1059 + $0xda] sm:$0xff]
      %v1335 = vld [vmem:[%s1059 + $0xe2] sm:$0xff]
      %v1336 = vld [vmem:[%s1059 + $0xf2] sm:$0xff]
      %v1337 = vld [vmem:[%s1059 + $0xfa] sm:$0xff]
      %v1338 = vld [vmem:[%s1059 + $0x10a] sm:$0xff]
      %v1339 = vld [vmem:[%s1059 + $0x112] sm:$0xff]
      %v1340 = vld [vmem:[%s1059 + $0x122] sm:$0xff]
      %v1341 = vld [vmem:[%s1059 + $0x12a] sm:$0xff]
      %v1342 = vld [vmem:[%s1059 + $0x13a] sm:$0xff]
      %v1343 = vld [vmem:[%s1059 + $0x142] sm:$0xff]
      %v1344 = vld [vmem:[%s1059 + $0x152] sm:$0xff]
      %v1345 = vld [vmem:[%s1059 + $0x15a] sm:$0xff]
      %v1346 = vld [vmem:[%s1059 + $0x16a] sm:$0xff]
      %v1347 = vld [vmem:[%s1059 + $0x172] sm:$0xff]
      %v1348 = vpack.c.bf16 %v1317, %v1316
      %v1349 = vpack.c.bf16 %v1319, %v1318
      %v1350 = vpack.c.bf16 %v1321, %v1320
      %v1351 = vpack.c.bf16 %v1323, %v1322
      %v1352 = vpack.c.bf16 %v1325, %v1324
      %v1353 = vpack.c.bf16 %v1327, %v1326
      %v1354 = vpack.c.bf16 %v1329, %v1328
      %v1355 = vpack.c.bf16 %v1331, %v1330
      %v1356 = vpack.c.bf16 %v1333, %v1332
      %v1357 = vpack.c.bf16 %v1335, %v1334
      %v1358 = vpack.c.bf16 %v1337, %v1336
      %v1359 = vpack.c.bf16 %v1339, %v1338
      %v1360 = vpack.c.bf16 %v1341, %v1340
      %v1361 = vpack.c.bf16 %v1343, %v1342
      %v1362 = vpack.c.bf16 %v1345, %v1344
      %v1363 = vpack.c.bf16 %v1347, %v1346
      %1364 = vst.msk [vmem:[#allocation3 + $0x10] sm:$0xff] %vm341, %v1348
      %1365 = vst.msk [vmem:[#allocation3 + $0x28] sm:$0xff] %vm341, %v1349
      %1366 = vst.msk [vmem:[#allocation3 + $0x40] sm:$0xff] %vm341, %v1350
      %1367 = vst.msk [vmem:[#allocation3 + $0x58] sm:$0xff] %vm341, %v1351
      %1368 = vst.msk [vmem:[#allocation3 + $0x70] sm:$0xff] %vm341, %v1352
      %1369 = vst.msk [vmem:[#allocation3 + $0x88] sm:$0xff] %vm341, %v1353
      %1370 = vst.msk [vmem:[#allocation3 + $0xa0] sm:$0xff] %vm341, %v1354
      %1371 = vst.msk [vmem:[#allocation3 + $0xb8] sm:$0xff] %vm341, %v1355
      %1372 = vst.msk [vmem:[#allocation3 + $0xd0] sm:$0xff] %vm341, %v1356
      %1373 = vst.msk [vmem:[#allocation3 + $0xe8] sm:$0xff] %vm341, %v1357
      %1374 = vst.msk [vmem:[#allocation3 + $0x100] sm:$0xff] %vm341, %v1358
      %1375 = vst.msk [vmem:[#allocation3 + $0x118] sm:$0xff] %vm341, %v1359
      %1376 = vst.msk [vmem:[#allocation3 + $0x130] sm:$0xff] %vm341, %v1360
      %1377 = vst.msk [vmem:[#allocation3 + $0x148] sm:$0xff] %vm341, %v1361
      %1378 = vst.msk [vmem:[#allocation3 + $0x160] sm:$0xff] %vm341, %v1362
      %1379 = vst.msk [vmem:[#allocation3 + $0x178] sm:$0xff] %vm341, %v1363
      %v1380 = vld [vmem:[%s3] sm:$0xff]
      %v1381 = vld [vmem:[%s3 + $0x8] sm:$0xf]
      %v1382 = vld [vmem:[#allocation3] sm:$0xff]
      %v1383 = vld [vmem:[#allocation3 + $0x8] sm:$0xff]
      %v1384 = vld [vmem:[#allocation3 + $0x10] sm:$0xff]
      %v1385 = vld [vmem:[#allocation3 + $0x18] sm:$0xff]
      %v1386 = vld [vmem:[#allocation3 + $0x20] sm:$0xff]
      %v1387 = vld [vmem:[#allocation3 + $0x28] sm:$0xff]
      %v1388 = vld [vmem:[#allocation3 + $0x30] sm:$0xff]
      %v1389 = vld [vmem:[#allocation3 + $0x38] sm:$0xff]
      %v1390 = vld [vmem:[#allocation3 + $0x40] sm:$0xff]
      %v1391 = vld [vmem:[#allocation3 + $0x48] sm:$0xff]
      %v1392 = vld [vmem:[#allocation3 + $0x50] sm:$0xff]
      %v1393 = vld [vmem:[#allocation3 + $0x58] sm:$0xff]
      %v1394 = vld [vmem:[#allocation3 + $0x60] sm:$0xff]
      %v1395 = vld [vmem:[#allocation3 + $0x68] sm:$0xff]
      %v1396 = vld [vmem:[#allocation3 + $0x70] sm:$0xff]
      %v1397 = vld [vmem:[#allocation3 + $0x78] sm:$0xff]
      %v1398 = vld [vmem:[#allocation3 + $0x80] sm:$0xff]
      %v1399 = vld [vmem:[#allocation3 + $0x88] sm:$0xff]
      %v1400 = vld [vmem:[#allocation3 + $0x90] sm:$0xff]
      %v1401 = vld [vmem:[#allocation3 + $0x98] sm:$0xff]
      %v1402 = vld [vmem:[#allocation3 + $0xa0] sm:$0xff]
      %v1403 = vld [vmem:[#allocation3 + $0xa8] sm:$0xff]
      %v1404 = vld [vmem:[#allocation3 + $0xb0] sm:$0xff]
      %v1405 = vld [vmem:[#allocation3 + $0xb8] sm:$0xff]
      %v1406 = vld [vmem:[#allocation3 + $0xc0] sm:$0xff]
      %v1407 = vld [vmem:[#allocation3 + $0xc8] sm:$0xff]
      %v1408 = vld [vmem:[#allocation3 + $0xd0] sm:$0xff]
      %v1409 = vld [vmem:[#allocation3 + $0xd8] sm:$0xff]
      %v1410 = vld [vmem:[#allocation3 + $0xe0] sm:$0xff]
      %v1411 = vld [vmem:[#allocation3 + $0xe8] sm:$0xff]
      %v1412 = vld [vmem:[#allocation3 + $0xf0] sm:$0xff]
      %v1413 = vld [vmem:[#allocation3 + $0xf8] sm:$0xff]
      %v1414 = vld [vmem:[#allocation3 + $0x100] sm:$0xff]
      %v1415 = vld [vmem:[#allocation3 + $0x108] sm:$0xff]
      %v1416 = vld [vmem:[#allocation3 + $0x110] sm:$0xff]
      %v1417 = vld [vmem:[#allocation3 + $0x118] sm:$0xff]
      %v1418 = vld [vmem:[#allocation3 + $0x120] sm:$0xff]
      %v1419 = vld [vmem:[#allocation3 + $0x128] sm:$0xff]
      %v1420 = vld [vmem:[#allocation3 + $0x130] sm:$0xff]
      %v1421 = vld [vmem:[#allocation3 + $0x138] sm:$0xff]
      %v1422 = vld [vmem:[#allocation3 + $0x140] sm:$0xff]
      %v1423 = vld [vmem:[#allocation3 + $0x148] sm:$0xff]
      %v1424 = vld [vmem:[#allocation3 + $0x150] sm:$0xff]
      %v1425 = vld [vmem:[#allocation3 + $0x158] sm:$0xff]
      %v1426 = vld [vmem:[#allocation3 + $0x160] sm:$0xff]
      %v1427 = vld [vmem:[#allocation3 + $0x168] sm:$0xff]
      %v1428 = vld [vmem:[#allocation3 + $0x170] sm:$0xff]
      %v1429 = vld [vmem:[#allocation3 + $0x178] sm:$0xff]
      %v1432 = vunpack.c.l.b16 %v1380
      %v1433 = vunpack.c.h.b16 %v1380
      %v1434 = vunpack.c.l.b16 %v1381
      %v1435 = vpack.c.b16 %v1432, %v1432
      %v1436 = vpack.c.b16 %v1433, %v1433
      %v1437 = vpack.c.b16 %v1434, %v1434
      %v1441 = vsel %vm341, %v1437, 0
      %v1444 = vsel %vm341, %v1384, 0
      %v1447 = vsel %vm341, %v1387, 0
      %v1450 = vsel %vm341, %v1390, 0
      %v1453 = vsel %vm341, %v1393, 0
      %v1456 = vsel %vm341, %v1396, 0
      %v1459 = vsel %vm341, %v1399, 0
      %v1462 = vsel %vm341, %v1402, 0
      %v1465 = vsel %vm341, %v1405, 0
      %v1468 = vsel %vm341, %v1408, 0
      %v1471 = vsel %vm341, %v1411, 0
      %v1474 = vsel %vm341, %v1414, 0
      %v1477 = vsel %vm341, %v1417, 0
      %v1480 = vsel %vm341, %v1420, 0
      %v1483 = vsel %vm341, %v1423, 0
      %v1486 = vsel %vm341, %v1426, 0
      %v1489 = vsel %vm341, %v1429, 0
      %1491 = vmatprep.subr.bf16.mxu0 %v1383
      %1492 = vmatpush1.bf16.xpose.msra.mxu0 %v1382
      %1493 = vmatprep.subr.bf16.mxu0 %v1386
      %1494 = vmatpush1.bf16.xpose.msra.mxu0 %v1385
      %1495 = vmatprep.subr.bf16.mxu0 %v1389
      %1496 = vmatpush1.bf16.xpose.msra.mxu0 %v1388
      %1497 = vmatprep.subr.bf16.mxu0 %v1392
      %1498 = vmatpush1.bf16.xpose.msra.mxu0 %v1391
      %1499 = vmatprep.subr.bf16.mxu0 %v1395
      %1500 = vmatpush1.bf16.xpose.msra.mxu0 %v1394
      %1501 = vmatprep.subr.bf16.mxu0 %v1398
      %1502 = vmatpush1.bf16.xpose.msra.mxu0 %v1397
      %1503 = vmatprep.subr.bf16.mxu0 %v1401
      %1504 = vmatpush1.bf16.xpose.msra.mxu0 %v1400
      %1505 = vmatprep.subr.bf16.mxu0 %v1404
      %1506 = vmatpush1.bf16.xpose.msra.mxu0 %v1403
      %1507 = vmatprep.subr.bf16.mxu0 %v1407
      %1508 = vmatpush1.bf16.xpose.msra.mxu0 %v1406
      %1509 = vmatprep.subr.bf16.mxu0 %v1410
      %1510 = vmatpush1.bf16.xpose.msra.mxu0 %v1409
      %1511 = vmatprep.subr.bf16.mxu0 %v1413
      %1512 = vmatpush1.bf16.xpose.msra.mxu0 %v1412
      %1513 = vmatprep.subr.bf16.mxu0 %v1416
      %1514 = vmatpush1.bf16.xpose.msra.mxu0 %v1415
      %1515 = vmatprep.subr.bf16.mxu0 %v1419
      %1516 = vmatpush1.bf16.xpose.msra.mxu0 %v1418
      %1517 = vmatprep.subr.bf16.mxu0 %v1422
      %1518 = vmatpush1.bf16.xpose.msra.mxu0 %v1421
      %1519 = vmatprep.subr.bf16.mxu0 %v1425
      %1520 = vmatpush1.bf16.xpose.msra.mxu0 %v1424
      %1521 = vmatprep.subr.bf16.mxu0 %v1428
      %1522 = vmatpush1.bf16.xpose.msra.mxu0 %v1427
      %1523 = vmatprep.mubr.bf16.mxu0 %v1436
      %1524 = vmatmul.mubr.bf16.gmra.mrb[0].mxu0 %v1435
      %v1525 = vpop.f32.mrb[0].mxu0
      %v1526 = vadd.f32 0.0, %v1525
      %v1527 = vpop.f32.mrb[0].mxu0
      %v1528 = vadd.f32 0.0, %v1527
      %v1529 = vpop.f32.mrb[0].mxu0
      %v1530 = vpop.f32.mrb[0].mxu0
      %1531 = vdwg.mxu0
      %1532 = vmatprep.subr.bf16.mxu0 0
      %1533 = vmatpush1.bf16.xpose.msra.mxu0 %v1444
      %1534 = vmatprep.subr.bf16.mxu0 0
      %1535 = vmatpush1.bf16.xpose.msra.mxu0 %v1447
      %1536 = vmatprep.subr.bf16.mxu0 0
      %1537 = vmatpush1.bf16.xpose.msra.mxu0 %v1450
      %1538 = vmatprep.subr.bf16.mxu0 0
      %1539 = vmatpush1.bf16.xpose.msra.mxu0 %v1453
      %1540 = vmatprep.subr.bf16.mxu0 0
      %1541 = vmatpush1.bf16.xpose.msra.mxu0 %v1456
      %1542 = vmatprep.subr.bf16.mxu0 0
      %1543 = vmatpush1.bf16.xpose.msra.mxu0 %v1459
      %1544 = vmatprep.subr.bf16.mxu0 0
      %1545 = vmatpush1.bf16.xpose.msra.mxu0 %v1462
      %1546 = vmatprep.subr.bf16.mxu0 0
      %1547 = vmatpush1.bf16.xpose.msra.mxu0 %v1465
      %1548 = vmatprep.subr.bf16.mxu0 0
      %1549 = vmatpush1.bf16.xpose.msra.mxu0 %v1468
      %1550 = vmatprep.subr.bf16.mxu0 0
      %1551 = vmatpush1.bf16.xpose.msra.mxu0 %v1471
      %1552 = vmatprep.subr.bf16.mxu0 0
      %1553 = vmatpush1.bf16.xpose.msra.mxu0 %v1474
      %1554 = vmatprep.subr.bf16.mxu0 0
      %1555 = vmatpush1.bf16.xpose.msra.mxu0 %v1477
      %1556 = vmatprep.subr.bf16.mxu0 0
      %1557 = vmatpush1.bf16.xpose.msra.mxu0 %v1480
      %1558 = vmatprep.subr.bf16.mxu0 0
      %1559 = vmatpush1.bf16.xpose.msra.mxu0 %v1483
      %1560 = vmatprep.subr.bf16.mxu0 0
      %1561 = vmatpush1.bf16.xpose.msra.mxu0 %v1486
      %1562 = vmatprep.subr.bf16.mxu0 0
      %1563 = vmatpush1.bf16.xpose.msra.mxu0 %v1489
      %1564 = vmatprep.mubr.bf16.mxu0 0
      %1565 = vmatmul.mubr.bf16.gmra.mrb[0].mxu0 %v1441
      %v1566 = vpop.f32.mrb[0].mxu0
      %v1567 = vadd.f32 %v1526, %v1566
      %v1568 = vpop.f32.mrb[0].mxu0
      %v1569 = vadd.f32 %v1528, %v1568
      %v1570 = vpop.f32.mrb[0].mxu0
      %v1571 = vpop.f32.mrb[0].mxu0
      %1572 = vdwg.mxu0
      %1573 = vst [vmem:[%s197] sm:$0xff] %v1567
      %1574 = vst [vmem:[%s197 + $0x8] sm:$0xff] %v1569
      %p1575 = scmp.lt.s32.totalorder %s15, 1
      %s1576 = scalar_select %p1575, %s15, 1
      %s1577 = smul.addr %s1576, 2
      %s1578 = smul.addr %s1577, 8
      %s1579 = scalar_lea.vmem %s4, %s1578
      // Predicated region
      $region37: #{bottleneck_forward.5} parent=35 // pred_check
        %p1580 = pneg %p122
      $region38: #{bottleneck_forward.5} parent=35 // pred_check_branch
        %1582 = sbr.rel (%p1580) target = $region40
      $region39: #{bottleneck_forward.5} parent=35 // pred_region
        _
      $region40: #{bottleneck_forward.5} parent=35 // pred_fallthru
        _
    $region36: #{bottleneck_forward.5} parent=5 // pred_fallthru
      _
    %p1583 = scmp.le.s32.totalorder 2, %s10
    // Predicated region
    $region41: #{bottleneck_forward.5} parent=5 // pred_check
      %p1584 = pneg %p1583
    $region42: #{bottleneck_forward.5} parent=5 // pred_check_branch
      %1586 = sbr.rel (%p1584) target = $region44
    $region43: #{bottleneck_forward.5} parent=5 // pred_region
      %s1587 = ssub.s32 %s10, 2
      // Predicated region
      $region45: #{bottleneck_forward.5} parent=43 // pred_check
        %p1588 = pneg %p128
      $region46: #{bottleneck_forward.5} parent=43 // pred_check_branch
        %1590 = sbr.rel (%p1588) target = $region48
      $region47: #{bottleneck_forward.5} parent=43 // pred_region
        %p1591 = scmp.lt.s32.totalorder %s16, 1
        %s1592 = scalar_select %p1591, %s16, 1
        %s1593 = smul.addr %s1592, 2
        %s1594 = smul.addr %s1593, 8
        %s1595 = scalar_lea.vmem %s4, %s1594
      $region48: #{bottleneck_forward.5} parent=43 // pred_fallthru
        _
    $region44: #{bottleneck_forward.5} parent=5 // pred_fallthru
      _
  $region6: #{bottleneck_forward.5} parent=0 // loop_footer
    %s14 = sadd.s32 1, %s10
  $region7: #{bottleneck_forward.5} parent=0 // loop_footer_branch
    %9 = sbr.rel target = $region3
  $region8: #{bottleneck_forward.5} parent=0 // loop_exit
    _

</llo_original>
